<compile_context>
chip_gen: v5e
topology: v5e:2x2
jax: 0.10.0
libtpu: 0.0.40
codegen_flags: <defaults>
</compile_context>

<pallas_src>
import functools
import math

import jax
import jax.numpy as jnp
from jax.experimental import pallas as pl
from jax.experimental.pallas import tpu as pltpu


def _round_up(x, m):
    return (x + m - 1) // m * m


def _lcm(a, b):
    return a * b // math.gcd(a, b)


def _vmem_capacity_bytes():
    try:
        return int(pltpu.get_tpu_info().vmem_capacity_bytes)
    except Exception:
        return 64 * 2**20  # conservative (v7x-sized) fallback


def _choose_tiles(n_nodes, tile_m, tile_k):
    """Pick row/reduction tiles and a single node padding NP that both divide."""
    tm = max(16, min(_round_up(tile_m, 16), _round_up(n_nodes, 16)))
    tk = max(128, min(_round_up(tile_k, 128), _round_up(n_nodes, 128)))
    np_pad = _round_up(n_nodes, _lcm(tm, tk))
    # Keep >= 2 row tiles when possible so megacore / both v7x TCs get work.
    if np_pad // tm < 2 and n_nodes > 16:
        tm = max(16, _round_up(max(tm // 2, 1), 16))
        np_pad = _round_up(n_nodes, _lcm(tm, tk))
    return tm, tk, np_pad


def _gcn_layer_kernel(adj_ref, x_ref, w_ref, b_ref, invdeg_ref, o_ref, acc_ref,
                      *, tk, x_resident):
    k = pl.program_id(1)

    @pl.when(k == 0)
    def _():
        acc_ref[...] = jnp.zeros_like(acc_ref)

    if x_resident:
        # X is fully resident in VMEM (grid-invariant block); slice the k-th
        # reduction chunk explicitly. Start is a known multiple of tk.
        start = pl.multiple_of(k * tk, tk)
        x_tile = x_ref[pl.ds(start, tk), :]
    else:
        x_tile = x_ref[...]

    # Partial aggregation of in-neighbor messages on the MXU (bf16 in, f32 acc).
    acc_ref[...] += jnp.dot(adj_ref[...], x_tile,
                            preferred_element_type=jnp.float32)

    @pl.when(k == pl.num_programs(1) - 1)
    def _():
        # norm='right': exact f32 inverse in-degree (precomputed outside).
        agg = acc_ref[...] * invdeg_ref[...]
        # Aggregate-then-transform (DGL path for in_feat <= out_feat).
        h = jnp.dot(agg.astype(w_ref.dtype), w_ref[...],
                    preferred_element_type=jnp.float32)
        # Lane-dense (multiple-of-128 wide) store -> unmasked vst.
        o_ref[...] = (h + b_ref[...]).astype(o_ref.dtype)


def _graph_conv_padded(adj_p, x_p, w, b, invdeg_p, *, tm, tk, out_dtype,
                       compute_dtype, vmem_cap):
    """One GraphConv layer on already-padded graph/feature tensors.

    adj_p:    [NP, NP]   compute_dtype edge weights (padded, 0 = no edge)
    x_p:      [NP, Finp] compute_dtype node features (lane-dense padded)
    w:        [Fin, Fout] unpadded weight;  b: bias (1, Fout) or (Fout,)
    invdeg_p: [NP, 1]    f32 1/max(in_degree, 1) (padded rows = 1)
    Returns   [NP, Foutp] out_dtype (padded, lane-dense).
    """
    NP, KP = adj_p.shape
    Finp = x_p.shape[1]
    Fin, Fout = w.shape
    Foutp = _round_up(Fout, 128)

    # Tiny per-layer tensors: pad weight/bias (zero padding is exact).
    w_p = jnp.zeros((Finp, Foutp), compute_dtype).at[:Fin, :Fout].set(
        w.astype(compute_dtype))
    b_p = jnp.zeros((1, Foutp), jnp.float32).at[:, :Fout].set(
        b.reshape(1, -1).astype(jnp.float32))

    bpe = jnp.dtype(compute_dtype).itemsize
    obe = jnp.dtype(out_dtype).itemsize

    # Resident-X decision: whole source-feature matrix stays in VMEM when it
    # fits comfortably (32 MiB on 128 MiB parts, 16 MiB on 64 MiB v7x).
    x_bytes = KP * Finp * bpe
    resident_cap = 32 * 2**20 if vmem_cap >= 100 * 2**20 else 16 * 2**20
    x_resident = x_bytes <= resident_cap

    grid = (NP // tm, KP // tk)

    # VMEM estimate with layout padding accounted:
    #   adj tile x2 (double buffer), X (resident once or tiled x2),
    #   weight x2, bias (1,Foutp) sublane-pads to (8,Foutp),
    #   inv-degree (tm,1) lane-pads to (tm,128), output tile x2, f32 acc.
    vmem_est = (2 * tm * tk * bpe
                + (x_bytes if x_resident else 2 * tk * Finp * bpe)
                + 2 * Finp * Foutp * bpe
                + 2 * 8 * Foutp * 4
                + 2 * tm * 128 * 4
                + 2 * tm * Foutp * obe
                + tm * Finp * 4)
    vmem_limit = int(min(vmem_cap - 16 * 2**20,
                         max(int(1.5 * vmem_est), 16 * 2**20)))

    if x_resident:
        x_spec = pl.BlockSpec((KP, Finp), lambda i, k: (0, 0))   # resident
    else:
        x_spec = pl.BlockSpec((tk, Finp), lambda i, k: (k, 0))   # K-tiled

    kernel = functools.partial(_gcn_layer_kernel, tk=tk, x_resident=x_resident)

    return pl.pallas_call(
        kernel,
        out_shape=jax.ShapeDtypeStruct((NP, Foutp), out_dtype),
        grid_spec=pltpu.PrefetchScalarGridSpec(
            num_scalar_prefetch=0,
            grid=grid,
            in_specs=[
                pl.BlockSpec((tm, tk), lambda i, k: (i, k)),        # adj tile
                x_spec,                                              # src feats
                pl.BlockSpec((Finp, Foutp), lambda i, k: (0, 0)),    # weight
                pl.BlockSpec((1, Foutp), lambda i, k: (0, 0)),       # bias
                pl.BlockSpec((tm, 1), lambda i, k: (i, 0)),          # 1/in-degree
            ],
            out_specs=pl.BlockSpec((tm, Foutp), lambda i, k: (i, 0)),
            scratch_shapes=[pltpu.VMEM((tm, Finp), jnp.float32)],
        ),
        compiler_params=pltpu.CompilerParams(
            dimension_semantics=("parallel", "arbitrary"),
            vmem_limit_bytes=vmem_limit,
        ),
    )(adj_p, x_p, w_p, b_p, invdeg_p)


def stochastic_k_layer_rgcn_forward(adj, deg, x, layer_params, *,
                                    tile_m=512, tile_k=2048,
                                    compute_dtype=jnp.bfloat16):
    """StochasticKLayerRGCN.forward with residual=False: stacked GraphConvs.

    adj:  [N, N] f32 edge weights (0 = no edge)   deg: [N, 1] in-degree counts
    x:    [N, F_in] node features
    layer_params: list of (W, b) for conv_start, [middles...], conv_end.
    Returns [N, F_out_last] f32.
    """
    N, Nsrc = adj.shape
    assert N == Nsrc, "single-ntype graph: square adjacency expected"
    tm, tk, NP = _choose_tiles(N, tile_m, tile_k)
    vmem_cap = _vmem_capacity_bytes()

    # Pad + cast the dominant N^2 adjacency stream and the degree normalizer
    # ONCE per forward (hoisted out of the per-layer loop).  Zero padding is
    # exact: padded rows/cols contribute nothing; padded inv-degrees are 1.
    adj_p = jnp.zeros((NP, NP), compute_dtype).at[:N, :Nsrc].set(
        adj.astype(compute_dtype))
    invdeg_p = jnp.ones((NP, 1), jnp.float32).at[:N, :].set(
        1.0 / jnp.maximum(deg.astype(jnp.float32), 1.0))

    # Initial features: padded, lane-dense, compute_dtype.
    Fin = x.shape[1]
    Finp = _round_up(Fin, 128)
    h = jnp.zeros((NP, Finp), compute_dtype).at[:N, :Fin].set(
        x.astype(compute_dtype))

    n_layers = len(layer_params)
    for li, (w, b) in enumerate(layer_params):
        last = li == n_layers - 1
        # Intermediate activations stay padded compute_dtype (no re-pad/cast);
        # only the final layer emits f32.
        h = _graph_conv_padded(
            adj_p, h, w, b, invdeg_p,
            tm=tm, tk=tk,
            out_dtype=jnp.float32 if last else compute_dtype,
            compute_dtype=compute_dtype,
            vmem_cap=vmem_cap)

    Fout = layer_params[-1][0].shape[1]
    return h[:N, :Fout]


if __name__ == "__main__":
    key = jax.random.PRNGKey(0)
    k_mask, k_ew, k_x, k_w1, k_b1, k_w2, k_b2 = jax.random.split(key, 7)

    N = 1024                 # nodes (small but exercises both grid axes)
    IN_FEAT = 64
    HIDDEN_FEAT = 128
    OUT_FEAT = 128

    # Deterministic synthetic graph: ~10% density, positive edge weights.
    mask = (jax.random.uniform(k_mask, (N, N)) < 0.10).astype(jnp.float32)
    edge_w = jax.random.uniform(k_ew, (N, N), minval=0.5, maxval=1.5)
    adj = mask * edge_w                                    # [N_dst, N_src]
    deg = jnp.sum(mask, axis=1, keepdims=True)             # unweighted in-degree

    # Node features and deterministic per-layer GraphConv parameters (k=2).
    x = jax.random.normal(k_x, (N, IN_FEAT), dtype=jnp.float32)
    w1 = jax.random.normal(k_w1, (IN_FEAT, HIDDEN_FEAT), jnp.float32) * 0.1
    b1 = jax.random.normal(k_b1, (1, HIDDEN_FEAT), jnp.float32) * 0.01
    w2 = jax.random.normal(k_w2, (HIDDEN_FEAT, OUT_FEAT), jnp.float32) * 0.1
    b2 = jax.random.normal(k_b2, (1, OUT_FEAT), jnp.float32) * 0.01
    params = [(w1, b1), (w2, b2)]

    out = stochastic_k_layer_rgcn_forward(adj, deg, x, params,
                                          tile_m=512, tile_k=2048)
    out = jax.block_until_ready(out)

    # Pure-JAX reference mirroring the kernel's numerics: bf16 MXU feeds,
    # f32 accumulation, exact f32 degree reciprocal, bf16 intermediates.
    def ref_forward(adj, deg, x, params):
        h = x.astype(jnp.bfloat16)
        invd = 1.0 / jnp.maximum(deg, 1.0)
        n = len(params)
        for i, (w, b) in enumerate(params):
            agg = jnp.dot(adj.astype(jnp.bfloat16), h,
                          preferred_element_type=jnp.float32)
            agg = agg * invd
            hh = jnp.dot(agg.astype(jnp.bfloat16), w.astype(jnp.bfloat16),
                         preferred_element_type=jnp.float32) + b
            h = hh if i == n - 1 else hh.astype(jnp.bfloat16)
        return h

    ref = ref_forward(adj, deg, x, params)

    assert out.shape == (N, OUT_FEAT)
    max_err = float(jnp.max(jnp.abs(out - ref)))
    assert jnp.allclose(out, ref, atol=2e-3, rtol=2e-3), max_err

    print("KERNEL_OK")
</pallas_src>

<mosaic_0001>
module attributes {stable_mosaic.version = 11 : i64} {
  func.func @_gcn_layer_kernel(%arg0: i32, %arg1: i32, %arg2: memref<512x1024xbf16, #tpu.memory_space<vmem>>, %arg3: memref<1024x128xbf16, #tpu.memory_space<vmem>>, %arg4: memref<128x128xbf16, #tpu.memory_space<vmem>>, %arg5: memref<1x128xf32, #tpu.memory_space<vmem>>, %arg6: memref<512x1xf32, #tpu.memory_space<vmem>>, %arg7: memref<512x128xbf16, #tpu.memory_space<vmem>>, %arg8: memref<512x128xf32, #tpu.memory_space<vmem>>) attributes {dimension_semantics = [#tpu.dimension_semantics<parallel>, #tpu.dimension_semantics<arbitrary>], iteration_bounds = array<i64: 2, 1>, scalar_prefetch = 0 : i64, scratch_operands = 1 : i64, tpu.core_type = #tpu.core_type<tc>, window_params = [{transform_indices = @transform_0, window_bounds = array<i64: 512, 1024>}, {pipeline_mode = #tpu.pipeline_mode<synchronous>, transform_indices = @transform_1, window_bounds = array<i64: 1024, 128>}, {pipeline_mode = #tpu.pipeline_mode<synchronous>, transform_indices = @transform_2, window_bounds = array<i64: 128, 128>}, {pipeline_mode = #tpu.pipeline_mode<synchronous>, transform_indices = @transform_3, window_bounds = array<i64: 1, 128>}, {transform_indices = @transform_4, window_bounds = array<i64: 512, 1>}, {transform_indices = @transform_5, window_bounds = array<i64: 512, 128>}]} {
    %c0_i32 = arith.constant 0 : i32
    %0 = arith.cmpi eq, %arg1, %c0_i32 : i32
    %1 = arith.extui %0 : i1 to i32
    %c0_i32_0 = arith.constant 0 : i32
    %2 = arith.cmpi ne, %1, %c0_i32_0 : i32
    scf.if %2 {
      %cst_9 = arith.constant 0.000000e+00 : f32
      %15 = vector.broadcast %cst_9 : f32 to vector<512x128xf32>
      %c0_10 = arith.constant 0 : index
      %c0_11 = arith.constant 0 : index
      %16 = vector.load %arg8[%c0_10, %c0_11] : memref<512x128xf32, #tpu.memory_space<vmem>>, vector<512x128xf32>
      tpu.vector_store %arg8[%c0_10, %c0_11], %15 {strides = array<i32>} : memref<512x128xf32, #tpu.memory_space<vmem>>, vector<512x128xf32>,
    } else {
    }
    %c1024_i32 = arith.constant 1024 : i32
    %3 = arith.muli %arg1, %c1024_i32 : i32
    %4 = tpu.assume_multiple %3, 1024 : i32
    %5 = arith.index_cast %4 : i32 to index
    %c0 = arith.constant 0 : index
    %6 = vector.load %arg3[%5, %c0] : memref<1024x128xbf16, #tpu.memory_space<vmem>>, vector<1024x128xbf16>
    %c0_1 = arith.constant 0 : index
    %c0_2 = arith.constant 0 : index
    %7 = vector.load %arg8[%c0_1, %c0_2] : memref<512x128xf32, #tpu.memory_space<vmem>>, vector<512x128xf32>
    %c0_3 = arith.constant 0 : index
    %c0_4 = arith.constant 0 : index
    %8 = vector.load %arg2[%c0_3, %c0_4] : memref<512x1024xbf16, #tpu.memory_space<vmem>>, vector<512x1024xbf16>
    %cst = arith.constant dense<0.000000e+00> : vector<512x128xf32>
    %9 = tpu.matmul %8, %6, %cst {dimension_numbers = #tpu.dot_dimension_numbers<[1], [0], [0], [1], [0, 0, 1, 1], [], []>} : vector<512x1024xbf16>, vector<1024x128xbf16>, vector<512x128xf32> -> vector<512x128xf32>
    %10 = arith.addf %7, %9 : vector<512x128xf32>
    %c0_5 = arith.constant 0 : index
    %c0_6 = arith.constant 0 : index
    %11 = vector.load %arg8[%c0_5, %c0_6] : memref<512x128xf32, #tpu.memory_space<vmem>>, vector<512x128xf32>
    tpu.vector_store %arg8[%c0_5, %c0_6], %10 {strides = array<i32>} : memref<512x128xf32, #tpu.memory_space<vmem>>, vector<512x128xf32>,
    %c0_i32_7 = arith.constant 0 : i32
    %12 = arith.cmpi eq, %arg1, %c0_i32_7 : i32
    %13 = arith.extui %12 : i1 to i32
    %c0_i32_8 = arith.constant 0 : i32
    %14 = arith.cmpi ne, %13, %c0_i32_8 : i32
    scf.if %14 {
      %c0_9 = arith.constant 0 : index
      %c0_10 = arith.constant 0 : index
      %15 = vector.load %arg8[%c0_9, %c0_10] : memref<512x128xf32, #tpu.memory_space<vmem>>, vector<512x128xf32>
      %c0_11 = arith.constant 0 : index
      %c0_12 = arith.constant 0 : index
      %16 = vector.load %arg6[%c0_11, %c0_12] : memref<512x1xf32, #tpu.memory_space<vmem>>, vector<512x1xf32>
      %17 = vector.broadcast %16 : vector<512x1xf32> to vector<512x128xf32>
      %18 = arith.mulf %15, %17 : vector<512x128xf32>
      %19 = arith.truncf %18 : vector<512x128xf32> to vector<512x128xbf16>
      %c0_13 = arith.constant 0 : index
      %c0_14 = arith.constant 0 : index
      %20 = vector.load %arg4[%c0_13, %c0_14] : memref<128x128xbf16, #tpu.memory_space<vmem>>, vector<128x128xbf16>
      %cst_15 = arith.constant dense<0.000000e+00> : vector<512x128xf32>
      %21 = tpu.matmul %19, %20, %cst_15 {dimension_numbers = #tpu.dot_dimension_numbers<[1], [0], [0], [1], [0, 0, 1, 1], [], []>} : vector<512x128xbf16>, vector<128x128xbf16>, vector<512x128xf32> -> vector<512x128xf32>
      %c0_16 = arith.constant 0 : index
      %c0_17 = arith.constant 0 : index
      %22 = vector.load %arg5[%c0_16, %c0_17] : memref<1x128xf32, #tpu.memory_space<vmem>>, vector<1x128xf32>
      %23 = vector.broadcast %22 : vector<1x128xf32> to vector<512x128xf32>
      %24 = arith.addf %21, %23 : vector<512x128xf32>
      %25 = arith.truncf %24 : vector<512x128xf32> to vector<512x128xbf16>
      %c0_18 = arith.constant 0 : index
      %c0_19 = arith.constant 0 : index
      %26 = vector.load %arg7[%c0_18, %c0_19] : memref<512x128xbf16, #tpu.memory_space<vmem>>, vector<512x128xbf16>
      tpu.vector_store %arg7[%c0_18, %c0_19], %25 {strides = array<i32>} : memref<512x128xbf16, #tpu.memory_space<vmem>>, vector<512x128xbf16>,
    } else {
    }
    return
  }
  func.func @transform_0(%arg0: i32, %arg1: i32) -> (i32, i32) {
    %c0_i32 = arith.constant 0 : i32
    return %arg0, %arg1 : i32, i32
  }
  func.func @transform_1(%arg0: i32, %arg1: i32) -> (i32, i32) {
    %c0_i32 = arith.constant 0 : i32
    %c0_i32_0 = arith.constant 0 : i32
    %c0_i32_1 = arith.constant 0 : i32
    return %c0_i32, %c0_i32_0 : i32, i32
  }
  func.func @transform_2(%arg0: i32, %arg1: i32) -> (i32, i32) {
    %c0_i32 = arith.constant 0 : i32
    %c0_i32_0 = arith.constant 0 : i32
    %c0_i32_1 = arith.constant 0 : i32
    return %c0_i32, %c0_i32_0 : i32, i32
  }
  func.func @transform_3(%arg0: i32, %arg1: i32) -> (i32, i32) {
    %c0_i32 = arith.constant 0 : i32
    %c0_i32_0 = arith.constant 0 : i32
    %c0_i32_1 = arith.constant 0 : i32
    return %c0_i32, %c0_i32_0 : i32, i32
  }
  func.func @transform_4(%arg0: i32, %arg1: i32) -> (i32, i32) {
    %c0_i32 = arith.constant 0 : i32
    %c0_i32_0 = arith.constant 0 : i32
    return %arg0, %c0_i32 : i32, i32
  }
  func.func @transform_5(%arg0: i32, %arg1: i32) -> (i32, i32) {
    %c0_i32 = arith.constant 0 : i32
    %c0_i32_0 = arith.constant 0 : i32
    return %arg0, %c0_i32 : i32, i32
  }
}

</mosaic_0001>

<llo_original>
// kernel: tpu_custom_call.1
$region0: #{tpu_custom_call.1}
  #allocation0 [shape = 'u32[]', space=smem, size = 0x4, offset = 0x4, fixed_abs, tag = 'smem constant byte address 0x4 - core index']
  #allocation1 [shape = 'u32[72,128]{1,0:T(1,128)}', space=vmem, size = 0x9000, scoped, tag = 'internal scratch']
  #allocation2 [shape = 'f32[512,128]{1,0:T(8,128)}', space=vmem, size = 0x40000, scoped, tag = 'scratch operand']
  %s0 = inlined_call_operand.hbm [shape: bf16[1024,1024], index: 0, kind: input, shape index: {}]
  %s1 = inlined_call_operand.hbm [shape: bf16[1024,128], index: 1, kind: input, shape index: {}]
  %s2 = inlined_call_operand.hbm [shape: bf16[128,128], index: 2, kind: input, shape index: {}]
  %s3 = inlined_call_operand.hbm [shape: f32[1,128], index: 3, kind: input, shape index: {}]
  %s4 = inlined_call_operand.vmem [shape: f32[1024,1], index: 4, kind: input, shape index: {}]
  %s5 = inlined_call_operand.hbm [shape: bf16[1024,128], index: 5, kind: output, shape index: {}]
  %s6 = sld [smem:[#allocation0]]
  $region77: #{tpu_custom_call.1} parent=0
    _
  %s8 = ssub.s32 1, %s6
  %s9 = scalar_select 0, %s8, %s6
  $region1: #{tpu_custom_call.1} parent=0
    #allocation3 [shape = 'u8[2097152]{0}', space=vmem, size = 0x200000, scoped, tag = 'input window, operand 0']
    #allocation4 [shape = 's32[2]{0}', space=sflag, size = 0x8, scoped, tag = 'scoped memory for tpu_custom_call.1']
    #allocation5 [shape = 's32[2]{0}', space=sflag, size = 0x8, scoped, tag = 'scoped memory for tpu_custom_call.1']
    #allocation6 [shape = 'u8[262144]{0}', space=vmem, size = 0x40000, scoped, tag = 'input window, operand 1, single buffered']
    #allocation7 [shape = 's32[1]{0}', space=sflag, size = 0x4, scoped, tag = 'scoped memory for tpu_custom_call.1']
    #allocation8 [shape = 'u8[32768]{0}', space=vmem, size = 0x8000, scoped, tag = 'input window, operand 2, single buffered']
    #allocation9 [shape = 'u8[512]{0}', space=vmem, size = 0x400, scoped, tag = 'input window, operand 3, single buffered']
    #allocation10 [shape = 's32[1]{0}', space=sflag, size = 0x4, scoped, tag = 'scoped memory for tpu_custom_call.1']
    #allocation11 [shape = 'u8[262144]{0}', space=vmem, size = 0x40000, scoped, tag = 'output window, operand 0']
    %10 = vsyncpa [#allocation4], 0
    %s11 = scalar_lea.sflag [#allocation4], 1
    %12 = vsyncpa %s11, 0
    %13 = vsyncpa [#allocation7], 0
    %14 = vsyncpa [#allocation10], 0
    %15 = vsyncpa [#allocation5], 0
    %s16 = scalar_lea.sflag [#allocation5], 1
    %17 = vsyncpa %s16, 0
    loop: start=0, step=1, limit=4
    $region2: #{tpu_custom_call.1} parent=1 // loop_pre_header
      _
    $region3: #{tpu_custom_call.1} parent=1 // loop_header
      %s19 = sphi 0, %s23
      %p20 = scmp.ge.s32.totalorder %s19, 4
      %s26 = sphi 0, %s38
      %s27 = sphi 0, %s34
      %s28 = sphi 0, %s26
      %s29 = sphi 0, %s27
      %s30 = sphi 0, %s28
      %s31 = sphi 0, %s29
      %s43 = sphi 0, %s45
      %s46 = sphi 0, %s43
      %s47 = sphi 0, %s46
      %s63 = sphi 0, %s47
      %s67 = sphi 0, %s67
      %s69 = sphi 0, %s67
      %s70 = sphi 0, %s69
      %s84 = sphi 0, %s70
      %s88 = sphi 0, %s88
      %s90 = sphi 0, %s88
      %s91 = sphi 0, %s90
      %s105 = sphi 0, %s91
      %s109 = sphi 0, %s109
      %s111 = sphi 0, %s109
      %s112 = sphi 0, %s111
      %s126 = sphi 0, %s112
      %s132 = sphi 0, %s134
      %s135 = sphi 0, %s132
      %s136 = sphi 0, %s135
      %s152 = sphi 0, %s136
      %s158 = sphi 0, %s160
      %s161 = sphi 0, %s158
      %s162 = sphi 0, %s161
      %s178 = sphi 0, %s162
    $region4: #{tpu_custom_call.1} parent=1 // loop_header_branch
      %22 = sbr.rel (%p20) target = $region8
    $region5: #{tpu_custom_call.1} parent=1 // loop_body
      %s24 = ssub.s32 %s19, 1
      %s25 = ssub.s32 %s19, 2
      %s32 = sadd.s32 1, %s27
      %p33 = scmp.ge.s32.totalorder %s32, 1
      %s34 = scalar_select %p33, 0, %s32
      %s35 = sadd.s32 1, %s26
      %s36 = scalar_select %p33, %s35, %s26
      %p37 = scmp.ge.s32.totalorder %s36, 2
      %s38 = scalar_select %p37, 0, %s36
      %s39 = ssub.s32 %s26, %s38
      %s40 = ssub.s32 %s27, %s34
      %s41 = sor.u32 %s39, %s40
      %p42 = scmp.eq.s32.totalorder %s41, 0
      %s44 = sadd.s32 %s43, 1
      %s45 = scalar_select %p42, %s43, %s44
      %p48 = pneg %p42
      %p49 = scmp.eq.s32.totalorder %s19, 1
      %p50 = por %p48, %p49
      %p51 = scmp.ne.s32.totalorder %s43, %s46
      %p52 = scmp.eq.s32.totalorder %s19, 0
      %p53 = por %p51, %p52
      %p54 = scmp.ne.s32.totalorder %s43, %s46
      %p55 = scmp.eq.s32.totalorder %s24, 1
      %p56 = por %p54, %p55
      %p57 = scmp.ne.s32.totalorder %s46, %s47
      %p58 = scmp.eq.s32.totalorder %s24, 0
      %p59 = por %p57, %p58
      %p60 = scmp.ne.s32.totalorder %s46, %s47
      %p61 = scmp.eq.s32.totalorder %s25, 1
      %p62 = por %p60, %p61
      %p64 = scmp.ne.s32.totalorder %s47, %s63
      %p65 = scmp.eq.s32.totalorder %s25, 0
      %p66 = por %p64, %p65
      %s68 = sadd.s32 %s67, 1
      %p71 = scmp.eq.s32.totalorder %s19, 1
      %p72 = scmp.ne.s32.totalorder %s67, %s69
      %p73 = scmp.eq.s32.totalorder %s19, 0
      %p74 = por %p72, %p73
      %p75 = scmp.ne.s32.totalorder %s67, %s69
      %p76 = scmp.eq.s32.totalorder %s24, 1
      %p77 = por %p75, %p76
      %p78 = scmp.ne.s32.totalorder %s69, %s70
      %p79 = scmp.eq.s32.totalorder %s24, 0
      %p80 = por %p78, %p79
      %p81 = scmp.ne.s32.totalorder %s69, %s70
      %p82 = scmp.eq.s32.totalorder %s25, 1
      %p83 = por %p81, %p82
      %p85 = scmp.ne.s32.totalorder %s70, %s84
      %p86 = scmp.eq.s32.totalorder %s25, 0
      %p87 = por %p85, %p86
      %s89 = sadd.s32 %s88, 1
      %p92 = scmp.eq.s32.totalorder %s19, 1
      %p93 = scmp.ne.s32.totalorder %s88, %s90
      %p94 = scmp.eq.s32.totalorder %s19, 0
      %p95 = por %p93, %p94
      %p96 = scmp.ne.s32.totalorder %s88, %s90
      %p97 = scmp.eq.s32.totalorder %s24, 1
      %p98 = por %p96, %p97
      %p99 = scmp.ne.s32.totalorder %s90, %s91
      %p100 = scmp.eq.s32.totalorder %s24, 0
      %p101 = por %p99, %p100
      %p102 = scmp.ne.s32.totalorder %s90, %s91
      %p103 = scmp.eq.s32.totalorder %s25, 1
      %p104 = por %p102, %p103
      %p106 = scmp.ne.s32.totalorder %s91, %s105
      %p107 = scmp.eq.s32.totalorder %s25, 0
      %p108 = por %p106, %p107
      %s110 = sadd.s32 %s109, 1
      %p113 = scmp.eq.s32.totalorder %s19, 1
      %p114 = scmp.ne.s32.totalorder %s109, %s111
      %p115 = scmp.eq.s32.totalorder %s19, 0
      %p116 = por %p114, %p115
      %p117 = scmp.ne.s32.totalorder %s109, %s111
      %p118 = scmp.eq.s32.totalorder %s24, 1
      %p119 = por %p117, %p118
      %p120 = scmp.ne.s32.totalorder %s111, %s112
      %p121 = scmp.eq.s32.totalorder %s24, 0
      %p122 = por %p120, %p121
      %p123 = scmp.ne.s32.totalorder %s111, %s112
      %p124 = scmp.eq.s32.totalorder %s25, 1
      %p125 = por %p123, %p124
      %p127 = scmp.ne.s32.totalorder %s112, %s126
      %p128 = scmp.eq.s32.totalorder %s25, 0
      %p129 = por %p127, %p128
      %s130 = ssub.s32 %s26, %s38
      %p131 = scmp.eq.s32.totalorder %s130, 0
      %s133 = sadd.s32 %s132, 1
      %s134 = scalar_select %p131, %s132, %s133
      %p137 = pneg %p131
      %p138 = scmp.eq.s32.totalorder %s19, 1
      %p139 = por %p137, %p138
      %p140 = scmp.ne.s32.totalorder %s132, %s135
      %p141 = scmp.eq.s32.totalorder %s19, 0
      %p142 = por %p140, %p141
      %p143 = scmp.ne.s32.totalorder %s132, %s135
      %p144 = scmp.eq.s32.totalorder %s24, 1
      %p145 = por %p143, %p144
      %p146 = scmp.ne.s32.totalorder %s135, %s136
      %p147 = scmp.eq.s32.totalorder %s24, 0
      %p148 = por %p146, %p147
      %p149 = scmp.ne.s32.totalorder %s135, %s136
      %p150 = scmp.eq.s32.totalorder %s25, 1
      %p151 = por %p149, %p150
      %p153 = scmp.ne.s32.totalorder %s136, %s152
      %p154 = scmp.eq.s32.totalorder %s25, 0
      %p155 = por %p153, %p154
      %s156 = ssub.s32 %s26, %s38
      %p157 = scmp.eq.s32.totalorder %s156, 0
      %s159 = sadd.s32 %s158, 1
      %s160 = scalar_select %p157, %s158, %s159
      %p163 = pneg %p157
      %p164 = scmp.eq.s32.totalorder %s19, 1
      %p165 = por %p163, %p164
      %p166 = scmp.ne.s32.totalorder %s158, %s161
      %p167 = scmp.eq.s32.totalorder %s19, 0
      %p168 = por %p166, %p167
      %p169 = scmp.ne.s32.totalorder %s158, %s161
      %p170 = scmp.eq.s32.totalorder %s24, 1
      %p171 = por %p169, %p170
      %p172 = scmp.ne.s32.totalorder %s161, %s162
      %p173 = scmp.eq.s32.totalorder %s24, 0
      %p174 = por %p172, %p173
      %p175 = scmp.ne.s32.totalorder %s161, %s162
      %p176 = scmp.eq.s32.totalorder %s25, 1
      %p177 = por %p175, %p176
      %p179 = scmp.ne.s32.totalorder %s162, %s178
      %p180 = scmp.eq.s32.totalorder %s25, 0
      %p181 = por %p179, %p180
      %p182 = scmp.le.s32.totalorder 1, %s19
      %p183 = scmp.lt.s32.totalorder %s19, 3
      %p184 = pnand %p182, %p183
      %p185 = pneg %p184
      // Predicated region
      $region9: #{tpu_custom_call.1} parent=5 // pred_check
        _
      $region10: #{tpu_custom_call.1} parent=5 // pred_check_branch
        %187 = sbr.rel (%p184) target = $region12
      $region11: #{tpu_custom_call.1} parent=5 // pred_region
        %s188 = ssub.s32 %s19, 1
        // Predicated region
        $region13: #{tpu_custom_call.1} parent=11 // pred_check
          %p189 = pneg %p80
        $region14: #{tpu_custom_call.1} parent=11 // pred_check_branch
          %191 = sbr.rel (%p189) target = $region16
        $region15: #{tpu_custom_call.1} parent=11 // pred_region
          %193 = vsyncadd [#allocation7], 0
          %s194 = sshll.u32 %s1, 4
          %s195 = int_to_ptr.hbm [resolvable:$true] %s194
          %s196 = sshll.u32 [#allocation6], 4
          %s197 = int_to_ptr.vmem [resolvable:$true] %s196
          %202 = dma.hbm_to_vmem [thread:$0]  %s195, 8192, %s197, [#allocation7], 64, 64, 4
        $region16: #{tpu_custom_call.1} parent=11 // pred_fallthru
          _
        // Predicated region
        $region17: #{tpu_custom_call.1} parent=11 // pred_check
          %p203 = pneg %p101
        $region18: #{tpu_custom_call.1} parent=11 // pred_check_branch
          %205 = sbr.rel (%p203) target = $region20
        $region19: #{tpu_custom_call.1} parent=11 // pred_region
          %207 = vsyncadd [#allocation7], 0
          %s208 = sshll.u32 %s2, 4
          %s209 = int_to_ptr.hbm [resolvable:$true] %s208
          %s210 = sshll.u32 [#allocation8], 4
          %s211 = int_to_ptr.vmem [resolvable:$true] %s210
          %216 = dma.hbm_to_vmem [thread:$0]  %s209, 1024, %s211, [#allocation7], 64, 64, 4
        $region20: #{tpu_custom_call.1} parent=11 // pred_fallthru
          _
        // Predicated region
        $region21: #{tpu_custom_call.1} parent=11 // pred_check
          %p217 = pneg %p122
        $region22: #{tpu_custom_call.1} parent=11 // pred_check_branch
          %219 = sbr.rel (%p217) target = $region24
        $region23: #{tpu_custom_call.1} parent=11 // pred_region
          %221 = vsyncadd [#allocation10], 0
          %s223 = sshll.u32 %s3, 4
          %s224 = int_to_ptr.hbm [resolvable:$true] %s223
          %s225 = sshll.u32 [#allocation9], 4
          %s226 = int_to_ptr.vmem [resolvable:$true] %s225
          %228 = dma.hbm_to_vmem [thread:$0]  %s224, 16, %s226, [#allocation10]
        $region24: #{tpu_custom_call.1} parent=11 // pred_fallthru
          _
      $region12: #{tpu_custom_call.1} parent=5 // pred_fallthru
        _
      %p229 = scmp.lt.s32.totalorder %s19, 2
      // Predicated region
      $region25: #{tpu_custom_call.1} parent=5 // pred_check
        %p230 = pneg %p229
      $region26: #{tpu_custom_call.1} parent=5 // pred_check_branch
        %232 = sbr.rel (%p230) target = $region28
      $region27: #{tpu_custom_call.1} parent=5 // pred_region
        // Predicated region
        $region29: #{tpu_custom_call.1} parent=27 // pred_check
          %p233 = pneg %p53
        $region30: #{tpu_custom_call.1} parent=27 // pred_check_branch
          %235 = sbr.rel (%p233) target = $region32
        $region31: #{tpu_custom_call.1} parent=27 // pred_region
          %s236 = sand.u32 %s43, 1
          %s237 = scalar_lea.sflag [#allocation4], %s236
          %s238 = sand.u32 %s43, 1
          %s239 = smul.addr %s238, 2048
          %s240 = scalar_lea.vmem [#allocation3], %s239
          %s241 = smul.u32 64, %s26
          %s242 = smul.u32 8, %s27
          %244 = vsyncadd %s237, 0
          %s245 = smul.addr %s241, 8
          %s246 = sadd.s32 %s242, %s245
          %s247 = smul.addr %s246, 4
          %s248 = scalar_lea.hbm %s0, %s247
          %s249 = sshll.u32 %s248, 4
          %s250 = int_to_ptr.hbm [resolvable:$true] %s249
          %s251 = sshll.u32 %s240, 4
          %s252 = int_to_ptr.vmem [resolvable:$true] %s251
          %257 = dma.hbm_to_vmem [thread:$0]  %s250, 32768, %s252, %s237, 512, 512, 32
        $region32: #{tpu_custom_call.1} parent=27 // pred_fallthru
          _
        // Predicated region
        $region33: #{tpu_custom_call.1} parent=27 // pred_check
          %p258 = pneg %p142
        $region34: #{tpu_custom_call.1} parent=27 // pred_check_branch
          %260 = sbr.rel (%p258) target = $region36
        $region35: #{tpu_custom_call.1} parent=27 // pred_region
          %s261 = smul.u32 64, %s26
          %p262 = scmp.lt.s32.totalorder %s261, 127
          %s263 = scalar_select %p262, %s261, 127
          %s264 = smul.addr %s263, 8
          %s265 = scalar_lea.vmem %s4, %s264
          %s266 = smul.u32 64, %s26
        $region36: #{tpu_custom_call.1} parent=27 // pred_fallthru
          _
      $region28: #{tpu_custom_call.1} parent=5 // pred_fallthru
        _
      %p267 = scmp.le.s32.totalorder 1, %s19
      %p268 = scmp.lt.s32.totalorder %s19, 3
      %p269 = pnand %p267, %p268
      %p270 = pneg %p269
      // Predicated region
      $region37: #{tpu_custom_call.1} parent=5 // pred_check
        _
      $region38: #{tpu_custom_call.1} parent=5 // pred_check_branch
        %272 = sbr.rel (%p269) target = $region40
      $region39: #{tpu_custom_call.1} parent=5 // pred_region
        %s273 = ssub.s32 %s19, 1
        %s274 = sand.u32 %s46, 1
        %s275 = scalar_lea.sflag [#allocation4], %s274
        %s276 = sand.u32 %s46, 1
        %s277 = smul.addr %s276, 2048
        %s278 = scalar_lea.vmem [#allocation3], %s277
        // Predicated region
        $region41: #{tpu_custom_call.1} parent=39 // pred_check
          %p279 = pneg %p59
        $region42: #{tpu_custom_call.1} parent=39 // pred_check_branch
          %281 = sbr.rel (%p279) target = $region44
        $region43: #{tpu_custom_call.1} parent=39 // pred_region
          %283 = dma.done %s275, 32768
        $region44: #{tpu_custom_call.1} parent=39 // pred_fallthru
          _
        // Predicated region
        $region45: #{tpu_custom_call.1} parent=39 // pred_check
          %p284 = pneg %p80
        $region46: #{tpu_custom_call.1} parent=39 // pred_check_branch
          %286 = sbr.rel (%p284) target = $region48
        $region47: #{tpu_custom_call.1} parent=39 // pred_region
          %288 = dma.done [#allocation7], 8192
        $region48: #{tpu_custom_call.1} parent=39 // pred_fallthru
          _
        // Predicated region
        $region49: #{tpu_custom_call.1} parent=39 // pred_check
          %p289 = pneg %p101
        $region50: #{tpu_custom_call.1} parent=39 // pred_check_branch
          %291 = sbr.rel (%p289) target = $region52
        $region51: #{tpu_custom_call.1} parent=39 // pred_region
          %293 = dma.done [#allocation7], 1024
        $region52: #{tpu_custom_call.1} parent=39 // pred_fallthru
          _
        // Predicated region
        $region53: #{tpu_custom_call.1} parent=39 // pred_check
          %p294 = pneg %p122
        $region54: #{tpu_custom_call.1} parent=39 // pred_check_branch
          %296 = sbr.rel (%p294) target = $region56
        $region55: #{tpu_custom_call.1} parent=39 // pred_region
          %298 = dma.done [#allocation10], 16
        $region56: #{tpu_custom_call.1} parent=39 // pred_fallthru
          _
        %s299 = sand.u32 %s46, 1
        %s300 = scalar_lea.sflag [#allocation4], %s299
        %s301 = sand.u32 %s46, 1
        %s302 = smul.addr %s301, 2048
        %s303 = scalar_lea.vmem [#allocation3], %s302
        %p304 = pneg %p59
        %p305 = pneg %p56
        %p306 = pneg %p80
        %p307 = pneg %p77
        %p308 = pneg %p101
        %p309 = pneg %p98
        %p310 = pneg %p122
        %p311 = pneg %p119
        %s312 = smul.u32 64, %s28
        %p313 = scmp.lt.s32.totalorder %s312, 127
        %s314 = scalar_select %p313, %s312, 127
        %s315 = smul.addr %s314, 8
        %s316 = scalar_lea.vmem %s4, %s315
        %p317 = pneg %p148
        %p318 = pneg %p145
        %p319 = pneg %p174
        %p320 = pneg %p171
        %s321 = sand.u32 %s161, 1
        %s322 = scalar_lea.sflag [#allocation5], %s321
        %s323 = sand.u32 %s161, 1
        %s324 = smul.addr %s323, 256
        %s325 = scalar_lea.vmem [#allocation11], %s324
        %s326 = smul.u32 64, %s28
        %s327 = smul.u32 8, %s29
        %s328 = smul.u32 64, %s28
        %p329 = scmp.lt.s32.totalorder %s328, 127
        %s330 = scalar_select %p329, %s328, 127
        %s331 = smul.addr %s330, 8
        %s332 = scalar_lea.vmem %s4, %s331
        %s333 = smul.u32 64, %s28
        %s334 = smul.u32 64, %s28
        %p335 = scmp.eq.s32.totalorder %s29, 0
        // Predicated region
        $region57: #{tpu_custom_call.1} parent=39 // pred_check
          %p336 = pneg %p335
        $region58: #{tpu_custom_call.1} parent=39 // pred_check_branch
          %338 = sbr.rel (%p336) target = $region60
        $region59: #{tpu_custom_call.1} parent=39 // pred_region
          %339 = vst [vmem:[#allocation2] sm:$0xff] 0.0
          %340 = vst [vmem:[#allocation2 + $0x8] sm:$0xff] 0.0
          %341 = vst [vmem:[#allocation2 + $0x10] sm:$0xff] 0.0
          %342 = vst [vmem:[#allocation2 + $0x18] sm:$0xff] 0.0
          %343 = vst [vmem:[#allocation2 + $0x20] sm:$0xff] 0.0
          %344 = vst [vmem:[#allocation2 + $0x28] sm:$0xff] 0.0
          %345 = vst [vmem:[#allocation2 + $0x30] sm:$0xff] 0.0
          %346 = vst [vmem:[#allocation2 + $0x38] sm:$0xff] 0.0
          %347 = vst [vmem:[#allocation2 + $0x40] sm:$0xff] 0.0
          %348 = vst [vmem:[#allocation2 + $0x48] sm:$0xff] 0.0
          %349 = vst [vmem:[#allocation2 + $0x50] sm:$0xff] 0.0
          %350 = vst [vmem:[#allocation2 + $0x58] sm:$0xff] 0.0
          %351 = vst [vmem:[#allocation2 + $0x60] sm:$0xff] 0.0
          %352 = vst [vmem:[#allocation2 + $0x68] sm:$0xff] 0.0
          %353 = vst [vmem:[#allocation2 + $0x70] sm:$0xff] 0.0
          %354 = vst [vmem:[#allocation2 + $0x78] sm:$0xff] 0.0
          %355 = vst [vmem:[#allocation2 + $0x80] sm:$0xff] 0.0
          %356 = vst [vmem:[#allocation2 + $0x88] sm:$0xff] 0.0
          %357 = vst [vmem:[#allocation2 + $0x90] sm:$0xff] 0.0
          %358 = vst [vmem:[#allocation2 + $0x98] sm:$0xff] 0.0
          %359 = vst [vmem:[#allocation2 + $0xa0] sm:$0xff] 0.0
          %360 = vst [vmem:[#allocation2 + $0xa8] sm:$0xff] 0.0
          %361 = vst [vmem:[#allocation2 + $0xb0] sm:$0xff] 0.0
          %362 = vst [vmem:[#allocation2 + $0xb8] sm:$0xff] 0.0
          %363 = vst [vmem:[#allocation2 + $0xc0] sm:$0xff] 0.0
          %364 = vst [vmem:[#allocation2 + $0xc8] sm:$0xff] 0.0
          %365 = vst [vmem:[#allocation2 + $0xd0] sm:$0xff] 0.0
          %366 = vst [vmem:[#allocation2 + $0xd8] sm:$0xff] 0.0
          %367 = vst [vmem:[#allocation2 + $0xe0] sm:$0xff] 0.0
          %368 = vst [vmem:[#allocation2 + $0xe8] sm:$0xff] 0.0
          %369 = vst [vmem:[#allocation2 + $0xf0] sm:$0xff] 0.0
          %370 = vst [vmem:[#allocation2 + $0xf8] sm:$0xff] 0.0
          %371 = vst [vmem:[#allocation2 + $0x100] sm:$0xff] 0.0
          %372 = vst [vmem:[#allocation2 + $0x108] sm:$0xff] 0.0
          %373 = vst [vmem:[#allocation2 + $0x110] sm:$0xff] 0.0
          %374 = vst [vmem:[#allocation2 + $0x118] sm:$0xff] 0.0
          %375 = vst [vmem:[#allocation2 + $0x120] sm:$0xff] 0.0
          %376 = vst [vmem:[#allocation2 + $0x128] sm:$0xff] 0.0
          %377 = vst [vmem:[#allocation2 + $0x130] sm:$0xff] 0.0
          %378 = vst [vmem:[#allocation2 + $0x138] sm:$0xff] 0.0
          %379 = vst [vmem:[#allocation2 + $0x140] sm:$0xff] 0.0
          %380 = vst [vmem:[#allocation2 + $0x148] sm:$0xff] 0.0
          %381 = vst [vmem:[#allocation2 + $0x150] sm:$0xff] 0.0
          %382 = vst [vmem:[#allocation2 + $0x158] sm:$0xff] 0.0
          %383 = vst [vmem:[#allocation2 + $0x160] sm:$0xff] 0.0
          %384 = vst [vmem:[#allocation2 + $0x168] sm:$0xff] 0.0
          %385 = vst [vmem:[#allocation2 + $0x170] sm:$0xff] 0.0
          %386 = vst [vmem:[#allocation2 + $0x178] sm:$0xff] 0.0
          %387 = vst [vmem:[#allocation2 + $0x180] sm:$0xff] 0.0
          %388 = vst [vmem:[#allocation2 + $0x188] sm:$0xff] 0.0
          %389 = vst [vmem:[#allocation2 + $0x190] sm:$0xff] 0.0
          %390 = vst [vmem:[#allocation2 + $0x198] sm:$0xff] 0.0
          %391 = vst [vmem:[#allocation2 + $0x1a0] sm:$0xff] 0.0
          %392 = vst [vmem:[#allocation2 + $0x1a8] sm:$0xff] 0.0
          %393 = vst [vmem:[#allocation2 + $0x1b0] sm:$0xff] 0.0
          %394 = vst [vmem:[#allocation2 + $0x1b8] sm:$0xff] 0.0
          %395 = vst [vmem:[#allocation2 + $0x1c0] sm:$0xff] 0.0
          %396 = vst [vmem:[#allocation2 + $0x1c8] sm:$0xff] 0.0
          %397 = vst [vmem:[#allocation2 + $0x1d0] sm:$0xff] 0.0
          %398 = vst [vmem:[#allocation2 + $0x1d8] sm:$0xff] 0.0
          %399 = vst [vmem:[#allocation2 + $0x1e0] sm:$0xff] 0.0
          %400 = vst [vmem:[#allocation2 + $0x1e8] sm:$0xff] 0.0
          %401 = vst [vmem:[#allocation2 + $0x1f0] sm:$0xff] 0.0
          %402 = vst [vmem:[#allocation2 + $0x1f8] sm:$0xff] 0.0
        $region60: #{tpu_custom_call.1} parent=39 // pred_fallthru
          _
        %s403 = smul.u32 %s29, 1024
        %s404 = sshra.s32 %s403, 3
        %s405 = sand.u32 %s403, 7
        %s406 = smul.addr %s404, 4
        %s407 = scalar_lea.vmem [#allocation6], %s406
        %v408 = vld [vmem:[%s407] sm:$0xf]
        %v409 = vld [vmem:[%s407 + $0x4] sm:$0xf]
        %v410 = vld [vmem:[%s407 + $0x8] sm:$0xf]
        %v411 = vld [vmem:[%s407 + $0xc] sm:$0xf]
        %v412 = vld [vmem:[%s407 + $0x10] sm:$0xf]
        %v413 = vld [vmem:[%s407 + $0x14] sm:$0xf]
        %v414 = vld [vmem:[%s407 + $0x18] sm:$0xf]
        %v415 = vld [vmem:[%s407 + $0x1c] sm:$0xf]
        %v416 = vld [vmem:[%s407 + $0x20] sm:$0xf]
        %v417 = vld [vmem:[%s407 + $0x24] sm:$0xf]
        %v418 = vld [vmem:[%s407 + $0x28] sm:$0xf]
        %v419 = vld [vmem:[%s407 + $0x2c] sm:$0xf]
        %v420 = vld [vmem:[%s407 + $0x30] sm:$0xf]
        %v421 = vld [vmem:[%s407 + $0x34] sm:$0xf]
        %v422 = vld [vmem:[%s407 + $0x38] sm:$0xf]
        %v423 = vld [vmem:[%s407 + $0x3c] sm:$0xf]
        %v424 = vld [vmem:[%s407 + $0x40] sm:$0xf]
        %v425 = vld [vmem:[%s407 + $0x44] sm:$0xf]
        %v426 = vld [vmem:[%s407 + $0x48] sm:$0xf]
        %v427 = vld [vmem:[%s407 + $0x4c] sm:$0xf]
        %v428 = vld [vmem:[%s407 + $0x50] sm:$0xf]
        %v429 = vld [vmem:[%s407 + $0x54] sm:$0xf]
        %v430 = vld [vmem:[%s407 + $0x58] sm:$0xf]
        %v431 = vld [vmem:[%s407 + $0x5c] sm:$0xf]
        %v432 = vld [vmem:[%s407 + $0x60] sm:$0xf]
        %v433 = vld [vmem:[%s407 + $0x64] sm:$0xf]
        %v434 = vld [vmem:[%s407 + $0x68] sm:$0xf]
        %v435 = vld [vmem:[%s407 + $0x6c] sm:$0xf]
        %v436 = vld [vmem:[%s407 + $0x70] sm:$0xf]
        %v437 = vld [vmem:[%s407 + $0x74] sm:$0xf]
        %v438 = vld [vmem:[%s407 + $0x78] sm:$0xf]
        %v439 = vld [vmem:[%s407 + $0x7c] sm:$0xf]
        %v440 = vld [vmem:[%s407 + $0x80] sm:$0xf]
        %v441 = vld [vmem:[%s407 + $0x84] sm:$0xf]
        %v442 = vld [vmem:[%s407 + $0x88] sm:$0xf]
        %v443 = vld [vmem:[%s407 + $0x8c] sm:$0xf]
        %v444 = vld [vmem:[%s407 + $0x90] sm:$0xf]
        %v445 = vld [vmem:[%s407 + $0x94] sm:$0xf]
        %v446 = vld [vmem:[%s407 + $0x98] sm:$0xf]
        %v447 = vld [vmem:[%s407 + $0x9c] sm:$0xf]
        %v448 = vld [vmem:[%s407 + $0xa0] sm:$0xf]
        %v449 = vld [vmem:[%s407 + $0xa4] sm:$0xf]
        %v450 = vld [vmem:[%s407 + $0xa8] sm:$0xf]
        %v451 = vld [vmem:[%s407 + $0xac] sm:$0xf]
        %v452 = vld [vmem:[%s407 + $0xb0] sm:$0xf]
        %v453 = vld [vmem:[%s407 + $0xb4] sm:$0xf]
        %v454 = vld [vmem:[%s407 + $0xb8] sm:$0xf]
        %v455 = vld [vmem:[%s407 + $0xbc] sm:$0xf]
        %v456 = vld [vmem:[%s407 + $0xc0] sm:$0xf]
        %v457 = vld [vmem:[%s407 + $0xc4] sm:$0xf]
        %v458 = vld [vmem:[%s407 + $0xc8] sm:$0xf]
        %v459 = vld [vmem:[%s407 + $0xcc] sm:$0xf]
        %v460 = vld [vmem:[%s407 + $0xd0] sm:$0xf]
        %v461 = vld [vmem:[%s407 + $0xd4] sm:$0xf]
        %v462 = vld [vmem:[%s407 + $0xd8] sm:$0xf]
        %v463 = vld [vmem:[%s407 + $0xdc] sm:$0xf]
        %v464 = vld [vmem:[%s407 + $0xe0] sm:$0xf]
        %v465 = vld [vmem:[%s407 + $0xe4] sm:$0xf]
        %v466 = vld [vmem:[%s407 + $0xe8] sm:$0xf]
        %v467 = vld [vmem:[%s407 + $0xec] sm:$0xf]
        %v468 = vld [vmem:[%s407 + $0xf0] sm:$0xf]
        %v469 = vld [vmem:[%s407 + $0xf4] sm:$0xf]
        %v470 = vld [vmem:[%s407 + $0xf8] sm:$0xf]
        %v471 = vld [vmem:[%s407 + $0xfc] sm:$0xf]
        %v472 = vld [vmem:[%s407 + $0x100] sm:$0xf]
        %v473 = vld [vmem:[%s407 + $0x104] sm:$0xf]
        %v474 = vld [vmem:[%s407 + $0x108] sm:$0xf]
        %v475 = vld [vmem:[%s407 + $0x10c] sm:$0xf]
        %v476 = vld [vmem:[%s407 + $0x110] sm:$0xf]
        %v477 = vld [vmem:[%s407 + $0x114] sm:$0xf]
        %v478 = vld [vmem:[%s407 + $0x118] sm:$0xf]
        %v479 = vld [vmem:[%s407 + $0x11c] sm:$0xf]
        %v480 = vld [vmem:[%s407 + $0x120] sm:$0xf]
        %v481 = vld [vmem:[%s407 + $0x124] sm:$0xf]
        %v482 = vld [vmem:[%s407 + $0x128] sm:$0xf]
        %v483 = vld [vmem:[%s407 + $0x12c] sm:$0xf]
        %v484 = vld [vmem:[%s407 + $0x130] sm:$0xf]
        %v485 = vld [vmem:[%s407 + $0x134] sm:$0xf]
        %v486 = vld [vmem:[%s407 + $0x138] sm:$0xf]
        %v487 = vld [vmem:[%s407 + $0x13c] sm:$0xf]
        %v488 = vld [vmem:[%s407 + $0x140] sm:$0xf]
        %v489 = vld [vmem:[%s407 + $0x144] sm:$0xf]
        %v490 = vld [vmem:[%s407 + $0x148] sm:$0xf]
        %v491 = vld [vmem:[%s407 + $0x14c] sm:$0xf]
        %v492 = vld [vmem:[%s407 + $0x150] sm:$0xf]
        %v493 = vld [vmem:[%s407 + $0x154] sm:$0xf]
        %v494 = vld [vmem:[%s407 + $0x158] sm:$0xf]
        %v495 = vld [vmem:[%s407 + $0x15c] sm:$0xf]
        %v496 = vld [vmem:[%s407 + $0x160] sm:$0xf]
        %v497 = vld [vmem:[%s407 + $0x164] sm:$0xf]
        %v498 = vld [vmem:[%s407 + $0x168] sm:$0xf]
        %v499 = vld [vmem:[%s407 + $0x16c] sm:$0xf]
        %v500 = vld [vmem:[%s407 + $0x170] sm:$0xf]
        %v501 = vld [vmem:[%s407 + $0x174] sm:$0xf]
        %v502 = vld [vmem:[%s407 + $0x178] sm:$0xf]
        %v503 = vld [vmem:[%s407 + $0x17c] sm:$0xf]
        %v504 = vld [vmem:[%s407 + $0x180] sm:$0xf]
        %v505 = vld [vmem:[%s407 + $0x184] sm:$0xf]
        %v506 = vld [vmem:[%s407 + $0x188] sm:$0xf]
        %v507 = vld [vmem:[%s407 + $0x18c] sm:$0xf]
        %v508 = vld [vmem:[%s407 + $0x190] sm:$0xf]
        %v509 = vld [vmem:[%s407 + $0x194] sm:$0xf]
        %v510 = vld [vmem:[%s407 + $0x198] sm:$0xf]
        %v511 = vld [vmem:[%s407 + $0x19c] sm:$0xf]
        %v512 = vld [vmem:[%s407 + $0x1a0] sm:$0xf]
        %v513 = vld [vmem:[%s407 + $0x1a4] sm:$0xf]
        %v514 = vld [vmem:[%s407 + $0x1a8] sm:$0xf]
        %v515 = vld [vmem:[%s407 + $0x1ac] sm:$0xf]
        %v516 = vld [vmem:[%s407 + $0x1b0] sm:$0xf]
        %v517 = vld [vmem:[%s407 + $0x1b4] sm:$0xf]
        %v518 = vld [vmem:[%s407 + $0x1b8] sm:$0xf]
        %v519 = vld [vmem:[%s407 + $0x1bc] sm:$0xf]
        %v520 = vld [vmem:[%s407 + $0x1c0] sm:$0xf]
        %v521 = vld [vmem:[%s407 + $0x1c4] sm:$0xf]
        %v522 = vld [vmem:[%s407 + $0x1c8] sm:$0xf]
        %v523 = vld [vmem:[%s407 + $0x1cc] sm:$0xf]
        %v524 = vld [vmem:[%s407 + $0x1d0] sm:$0xf]
        %v525 = vld [vmem:[%s407 + $0x1d4] sm:$0xf]
        %v526 = vld [vmem:[%s407 + $0x1d8] sm:$0xf]
        %v527 = vld [vmem:[%s407 + $0x1dc] sm:$0xf]
        %v528 = vld [vmem:[%s407 + $0x1e0] sm:$0xf]
        %v529 = vld [vmem:[%s407 + $0x1e4] sm:$0xf]
        %v530 = vld [vmem:[%s407 + $0x1e8] sm:$0xf]
        %v531 = vld [vmem:[%s407 + $0x1ec] sm:$0xf]
        %v532 = vld [vmem:[%s407 + $0x1f0] sm:$0xf]
        %v533 = vld [vmem:[%s407 + $0x1f4] sm:$0xf]
        %v534 = vld [vmem:[%s407 + $0x1f8] sm:$0xf]
        %v535 = vld [vmem:[%s407 + $0x1fc] sm:$0xf]
        %v536 = vld [vmem:[#allocation2] sm:$0xff]
        %v537 = vld [vmem:[#allocation2 + $0x8] sm:$0xff]
        %v538 = vld [vmem:[#allocation2 + $0x10] sm:$0xff]
        %v539 = vld [vmem:[#allocation2 + $0x18] sm:$0xff]
        %v540 = vld [vmem:[#allocation2 + $0x20] sm:$0xff]
        %v541 = vld [vmem:[#allocation2 + $0x28] sm:$0xff]
        %v542 = vld [vmem:[#allocation2 + $0x30] sm:$0xff]
        %v543 = vld [vmem:[#allocation2 + $0x38] sm:$0xff]
        %v544 = vld [vmem:[#allocation2 + $0x40] sm:$0xff]
        %v545 = vld [vmem:[#allocation2 + $0x48] sm:$0xff]
        %v546 = vld [vmem:[#allocation2 + $0x50] sm:$0xff]
        %v547 = vld [vmem:[#allocation2 + $0x58] sm:$0xff]
        %v548 = vld [vmem:[#allocation2 + $0x60] sm:$0xff]
        %v549 = vld [vmem:[#allocation2 + $0x68] sm:$0xff]
        %v550 = vld [vmem:[#allocation2 + $0x70] sm:$0xff]
        %v551 = vld [vmem:[#allocation2 + $0x78] sm:$0xff]
        %v552 = vld [vmem:[#allocation2 + $0x80] sm:$0xff]
        %v553 = vld [vmem:[#allocation2 + $0x88] sm:$0xff]
        %v554 = vld [vmem:[#allocation2 + $0x90] sm:$0xff]
        %v555 = vld [vmem:[#allocation2 + $0x98] sm:$0xff]
        %v556 = vld [vmem:[#allocation2 + $0xa0] sm:$0xff]
        %v557 = vld [vmem:[#allocation2 + $0xa8] sm:$0xff]
        %v558 = vld [vmem:[#allocation2 + $0xb0] sm:$0xff]
        %v559 = vld [vmem:[#allocation2 + $0xb8] sm:$0xff]
        %v560 = vld [vmem:[#allocation2 + $0xc0] sm:$0xff]
        %v561 = vld [vmem:[#allocation2 + $0xc8] sm:$0xff]
        %v562 = vld [vmem:[#allocation2 + $0xd0] sm:$0xff]
        %v563 = vld [vmem:[#allocation2 + $0xd8] sm:$0xff]
        %v564 = vld [vmem:[#allocation2 + $0xe0] sm:$0xff]
        %v565 = vld [vmem:[#allocation2 + $0xe8] sm:$0xff]
        %v566 = vld [vmem:[#allocation2 + $0xf0] sm:$0xff]
        %v567 = vld [vmem:[#allocation2 + $0xf8] sm:$0xff]
        %v568 = vld [vmem:[#allocation2 + $0x100] sm:$0xff]
        %v569 = vld [vmem:[#allocation2 + $0x108] sm:$0xff]
        %v570 = vld [vmem:[#allocation2 + $0x110] sm:$0xff]
        %v571 = vld [vmem:[#allocation2 + $0x118] sm:$0xff]
        %v572 = vld [vmem:[#allocation2 + $0x120] sm:$0xff]
        %v573 = vld [vmem:[#allocation2 + $0x128] sm:$0xff]
        %v574 = vld [vmem:[#allocation2 + $0x130] sm:$0xff]
        %v575 = vld [vmem:[#allocation2 + $0x138] sm:$0xff]
        %v576 = vld [vmem:[#allocation2 + $0x140] sm:$0xff]
        %v577 = vld [vmem:[#allocation2 + $0x148] sm:$0xff]
        %v578 = vld [vmem:[#allocation2 + $0x150] sm:$0xff]
        %v579 = vld [vmem:[#allocation2 + $0x158] sm:$0xff]
        %v580 = vld [vmem:[#allocation2 + $0x160] sm:$0xff]
        %v581 = vld [vmem:[#allocation2 + $0x168] sm:$0xff]
        %v582 = vld [vmem:[#allocation2 + $0x170] sm:$0xff]
        %v583 = vld [vmem:[#allocation2 + $0x178] sm:$0xff]
        %v584 = vld [vmem:[#allocation2 + $0x180] sm:$0xff]
        %v585 = vld [vmem:[#allocation2 + $0x188] sm:$0xff]
        %v586 = vld [vmem:[#allocation2 + $0x190] sm:$0xff]
        %v587 = vld [vmem:[#allocation2 + $0x198] sm:$0xff]
        %v588 = vld [vmem:[#allocation2 + $0x1a0] sm:$0xff]
        %v589 = vld [vmem:[#allocation2 + $0x1a8] sm:$0xff]
        %v590 = vld [vmem:[#allocation2 + $0x1b0] sm:$0xff]
        %v591 = vld [vmem:[#allocation2 + $0x1b8] sm:$0xff]
        %v592 = vld [vmem:[#allocation2 + $0x1c0] sm:$0xff]
        %v593 = vld [vmem:[#allocation2 + $0x1c8] sm:$0xff]
        %v594 = vld [vmem:[#allocation2 + $0x1d0] sm:$0xff]
        %v595 = vld [vmem:[#allocation2 + $0x1d8] sm:$0xff]
        %v596 = vld [vmem:[#allocation2 + $0x1e0] sm:$0xff]
        %v597 = vld [vmem:[#allocation2 + $0x1e8] sm:$0xff]
        %v598 = vld [vmem:[#allocation2 + $0x1f0] sm:$0xff]
        %v599 = vld [vmem:[#allocation2 + $0x1f8] sm:$0xff]
        %v600 = vld [vmem:[%s278] sm:$0xff]
        %v601 = vld [vmem:[%s278 + $0x8] sm:$0xff]
        %v602 = vld [vmem:[%s278 + $0x10] sm:$0xff]
        %v603 = vld [vmem:[%s278 + $0x18] sm:$0xff]
        %v604 = vld [vmem:[%s278 + $0x20] sm:$0xff]
        %v605 = vld [vmem:[%s278 + $0x28] sm:$0xff]
        %v606 = vld [vmem:[%s278 + $0x30] sm:$0xff]
        %v607 = vld [vmem:[%s278 + $0x38] sm:$0xff]
        %v608 = vld [vmem:[%s278 + $0x40] sm:$0xff]
        %v609 = vld [vmem:[%s278 + $0x48] sm:$0xff]
        %v610 = vld [vmem:[%s278 + $0x50] sm:$0xff]
        %v611 = vld [vmem:[%s278 + $0x58] sm:$0xff]
        %v612 = vld [vmem:[%s278 + $0x60] sm:$0xff]
        %v613 = vld [vmem:[%s278 + $0x68] sm:$0xff]
        %v614 = vld [vmem:[%s278 + $0x70] sm:$0xff]
        %v615 = vld [vmem:[%s278 + $0x78] sm:$0xff]
        %v616 = vld [vmem:[%s278 + $0x80] sm:$0xff]
        %v617 = vld [vmem:[%s278 + $0x88] sm:$0xff]
        %v618 = vld [vmem:[%s278 + $0x90] sm:$0xff]
        %v619 = vld [vmem:[%s278 + $0x98] sm:$0xff]
        %v620 = vld [vmem:[%s278 + $0xa0] sm:$0xff]
        %v621 = vld [vmem:[%s278 + $0xa8] sm:$0xff]
        %v622 = vld [vmem:[%s278 + $0xb0] sm:$0xff]
        %v623 = vld [vmem:[%s278 + $0xb8] sm:$0xff]
        %v624 = vld [vmem:[%s278 + $0xc0] sm:$0xff]
        %v625 = vld [vmem:[%s278 + $0xc8] sm:$0xff]
        %v626 = vld [vmem:[%s278 + $0xd0] sm:$0xff]
        %v627 = vld [vmem:[%s278 + $0xd8] sm:$0xff]
        %v628 = vld [vmem:[%s278 + $0xe0] sm:$0xff]
        %v629 = vld [vmem:[%s278 + $0xe8] sm:$0xff]
        %v630 = vld [vmem:[%s278 + $0xf0] sm:$0xff]
        %v631 = vld [vmem:[%s278 + $0xf8] sm:$0xff]
        %v632 = vld [vmem:[%s278 + $0x100] sm:$0xff]
        %v633 = vld [vmem:[%s278 + $0x108] sm:$0xff]
        %v634 = vld [vmem:[%s278 + $0x110] sm:$0xff]
        %v635 = vld [vmem:[%s278 + $0x118] sm:$0xff]
        %v636 = vld [vmem:[%s278 + $0x120] sm:$0xff]
        %v637 = vld [vmem:[%s278 + $0x128] sm:$0xff]
        %v638 = vld [vmem:[%s278 + $0x130] sm:$0xff]
        %v639 = vld [vmem:[%s278 + $0x138] sm:$0xff]
        %v640 = vld [vmem:[%s278 + $0x140] sm:$0xff]
        %v641 = vld [vmem:[%s278 + $0x148] sm:$0xff]
        %v642 = vld [vmem:[%s278 + $0x150] sm:$0xff]
        %v643 = vld [vmem:[%s278 + $0x158] sm:$0xff]
        %v644 = vld [vmem:[%s278 + $0x160] sm:$0xff]
        %v645 = vld [vmem:[%s278 + $0x168] sm:$0xff]
        %v646 = vld [vmem:[%s278 + $0x170] sm:$0xff]
        %v647 = vld [vmem:[%s278 + $0x178] sm:$0xff]
        %v648 = vld [vmem:[%s278 + $0x180] sm:$0xff]
        %v649 = vld [vmem:[%s278 + $0x188] sm:$0xff]
        %v650 = vld [vmem:[%s278 + $0x190] sm:$0xff]
        %v651 = vld [vmem:[%s278 + $0x198] sm:$0xff]
        %v652 = vld [vmem:[%s278 + $0x1a0] sm:$0xff]
        %v653 = vld [vmem:[%s278 + $0x1a8] sm:$0xff]
        %v654 = vld [vmem:[%s278 + $0x1b0] sm:$0xff]
        %v655 = vld [vmem:[%s278 + $0x1b8] sm:$0xff]
        %v656 = vld [vmem:[%s278 + $0x1c0] sm:$0xff]
        %v657 = vld [vmem:[%s278 + $0x1c8] sm:$0xff]
        %v658 = vld [vmem:[%s278 + $0x1d0] sm:$0xff]
        %v659 = vld [vmem:[%s278 + $0x1d8] sm:$0xff]
        %v660 = vld [vmem:[%s278 + $0x1e0] sm:$0xff]
        %v661 = vld [vmem:[%s278 + $0x1e8] sm:$0xff]
        %v662 = vld [vmem:[%s278 + $0x1f0] sm:$0xff]
        %v663 = vld [vmem:[%s278 + $0x1f8] sm:$0xff]
        %v664 = vld [vmem:[%s278 + $0x200] sm:$0xff]
        %v665 = vld [vmem:[%s278 + $0x208] sm:$0xff]
        %v666 = vld [vmem:[%s278 + $0x210] sm:$0xff]
        %v667 = vld [vmem:[%s278 + $0x218] sm:$0xff]
        %v668 = vld [vmem:[%s278 + $0x220] sm:$0xff]
        %v669 = vld [vmem:[%s278 + $0x228] sm:$0xff]
        %v670 = vld [vmem:[%s278 + $0x230] sm:$0xff]
        %v671 = vld [vmem:[%s278 + $0x238] sm:$0xff]
        %v672 = vld [vmem:[%s278 + $0x240] sm:$0xff]
        %v673 = vld [vmem:[%s278 + $0x248] sm:$0xff]
        %v674 = vld [vmem:[%s278 + $0x250] sm:$0xff]
        %v675 = vld [vmem:[%s278 + $0x258] sm:$0xff]
        %v676 = vld [vmem:[%s278 + $0x260] sm:$0xff]
        %v677 = vld [vmem:[%s278 + $0x268] sm:$0xff]
        %v678 = vld [vmem:[%s278 + $0x270] sm:$0xff]
        %v679 = vld [vmem:[%s278 + $0x278] sm:$0xff]
        %v680 = vld [vmem:[%s278 + $0x280] sm:$0xff]
        %v681 = vld [vmem:[%s278 + $0x288] sm:$0xff]
        %v682 = vld [vmem:[%s278 + $0x290] sm:$0xff]
        %v683 = vld [vmem:[%s278 + $0x298] sm:$0xff]
        %v684 = vld [vmem:[%s278 + $0x2a0] sm:$0xff]
        %v685 = vld [vmem:[%s278 + $0x2a8] sm:$0xff]
        %v686 = vld [vmem:[%s278 + $0x2b0] sm:$0xff]
        %v687 = vld [vmem:[%s278 + $0x2b8] sm:$0xff]
        %v688 = vld [vmem:[%s278 + $0x2c0] sm:$0xff]
        %v689 = vld [vmem:[%s278 + $0x2c8] sm:$0xff]
        %v690 = vld [vmem:[%s278 + $0x2d0] sm:$0xff]
        %v691 = vld [vmem:[%s278 + $0x2d8] sm:$0xff]
        %v692 = vld [vmem:[%s278 + $0x2e0] sm:$0xff]
        %v693 = vld [vmem:[%s278 + $0x2e8] sm:$0xff]
        %v694 = vld [vmem:[%s278 + $0x2f0] sm:$0xff]
        %v695 = vld [vmem:[%s278 + $0x2f8] sm:$0xff]
        %v696 = vld [vmem:[%s278 + $0x300] sm:$0xff]
        %v697 = vld [vmem:[%s278 + $0x308] sm:$0xff]
        %v698 = vld [vmem:[%s278 + $0x310] sm:$0xff]
        %v699 = vld [vmem:[%s278 + $0x318] sm:$0xff]
        %v700 = vld [vmem:[%s278 + $0x320] sm:$0xff]
        %v701 = vld [vmem:[%s278 + $0x328] sm:$0xff]
        %v702 = vld [vmem:[%s278 + $0x330] sm:$0xff]
        %v703 = vld [vmem:[%s278 + $0x338] sm:$0xff]
        %v704 = vld [vmem:[%s278 + $0x340] sm:$0xff]
        %v705 = vld [vmem:[%s278 + $0x348] sm:$0xff]
        %v706 = vld [vmem:[%s278 + $0x350] sm:$0xff]
        %v707 = vld [vmem:[%s278 + $0x358] sm:$0xff]
        %v708 = vld [vmem:[%s278 + $0x360] sm:$0xff]
        %v709 = vld [vmem:[%s278 + $0x368] sm:$0xff]
        %v710 = vld [vmem:[%s278 + $0x370] sm:$0xff]
        %v711 = vld [vmem:[%s278 + $0x378] sm:$0xff]
        %v712 = vld [vmem:[%s278 + $0x380] sm:$0xff]
        %v713 = vld [vmem:[%s278 + $0x388] sm:$0xff]
        %v714 = vld [vmem:[%s278 + $0x390] sm:$0xff]
        %v715 = vld [vmem:[%s278 + $0x398] sm:$0xff]
        %v716 = vld [vmem:[%s278 + $0x3a0] sm:$0xff]
        %v717 = vld [vmem:[%s278 + $0x3a8] sm:$0xff]
        %v718 = vld [vmem:[%s278 + $0x3b0] sm:$0xff]
        %v719 = vld [vmem:[%s278 + $0x3b8] sm:$0xff]
        %v720 = vld [vmem:[%s278 + $0x3c0] sm:$0xff]
        %v721 = vld [vmem:[%s278 + $0x3c8] sm:$0xff]
        %v722 = vld [vmem:[%s278 + $0x3d0] sm:$0xff]
        %v723 = vld [vmem:[%s278 + $0x3d8] sm:$0xff]
        %v724 = vld [vmem:[%s278 + $0x3e0] sm:$0xff]
        %v725 = vld [vmem:[%s278 + $0x3e8] sm:$0xff]
        %v726 = vld [vmem:[%s278 + $0x3f0] sm:$0xff]
        %v727 = vld [vmem:[%s278 + $0x3f8] sm:$0xff]
        %v728 = vld [vmem:[%s278 + $0x400] sm:$0xff]
        %v729 = vld [vmem:[%s278 + $0x408] sm:$0xff]
        %v730 = vld [vmem:[%s278 + $0x410] sm:$0xff]
        %v731 = vld [vmem:[%s278 + $0x418] sm:$0xff]
        %v732 = vld [vmem:[%s278 + $0x420] sm:$0xff]
        %v733 = vld [vmem:[%s278 + $0x428] sm:$0xff]
        %v734 = vld [vmem:[%s278 + $0x430] sm:$0xff]
        %v735 = vld [vmem:[%s278 + $0x438] sm:$0xff]
        %v736 = vld [vmem:[%s278 + $0x440] sm:$0xff]
        %v737 = vld [vmem:[%s278 + $0x448] sm:$0xff]
        %v738 = vld [vmem:[%s278 + $0x450] sm:$0xff]
        %v739 = vld [vmem:[%s278 + $0x458] sm:$0xff]
        %v740 = vld [vmem:[%s278 + $0x460] sm:$0xff]
        %v741 = vld [vmem:[%s278 + $0x468] sm:$0xff]
        %v742 = vld [vmem:[%s278 + $0x470] sm:$0xff]
        %v743 = vld [vmem:[%s278 + $0x478] sm:$0xff]
        %v744 = vld [vmem:[%s278 + $0x480] sm:$0xff]
        %v745 = vld [vmem:[%s278 + $0x488] sm:$0xff]
        %v746 = vld [vmem:[%s278 + $0x490] sm:$0xff]
        %v747 = vld [vmem:[%s278 + $0x498] sm:$0xff]
        %v748 = vld [vmem:[%s278 + $0x4a0] sm:$0xff]
        %v749 = vld [vmem:[%s278 + $0x4a8] sm:$0xff]
        %v750 = vld [vmem:[%s278 + $0x4b0] sm:$0xff]
        %v751 = vld [vmem:[%s278 + $0x4b8] sm:$0xff]
        %v752 = vld [vmem:[%s278 + $0x4c0] sm:$0xff]
        %v753 = vld [vmem:[%s278 + $0x4c8] sm:$0xff]
        %v754 = vld [vmem:[%s278 + $0x4d0] sm:$0xff]
        %v755 = vld [vmem:[%s278 + $0x4d8] sm:$0xff]
        %v756 = vld [vmem:[%s278 + $0x4e0] sm:$0xff]
        %v757 = vld [vmem:[%s278 + $0x4e8] sm:$0xff]
        %v758 = vld [vmem:[%s278 + $0x4f0] sm:$0xff]
        %v759 = vld [vmem:[%s278 + $0x4f8] sm:$0xff]
        %v760 = vld [vmem:[%s278 + $0x500] sm:$0xff]
        %v761 = vld [vmem:[%s278 + $0x508] sm:$0xff]
        %v762 = vld [vmem:[%s278 + $0x510] sm:$0xff]
        %v763 = vld [vmem:[%s278 + $0x518] sm:$0xff]
        %v764 = vld [vmem:[%s278 + $0x520] sm:$0xff]
        %v765 = vld [vmem:[%s278 + $0x528] sm:$0xff]
        %v766 = vld [vmem:[%s278 + $0x530] sm:$0xff]
        %v767 = vld [vmem:[%s278 + $0x538] sm:$0xff]
        %v768 = vld [vmem:[%s278 + $0x540] sm:$0xff]
        %v769 = vld [vmem:[%s278 + $0x548] sm:$0xff]
        %v770 = vld [vmem:[%s278 + $0x550] sm:$0xff]
        %v771 = vld [vmem:[%s278 + $0x558] sm:$0xff]
        %v772 = vld [vmem:[%s278 + $0x560] sm:$0xff]
        %v773 = vld [vmem:[%s278 + $0x568] sm:$0xff]
        %v774 = vld [vmem:[%s278 + $0x570] sm:$0xff]
        %v775 = vld [vmem:[%s278 + $0x578] sm:$0xff]
        %v776 = vld [vmem:[%s278 + $0x580] sm:$0xff]
        %v777 = vld [vmem:[%s278 + $0x588] sm:$0xff]
        %v778 = vld [vmem:[%s278 + $0x590] sm:$0xff]
        %v779 = vld [vmem:[%s278 + $0x598] sm:$0xff]
        %v780 = vld [vmem:[%s278 + $0x5a0] sm:$0xff]
        %v781 = vld [vmem:[%s278 + $0x5a8] sm:$0xff]
        %v782 = vld [vmem:[%s278 + $0x5b0] sm:$0xff]
        %v783 = vld [vmem:[%s278 + $0x5b8] sm:$0xff]
        %v784 = vld [vmem:[%s278 + $0x5c0] sm:$0xff]
        %v785 = vld [vmem:[%s278 + $0x5c8] sm:$0xff]
        %v786 = vld [vmem:[%s278 + $0x5d0] sm:$0xff]
        %v787 = vld [vmem:[%s278 + $0x5d8] sm:$0xff]
        %v788 = vld [vmem:[%s278 + $0x5e0] sm:$0xff]
        %v789 = vld [vmem:[%s278 + $0x5e8] sm:$0xff]
        %v790 = vld [vmem:[%s278 + $0x5f0] sm:$0xff]
        %v791 = vld [vmem:[%s278 + $0x5f8] sm:$0xff]
        %v792 = vld [vmem:[%s278 + $0x600] sm:$0xff]
        %v793 = vld [vmem:[%s278 + $0x608] sm:$0xff]
        %v794 = vld [vmem:[%s278 + $0x610] sm:$0xff]
        %v795 = vld [vmem:[%s278 + $0x618] sm:$0xff]
        %v796 = vld [vmem:[%s278 + $0x620] sm:$0xff]
        %v797 = vld [vmem:[%s278 + $0x628] sm:$0xff]
        %v798 = vld [vmem:[%s278 + $0x630] sm:$0xff]
        %v799 = vld [vmem:[%s278 + $0x638] sm:$0xff]
        %v800 = vld [vmem:[%s278 + $0x640] sm:$0xff]
        %v801 = vld [vmem:[%s278 + $0x648] sm:$0xff]
        %v802 = vld [vmem:[%s278 + $0x650] sm:$0xff]
        %v803 = vld [vmem:[%s278 + $0x658] sm:$0xff]
        %v804 = vld [vmem:[%s278 + $0x660] sm:$0xff]
        %v805 = vld [vmem:[%s278 + $0x668] sm:$0xff]
        %v806 = vld [vmem:[%s278 + $0x670] sm:$0xff]
        %v807 = vld [vmem:[%s278 + $0x678] sm:$0xff]
        %v808 = vld [vmem:[%s278 + $0x680] sm:$0xff]
        %v809 = vld [vmem:[%s278 + $0x688] sm:$0xff]
        %v810 = vld [vmem:[%s278 + $0x690] sm:$0xff]
        %v811 = vld [vmem:[%s278 + $0x698] sm:$0xff]
        %v812 = vld [vmem:[%s278 + $0x6a0] sm:$0xff]
        %v813 = vld [vmem:[%s278 + $0x6a8] sm:$0xff]
        %v814 = vld [vmem:[%s278 + $0x6b0] sm:$0xff]
        %v815 = vld [vmem:[%s278 + $0x6b8] sm:$0xff]
        %v816 = vld [vmem:[%s278 + $0x6c0] sm:$0xff]
        %v817 = vld [vmem:[%s278 + $0x6c8] sm:$0xff]
        %v818 = vld [vmem:[%s278 + $0x6d0] sm:$0xff]
        %v819 = vld [vmem:[%s278 + $0x6d8] sm:$0xff]
        %v820 = vld [vmem:[%s278 + $0x6e0] sm:$0xff]
        %v821 = vld [vmem:[%s278 + $0x6e8] sm:$0xff]
        %v822 = vld [vmem:[%s278 + $0x6f0] sm:$0xff]
        %v823 = vld [vmem:[%s278 + $0x6f8] sm:$0xff]
        %v824 = vld [vmem:[%s278 + $0x700] sm:$0xff]
        %v825 = vld [vmem:[%s278 + $0x708] sm:$0xff]
        %v826 = vld [vmem:[%s278 + $0x710] sm:$0xff]
        %v827 = vld [vmem:[%s278 + $0x718] sm:$0xff]
        %v828 = vld [vmem:[%s278 + $0x720] sm:$0xff]
        %v829 = vld [vmem:[%s278 + $0x728] sm:$0xff]
        %v830 = vld [vmem:[%s278 + $0x730] sm:$0xff]
        %v831 = vld [vmem:[%s278 + $0x738] sm:$0xff]
        %v832 = vld [vmem:[%s278 + $0x740] sm:$0xff]
        %v833 = vld [vmem:[%s278 + $0x748] sm:$0xff]
        %v834 = vld [vmem:[%s278 + $0x750] sm:$0xff]
        %v835 = vld [vmem:[%s278 + $0x758] sm:$0xff]
        %v836 = vld [vmem:[%s278 + $0x760] sm:$0xff]
        %v837 = vld [vmem:[%s278 + $0x768] sm:$0xff]
        %v838 = vld [vmem:[%s278 + $0x770] sm:$0xff]
        %v839 = vld [vmem:[%s278 + $0x778] sm:$0xff]
        %v840 = vld [vmem:[%s278 + $0x780] sm:$0xff]
        %v841 = vld [vmem:[%s278 + $0x788] sm:$0xff]
        %v842 = vld [vmem:[%s278 + $0x790] sm:$0xff]
        %v843 = vld [vmem:[%s278 + $0x798] sm:$0xff]
        %v844 = vld [vmem:[%s278 + $0x7a0] sm:$0xff]
        %v845 = vld [vmem:[%s278 + $0x7a8] sm:$0xff]
        %v846 = vld [vmem:[%s278 + $0x7b0] sm:$0xff]
        %v847 = vld [vmem:[%s278 + $0x7b8] sm:$0xff]
        %v848 = vld [vmem:[%s278 + $0x7c0] sm:$0xff]
        %v849 = vld [vmem:[%s278 + $0x7c8] sm:$0xff]
        %v850 = vld [vmem:[%s278 + $0x7d0] sm:$0xff]
        %v851 = vld [vmem:[%s278 + $0x7d8] sm:$0xff]
        %v852 = vld [vmem:[%s278 + $0x7e0] sm:$0xff]
        %v853 = vld [vmem:[%s278 + $0x7e8] sm:$0xff]
        %v854 = vld [vmem:[%s278 + $0x7f0] sm:$0xff]
        %v855 = vld [vmem:[%s278 + $0x7f8] sm:$0xff]
        %v1112 = vunpack.c.l.b16 %v600
        %v1113 = vunpack.c.h.b16 %v600
        %v1114 = vunpack.c.l.b16 %v601
        %v1115 = vunpack.c.h.b16 %v601
        %v1116 = vunpack.c.l.b16 %v602
        %v1117 = vunpack.c.h.b16 %v602
        %v1118 = vunpack.c.l.b16 %v603
        %v1119 = vunpack.c.h.b16 %v603
        %v1120 = vunpack.c.l.b16 %v604
        %v1121 = vunpack.c.h.b16 %v604
        %v1122 = vunpack.c.l.b16 %v605
        %v1123 = vunpack.c.h.b16 %v605
        %v1124 = vunpack.c.l.b16 %v606
        %v1125 = vunpack.c.h.b16 %v606
        %v1126 = vunpack.c.l.b16 %v607
        %v1127 = vunpack.c.h.b16 %v607
        %v1128 = vunpack.c.l.b16 %v608
        %v1129 = vunpack.c.h.b16 %v608
        %v1130 = vunpack.c.l.b16 %v609
        %v1131 = vunpack.c.h.b16 %v609
        %v1132 = vunpack.c.l.b16 %v610
        %v1133 = vunpack.c.h.b16 %v610
        %v1134 = vunpack.c.l.b16 %v611
        %v1135 = vunpack.c.h.b16 %v611
        %v1136 = vunpack.c.l.b16 %v612
        %v1137 = vunpack.c.h.b16 %v612
        %v1138 = vunpack.c.l.b16 %v613
        %v1139 = vunpack.c.h.b16 %v613
        %v1140 = vunpack.c.l.b16 %v614
        %v1141 = vunpack.c.h.b16 %v614
        %v1142 = vunpack.c.l.b16 %v615
        %v1143 = vunpack.c.h.b16 %v615
        %v1144 = vunpack.c.l.b16 %v616
        %v1145 = vunpack.c.h.b16 %v616
        %v1146 = vunpack.c.l.b16 %v617
        %v1147 = vunpack.c.h.b16 %v617
        %v1148 = vunpack.c.l.b16 %v618
        %v1149 = vunpack.c.h.b16 %v618
        %v1150 = vunpack.c.l.b16 %v619
        %v1151 = vunpack.c.h.b16 %v619
        %v1152 = vunpack.c.l.b16 %v620
        %v1153 = vunpack.c.h.b16 %v620
        %v1154 = vunpack.c.l.b16 %v621
        %v1155 = vunpack.c.h.b16 %v621
        %v1156 = vunpack.c.l.b16 %v622
        %v1157 = vunpack.c.h.b16 %v622
        %v1158 = vunpack.c.l.b16 %v623
        %v1159 = vunpack.c.h.b16 %v623
        %v1160 = vunpack.c.l.b16 %v624
        %v1161 = vunpack.c.h.b16 %v624
        %v1162 = vunpack.c.l.b16 %v625
        %v1163 = vunpack.c.h.b16 %v625
        %v1164 = vunpack.c.l.b16 %v626
        %v1165 = vunpack.c.h.b16 %v626
        %v1166 = vunpack.c.l.b16 %v627
        %v1167 = vunpack.c.h.b16 %v627
        %v1168 = vunpack.c.l.b16 %v628
        %v1169 = vunpack.c.h.b16 %v628
        %v1170 = vunpack.c.l.b16 %v629
        %v1171 = vunpack.c.h.b16 %v629
        %v1172 = vunpack.c.l.b16 %v630
        %v1173 = vunpack.c.h.b16 %v630
        %v1174 = vunpack.c.l.b16 %v631
        %v1175 = vunpack.c.h.b16 %v631
        %v1176 = vunpack.c.l.b16 %v632
        %v1177 = vunpack.c.h.b16 %v632
        %v1178 = vunpack.c.l.b16 %v633
        %v1179 = vunpack.c.h.b16 %v633
        %v1180 = vunpack.c.l.b16 %v634
        %v1181 = vunpack.c.h.b16 %v634
        %v1182 = vunpack.c.l.b16 %v635
        %v1183 = vunpack.c.h.b16 %v635
        %v1184 = vunpack.c.l.b16 %v636
        %v1185 = vunpack.c.h.b16 %v636
        %v1186 = vunpack.c.l.b16 %v637
        %v1187 = vunpack.c.h.b16 %v637
        %v1188 = vunpack.c.l.b16 %v638
        %v1189 = vunpack.c.h.b16 %v638
        %v1190 = vunpack.c.l.b16 %v639
        %v1191 = vunpack.c.h.b16 %v639
        %v1192 = vunpack.c.l.b16 %v640
        %v1193 = vunpack.c.h.b16 %v640
        %v1194 = vunpack.c.l.b16 %v641
        %v1195 = vunpack.c.h.b16 %v641
        %v1196 = vunpack.c.l.b16 %v642
        %v1197 = vunpack.c.h.b16 %v642
        %v1198 = vunpack.c.l.b16 %v643
        %v1199 = vunpack.c.h.b16 %v643
        %v1200 = vunpack.c.l.b16 %v644
        %v1201 = vunpack.c.h.b16 %v644
        %v1202 = vunpack.c.l.b16 %v645
        %v1203 = vunpack.c.h.b16 %v645
        %v1204 = vunpack.c.l.b16 %v646
        %v1205 = vunpack.c.h.b16 %v646
        %v1206 = vunpack.c.l.b16 %v647
        %v1207 = vunpack.c.h.b16 %v647
        %v1208 = vunpack.c.l.b16 %v648
        %v1209 = vunpack.c.h.b16 %v648
        %v1210 = vunpack.c.l.b16 %v649
        %v1211 = vunpack.c.h.b16 %v649
        %v1212 = vunpack.c.l.b16 %v650
        %v1213 = vunpack.c.h.b16 %v650
        %v1214 = vunpack.c.l.b16 %v651
        %v1215 = vunpack.c.h.b16 %v651
        %v1216 = vunpack.c.l.b16 %v652
        %v1217 = vunpack.c.h.b16 %v652
        %v1218 = vunpack.c.l.b16 %v653
        %v1219 = vunpack.c.h.b16 %v653
        %v1220 = vunpack.c.l.b16 %v654
        %v1221 = vunpack.c.h.b16 %v654
        %v1222 = vunpack.c.l.b16 %v655
        %v1223 = vunpack.c.h.b16 %v655
        %v1224 = vunpack.c.l.b16 %v656
        %v1225 = vunpack.c.h.b16 %v656
        %v1226 = vunpack.c.l.b16 %v657
        %v1227 = vunpack.c.h.b16 %v657
        %v1228 = vunpack.c.l.b16 %v658
        %v1229 = vunpack.c.h.b16 %v658
        %v1230 = vunpack.c.l.b16 %v659
        %v1231 = vunpack.c.h.b16 %v659
        %v1232 = vunpack.c.l.b16 %v660
        %v1233 = vunpack.c.h.b16 %v660
        %v1234 = vunpack.c.l.b16 %v661
        %v1235 = vunpack.c.h.b16 %v661
        %v1236 = vunpack.c.l.b16 %v662
        %v1237 = vunpack.c.h.b16 %v662
        %v1238 = vunpack.c.l.b16 %v663
        %v1239 = vunpack.c.h.b16 %v663
        %v1240 = vunpack.c.l.b16 %v664
        %v1241 = vunpack.c.h.b16 %v664
        %v1242 = vunpack.c.l.b16 %v665
        %v1243 = vunpack.c.h.b16 %v665
        %v1244 = vunpack.c.l.b16 %v666
        %v1245 = vunpack.c.h.b16 %v666
        %v1246 = vunpack.c.l.b16 %v667
        %v1247 = vunpack.c.h.b16 %v667
        %v1248 = vunpack.c.l.b16 %v668
        %v1249 = vunpack.c.h.b16 %v668
        %v1250 = vunpack.c.l.b16 %v669
        %v1251 = vunpack.c.h.b16 %v669
        %v1252 = vunpack.c.l.b16 %v670
        %v1253 = vunpack.c.h.b16 %v670
        %v1254 = vunpack.c.l.b16 %v671
        %v1255 = vunpack.c.h.b16 %v671
        %v1256 = vunpack.c.l.b16 %v672
        %v1257 = vunpack.c.h.b16 %v672
        %v1258 = vunpack.c.l.b16 %v673
        %v1259 = vunpack.c.h.b16 %v673
        %v1260 = vunpack.c.l.b16 %v674
        %v1261 = vunpack.c.h.b16 %v674
        %v1262 = vunpack.c.l.b16 %v675
        %v1263 = vunpack.c.h.b16 %v675
        %v1264 = vunpack.c.l.b16 %v676
        %v1265 = vunpack.c.h.b16 %v676
        %v1266 = vunpack.c.l.b16 %v677
        %v1267 = vunpack.c.h.b16 %v677
        %v1268 = vunpack.c.l.b16 %v678
        %v1269 = vunpack.c.h.b16 %v678
        %v1270 = vunpack.c.l.b16 %v679
        %v1271 = vunpack.c.h.b16 %v679
        %v1272 = vunpack.c.l.b16 %v680
        %v1273 = vunpack.c.h.b16 %v680
        %v1274 = vunpack.c.l.b16 %v681
        %v1275 = vunpack.c.h.b16 %v681
        %v1276 = vunpack.c.l.b16 %v682
        %v1277 = vunpack.c.h.b16 %v682
        %v1278 = vunpack.c.l.b16 %v683
        %v1279 = vunpack.c.h.b16 %v683
        %v1280 = vunpack.c.l.b16 %v684
        %v1281 = vunpack.c.h.b16 %v684
        %v1282 = vunpack.c.l.b16 %v685
        %v1283 = vunpack.c.h.b16 %v685
        %v1284 = vunpack.c.l.b16 %v686
        %v1285 = vunpack.c.h.b16 %v686
        %v1286 = vunpack.c.l.b16 %v687
        %v1287 = vunpack.c.h.b16 %v687
        %v1288 = vunpack.c.l.b16 %v688
        %v1289 = vunpack.c.h.b16 %v688
        %v1290 = vunpack.c.l.b16 %v689
        %v1291 = vunpack.c.h.b16 %v689
        %v1292 = vunpack.c.l.b16 %v690
        %v1293 = vunpack.c.h.b16 %v690
        %v1294 = vunpack.c.l.b16 %v691
        %v1295 = vunpack.c.h.b16 %v691
        %v1296 = vunpack.c.l.b16 %v692
        %v1297 = vunpack.c.h.b16 %v692
        %v1298 = vunpack.c.l.b16 %v693
        %v1299 = vunpack.c.h.b16 %v693
        %v1300 = vunpack.c.l.b16 %v694
        %v1301 = vunpack.c.h.b16 %v694
        %v1302 = vunpack.c.l.b16 %v695
        %v1303 = vunpack.c.h.b16 %v695
        %v1304 = vunpack.c.l.b16 %v696
        %v1305 = vunpack.c.h.b16 %v696
        %v1306 = vunpack.c.l.b16 %v697
        %v1307 = vunpack.c.h.b16 %v697
        %v1308 = vunpack.c.l.b16 %v698
        %v1309 = vunpack.c.h.b16 %v698
        %v1310 = vunpack.c.l.b16 %v699
        %v1311 = vunpack.c.h.b16 %v699
        %v1312 = vunpack.c.l.b16 %v700
        %v1313 = vunpack.c.h.b16 %v700
        %v1314 = vunpack.c.l.b16 %v701
        %v1315 = vunpack.c.h.b16 %v701
        %v1316 = vunpack.c.l.b16 %v702
        %v1317 = vunpack.c.h.b16 %v702
        %v1318 = vunpack.c.l.b16 %v703
        %v1319 = vunpack.c.h.b16 %v703
        %v1320 = vunpack.c.l.b16 %v704
        %v1321 = vunpack.c.h.b16 %v704
        %v1322 = vunpack.c.l.b16 %v705
        %v1323 = vunpack.c.h.b16 %v705
        %v1324 = vunpack.c.l.b16 %v706
        %v1325 = vunpack.c.h.b16 %v706
        %v1326 = vunpack.c.l.b16 %v707
        %v1327 = vunpack.c.h.b16 %v707
        %v1328 = vunpack.c.l.b16 %v708
        %v1329 = vunpack.c.h.b16 %v708
        %v1330 = vunpack.c.l.b16 %v709
        %v1331 = vunpack.c.h.b16 %v709
        %v1332 = vunpack.c.l.b16 %v710
        %v1333 = vunpack.c.h.b16 %v710
        %v1334 = vunpack.c.l.b16 %v711
        %v1335 = vunpack.c.h.b16 %v711
        %v1336 = vunpack.c.l.b16 %v712
        %v1337 = vunpack.c.h.b16 %v712
        %v1338 = vunpack.c.l.b16 %v713
        %v1339 = vunpack.c.h.b16 %v713
        %v1340 = vunpack.c.l.b16 %v714
        %v1341 = vunpack.c.h.b16 %v714
        %v1342 = vunpack.c.l.b16 %v715
        %v1343 = vunpack.c.h.b16 %v715
        %v1344 = vunpack.c.l.b16 %v716
        %v1345 = vunpack.c.h.b16 %v716
        %v1346 = vunpack.c.l.b16 %v717
        %v1347 = vunpack.c.h.b16 %v717
        %v1348 = vunpack.c.l.b16 %v718
        %v1349 = vunpack.c.h.b16 %v718
        %v1350 = vunpack.c.l.b16 %v719
        %v1351 = vunpack.c.h.b16 %v719
        %v1352 = vunpack.c.l.b16 %v720
        %v1353 = vunpack.c.h.b16 %v720
        %v1354 = vunpack.c.l.b16 %v721
        %v1355 = vunpack.c.h.b16 %v721
        %v1356 = vunpack.c.l.b16 %v722
        %v1357 = vunpack.c.h.b16 %v722
        %v1358 = vunpack.c.l.b16 %v723
        %v1359 = vunpack.c.h.b16 %v723
        %v1360 = vunpack.c.l.b16 %v724
        %v1361 = vunpack.c.h.b16 %v724
        %v1362 = vunpack.c.l.b16 %v725
        %v1363 = vunpack.c.h.b16 %v725
        %v1364 = vunpack.c.l.b16 %v726
        %v1365 = vunpack.c.h.b16 %v726
        %v1366 = vunpack.c.l.b16 %v727
        %v1367 = vunpack.c.h.b16 %v727
        %v1368 = vunpack.c.l.b16 %v728
        %v1369 = vunpack.c.h.b16 %v728
        %v1370 = vunpack.c.l.b16 %v729
        %v1371 = vunpack.c.h.b16 %v729
        %v1372 = vunpack.c.l.b16 %v730
        %v1373 = vunpack.c.h.b16 %v730
        %v1374 = vunpack.c.l.b16 %v731
        %v1375 = vunpack.c.h.b16 %v731
        %v1376 = vunpack.c.l.b16 %v732
        %v1377 = vunpack.c.h.b16 %v732
        %v1378 = vunpack.c.l.b16 %v733
        %v1379 = vunpack.c.h.b16 %v733
        %v1380 = vunpack.c.l.b16 %v734
        %v1381 = vunpack.c.h.b16 %v734
        %v1382 = vunpack.c.l.b16 %v735
        %v1383 = vunpack.c.h.b16 %v735
        %v1384 = vunpack.c.l.b16 %v736
        %v1385 = vunpack.c.h.b16 %v736
        %v1386 = vunpack.c.l.b16 %v737
        %v1387 = vunpack.c.h.b16 %v737
        %v1388 = vunpack.c.l.b16 %v738
        %v1389 = vunpack.c.h.b16 %v738
        %v1390 = vunpack.c.l.b16 %v739
        %v1391 = vunpack.c.h.b16 %v739
        %v1392 = vunpack.c.l.b16 %v740
        %v1393 = vunpack.c.h.b16 %v740
        %v1394 = vunpack.c.l.b16 %v741
        %v1395 = vunpack.c.h.b16 %v741
        %v1396 = vunpack.c.l.b16 %v742
        %v1397 = vunpack.c.h.b16 %v742
        %v1398 = vunpack.c.l.b16 %v743
        %v1399 = vunpack.c.h.b16 %v743
        %v1400 = vunpack.c.l.b16 %v744
        %v1401 = vunpack.c.h.b16 %v744
        %v1402 = vunpack.c.l.b16 %v745
        %v1403 = vunpack.c.h.b16 %v745
        %v1404 = vunpack.c.l.b16 %v746
        %v1405 = vunpack.c.h.b16 %v746
        %v1406 = vunpack.c.l.b16 %v747
        %v1407 = vunpack.c.h.b16 %v747
        %v1408 = vunpack.c.l.b16 %v748
        %v1409 = vunpack.c.h.b16 %v748
        %v1410 = vunpack.c.l.b16 %v749
        %v1411 = vunpack.c.h.b16 %v749
        %v1412 = vunpack.c.l.b16 %v750
        %v1413 = vunpack.c.h.b16 %v750
        %v1414 = vunpack.c.l.b16 %v751
        %v1415 = vunpack.c.h.b16 %v751
        %v1416 = vunpack.c.l.b16 %v752
        %v1417 = vunpack.c.h.b16 %v752
        %v1418 = vunpack.c.l.b16 %v753
        %v1419 = vunpack.c.h.b16 %v753
        %v1420 = vunpack.c.l.b16 %v754
        %v1421 = vunpack.c.h.b16 %v754
        %v1422 = vunpack.c.l.b16 %v755
        %v1423 = vunpack.c.h.b16 %v755
        %v1424 = vunpack.c.l.b16 %v756
        %v1425 = vunpack.c.h.b16 %v756
        %v1426 = vunpack.c.l.b16 %v757
        %v1427 = vunpack.c.h.b16 %v757
        %v1428 = vunpack.c.l.b16 %v758
        %v1429 = vunpack.c.h.b16 %v758
        %v1430 = vunpack.c.l.b16 %v759
        %v1431 = vunpack.c.h.b16 %v759
        %v1432 = vunpack.c.l.b16 %v760
        %v1433 = vunpack.c.h.b16 %v760
        %v1434 = vunpack.c.l.b16 %v761
        %v1435 = vunpack.c.h.b16 %v761
        %v1436 = vunpack.c.l.b16 %v762
        %v1437 = vunpack.c.h.b16 %v762
        %v1438 = vunpack.c.l.b16 %v763
        %v1439 = vunpack.c.h.b16 %v763
        %v1440 = vunpack.c.l.b16 %v764
        %v1441 = vunpack.c.h.b16 %v764
        %v1442 = vunpack.c.l.b16 %v765
        %v1443 = vunpack.c.h.b16 %v765
        %v1444 = vunpack.c.l.b16 %v766
        %v1445 = vunpack.c.h.b16 %v766
        %v1446 = vunpack.c.l.b16 %v767
        %v1447 = vunpack.c.h.b16 %v767
        %v1448 = vunpack.c.l.b16 %v768
        %v1449 = vunpack.c.h.b16 %v768
        %v1450 = vunpack.c.l.b16 %v769
        %v1451 = vunpack.c.h.b16 %v769
        %v1452 = vunpack.c.l.b16 %v770
        %v1453 = vunpack.c.h.b16 %v770
        %v1454 = vunpack.c.l.b16 %v771
        %v1455 = vunpack.c.h.b16 %v771
        %v1456 = vunpack.c.l.b16 %v772
        %v1457 = vunpack.c.h.b16 %v772
        %v1458 = vunpack.c.l.b16 %v773
        %v1459 = vunpack.c.h.b16 %v773
        %v1460 = vunpack.c.l.b16 %v774
        %v1461 = vunpack.c.h.b16 %v774
        %v1462 = vunpack.c.l.b16 %v775
        %v1463 = vunpack.c.h.b16 %v775
        %v1464 = vunpack.c.l.b16 %v776
        %v1465 = vunpack.c.h.b16 %v776
        %v1466 = vunpack.c.l.b16 %v777
        %v1467 = vunpack.c.h.b16 %v777
        %v1468 = vunpack.c.l.b16 %v778
        %v1469 = vunpack.c.h.b16 %v778
        %v1470 = vunpack.c.l.b16 %v779
        %v1471 = vunpack.c.h.b16 %v779
        %v1472 = vunpack.c.l.b16 %v780
        %v1473 = vunpack.c.h.b16 %v780
        %v1474 = vunpack.c.l.b16 %v781
        %v1475 = vunpack.c.h.b16 %v781
        %v1476 = vunpack.c.l.b16 %v782
        %v1477 = vunpack.c.h.b16 %v782
        %v1478 = vunpack.c.l.b16 %v783
        %v1479 = vunpack.c.h.b16 %v783
        %v1480 = vunpack.c.l.b16 %v784
        %v1481 = vunpack.c.h.b16 %v784
        %v1482 = vunpack.c.l.b16 %v785
        %v1483 = vunpack.c.h.b16 %v785
        %v1484 = vunpack.c.l.b16 %v786
        %v1485 = vunpack.c.h.b16 %v786
        %v1486 = vunpack.c.l.b16 %v787
        %v1487 = vunpack.c.h.b16 %v787
        %v1488 = vunpack.c.l.b16 %v788
        %v1489 = vunpack.c.h.b16 %v788
        %v1490 = vunpack.c.l.b16 %v789
        %v1491 = vunpack.c.h.b16 %v789
        %v1492 = vunpack.c.l.b16 %v790
        %v1493 = vunpack.c.h.b16 %v790
        %v1494 = vunpack.c.l.b16 %v791
        %v1495 = vunpack.c.h.b16 %v791
        %v1496 = vunpack.c.l.b16 %v792
        %v1497 = vunpack.c.h.b16 %v792
        %v1498 = vunpack.c.l.b16 %v793
        %v1499 = vunpack.c.h.b16 %v793
        %v1500 = vunpack.c.l.b16 %v794
        %v1501 = vunpack.c.h.b16 %v794
        %v1502 = vunpack.c.l.b16 %v795
        %v1503 = vunpack.c.h.b16 %v795
        %v1504 = vunpack.c.l.b16 %v796
        %v1505 = vunpack.c.h.b16 %v796
        %v1506 = vunpack.c.l.b16 %v797
        %v1507 = vunpack.c.h.b16 %v797
        %v1508 = vunpack.c.l.b16 %v798
        %v1509 = vunpack.c.h.b16 %v798
        %v1510 = vunpack.c.l.b16 %v799
        %v1511 = vunpack.c.h.b16 %v799
        %v1512 = vunpack.c.l.b16 %v800
        %v1513 = vunpack.c.h.b16 %v800
        %v1514 = vunpack.c.l.b16 %v801
        %v1515 = vunpack.c.h.b16 %v801
        %v1516 = vunpack.c.l.b16 %v802
        %v1517 = vunpack.c.h.b16 %v802
        %v1518 = vunpack.c.l.b16 %v803
        %v1519 = vunpack.c.h.b16 %v803
        %v1520 = vunpack.c.l.b16 %v804
        %v1521 = vunpack.c.h.b16 %v804
        %v1522 = vunpack.c.l.b16 %v805
        %v1523 = vunpack.c.h.b16 %v805
        %v1524 = vunpack.c.l.b16 %v806
        %v1525 = vunpack.c.h.b16 %v806
        %v1526 = vunpack.c.l.b16 %v807
        %v1527 = vunpack.c.h.b16 %v807
        %v1528 = vunpack.c.l.b16 %v808
        %v1529 = vunpack.c.h.b16 %v808
        %v1530 = vunpack.c.l.b16 %v809
        %v1531 = vunpack.c.h.b16 %v809
        %v1532 = vunpack.c.l.b16 %v810
        %v1533 = vunpack.c.h.b16 %v810
        %v1534 = vunpack.c.l.b16 %v811
        %v1535 = vunpack.c.h.b16 %v811
        %v1536 = vunpack.c.l.b16 %v812
        %v1537 = vunpack.c.h.b16 %v812
        %v1538 = vunpack.c.l.b16 %v813
        %v1539 = vunpack.c.h.b16 %v813
        %v1540 = vunpack.c.l.b16 %v814
        %v1541 = vunpack.c.h.b16 %v814
        %v1542 = vunpack.c.l.b16 %v815
        %v1543 = vunpack.c.h.b16 %v815
        %v1544 = vunpack.c.l.b16 %v816
        %v1545 = vunpack.c.h.b16 %v816
        %v1546 = vunpack.c.l.b16 %v817
        %v1547 = vunpack.c.h.b16 %v817
        %v1548 = vunpack.c.l.b16 %v818
        %v1549 = vunpack.c.h.b16 %v818
        %v1550 = vunpack.c.l.b16 %v819
        %v1551 = vunpack.c.h.b16 %v819
        %v1552 = vunpack.c.l.b16 %v820
        %v1553 = vunpack.c.h.b16 %v820
        %v1554 = vunpack.c.l.b16 %v821
        %v1555 = vunpack.c.h.b16 %v821
        %v1556 = vunpack.c.l.b16 %v822
        %v1557 = vunpack.c.h.b16 %v822
        %v1558 = vunpack.c.l.b16 %v823
        %v1559 = vunpack.c.h.b16 %v823
        %v1560 = vunpack.c.l.b16 %v824
        %v1561 = vunpack.c.h.b16 %v824
        %v1562 = vunpack.c.l.b16 %v825
        %v1563 = vunpack.c.h.b16 %v825
        %v1564 = vunpack.c.l.b16 %v826
        %v1565 = vunpack.c.h.b16 %v826
        %v1566 = vunpack.c.l.b16 %v827
        %v1567 = vunpack.c.h.b16 %v827
        %v1568 = vunpack.c.l.b16 %v828
        %v1569 = vunpack.c.h.b16 %v828
        %v1570 = vunpack.c.l.b16 %v829
        %v1571 = vunpack.c.h.b16 %v829
        %v1572 = vunpack.c.l.b16 %v830
        %v1573 = vunpack.c.h.b16 %v830
        %v1574 = vunpack.c.l.b16 %v831
        %v1575 = vunpack.c.h.b16 %v831
        %v1576 = vunpack.c.l.b16 %v832
        %v1577 = vunpack.c.h.b16 %v832
        %v1578 = vunpack.c.l.b16 %v833
        %v1579 = vunpack.c.h.b16 %v833
        %v1580 = vunpack.c.l.b16 %v834
        %v1581 = vunpack.c.h.b16 %v834
        %v1582 = vunpack.c.l.b16 %v835
        %v1583 = vunpack.c.h.b16 %v835
        %v1584 = vunpack.c.l.b16 %v836
        %v1585 = vunpack.c.h.b16 %v836
        %v1586 = vunpack.c.l.b16 %v837
        %v1587 = vunpack.c.h.b16 %v837
        %v1588 = vunpack.c.l.b16 %v838
        %v1589 = vunpack.c.h.b16 %v838
        %v1590 = vunpack.c.l.b16 %v839
        %v1591 = vunpack.c.h.b16 %v839
        %v1592 = vunpack.c.l.b16 %v840
        %v1593 = vunpack.c.h.b16 %v840
        %v1594 = vunpack.c.l.b16 %v841
        %v1595 = vunpack.c.h.b16 %v841
        %v1596 = vunpack.c.l.b16 %v842
        %v1597 = vunpack.c.h.b16 %v842
        %v1598 = vunpack.c.l.b16 %v843
        %v1599 = vunpack.c.h.b16 %v843
        %v1600 = vunpack.c.l.b16 %v844
        %v1601 = vunpack.c.h.b16 %v844
        %v1602 = vunpack.c.l.b16 %v845
        %v1603 = vunpack.c.h.b16 %v845
        %v1604 = vunpack.c.l.b16 %v846
        %v1605 = vunpack.c.h.b16 %v846
        %v1606 = vunpack.c.l.b16 %v847
        %v1607 = vunpack.c.h.b16 %v847
        %v1608 = vunpack.c.l.b16 %v848
        %v1609 = vunpack.c.h.b16 %v848
        %v1610 = vunpack.c.l.b16 %v849
        %v1611 = vunpack.c.h.b16 %v849
        %v1612 = vunpack.c.l.b16 %v850
        %v1613 = vunpack.c.h.b16 %v850
        %v1614 = vunpack.c.l.b16 %v851
        %v1615 = vunpack.c.h.b16 %v851
        %v1616 = vunpack.c.l.b16 %v852
        %v1617 = vunpack.c.h.b16 %v852
        %v1618 = vunpack.c.l.b16 %v853
        %v1619 = vunpack.c.h.b16 %v853
        %v1620 = vunpack.c.l.b16 %v854
        %v1621 = vunpack.c.h.b16 %v854
        %v1622 = vunpack.c.l.b16 %v855
        %v1623 = vunpack.c.h.b16 %v855
        %v1624 = vpack.c.b16 %v1120, %v1112
        %v1625 = vpack.c.b16 %v1121, %v1113
        %v1626 = vpack.c.b16 %v1122, %v1114
        %v1627 = vpack.c.b16 %v1123, %v1115
        %v1628 = vpack.c.b16 %v1124, %v1116
        %v1629 = vpack.c.b16 %v1125, %v1117
        %v1630 = vpack.c.b16 %v1126, %v1118
        %v1631 = vpack.c.b16 %v1127, %v1119
        %v1632 = vpack.c.b16 %v1136, %v1128
        %v1633 = vpack.c.b16 %v1137, %v1129
        %v1634 = vpack.c.b16 %v1138, %v1130
        %v1635 = vpack.c.b16 %v1139, %v1131
        %v1636 = vpack.c.b16 %v1140, %v1132
        %v1637 = vpack.c.b16 %v1141, %v1133
        %v1638 = vpack.c.b16 %v1142, %v1134
        %v1639 = vpack.c.b16 %v1143, %v1135
        %v1640 = vpack.c.b16 %v1152, %v1144
        %v1641 = vpack.c.b16 %v1153, %v1145
        %v1642 = vpack.c.b16 %v1154, %v1146
        %v1643 = vpack.c.b16 %v1155, %v1147
        %v1644 = vpack.c.b16 %v1156, %v1148
        %v1645 = vpack.c.b16 %v1157, %v1149
        %v1646 = vpack.c.b16 %v1158, %v1150
        %v1647 = vpack.c.b16 %v1159, %v1151
        %v1648 = vpack.c.b16 %v1168, %v1160
        %v1649 = vpack.c.b16 %v1169, %v1161
        %v1650 = vpack.c.b16 %v1170, %v1162
        %v1651 = vpack.c.b16 %v1171, %v1163
        %v1652 = vpack.c.b16 %v1172, %v1164
        %v1653 = vpack.c.b16 %v1173, %v1165
        %v1654 = vpack.c.b16 %v1174, %v1166
        %v1655 = vpack.c.b16 %v1175, %v1167
        %v1656 = vpack.c.b16 %v1184, %v1176
        %v1657 = vpack.c.b16 %v1185, %v1177
        %v1658 = vpack.c.b16 %v1186, %v1178
        %v1659 = vpack.c.b16 %v1187, %v1179
        %v1660 = vpack.c.b16 %v1188, %v1180
        %v1661 = vpack.c.b16 %v1189, %v1181
        %v1662 = vpack.c.b16 %v1190, %v1182
        %v1663 = vpack.c.b16 %v1191, %v1183
        %v1664 = vpack.c.b16 %v1200, %v1192
        %v1665 = vpack.c.b16 %v1201, %v1193
        %v1666 = vpack.c.b16 %v1202, %v1194
        %v1667 = vpack.c.b16 %v1203, %v1195
        %v1668 = vpack.c.b16 %v1204, %v1196
        %v1669 = vpack.c.b16 %v1205, %v1197
        %v1670 = vpack.c.b16 %v1206, %v1198
        %v1671 = vpack.c.b16 %v1207, %v1199
        %v1672 = vpack.c.b16 %v1216, %v1208
        %v1673 = vpack.c.b16 %v1217, %v1209
        %v1674 = vpack.c.b16 %v1218, %v1210
        %v1675 = vpack.c.b16 %v1219, %v1211
        %v1676 = vpack.c.b16 %v1220, %v1212
        %v1677 = vpack.c.b16 %v1221, %v1213
        %v1678 = vpack.c.b16 %v1222, %v1214
        %v1679 = vpack.c.b16 %v1223, %v1215
        %v1680 = vpack.c.b16 %v1232, %v1224
        %v1681 = vpack.c.b16 %v1233, %v1225
        %v1682 = vpack.c.b16 %v1234, %v1226
        %v1683 = vpack.c.b16 %v1235, %v1227
        %v1684 = vpack.c.b16 %v1236, %v1228
        %v1685 = vpack.c.b16 %v1237, %v1229
        %v1686 = vpack.c.b16 %v1238, %v1230
        %v1687 = vpack.c.b16 %v1239, %v1231
        %v1688 = vpack.c.b16 %v1248, %v1240
        %v1689 = vpack.c.b16 %v1249, %v1241
        %v1690 = vpack.c.b16 %v1250, %v1242
        %v1691 = vpack.c.b16 %v1251, %v1243
        %v1692 = vpack.c.b16 %v1252, %v1244
        %v1693 = vpack.c.b16 %v1253, %v1245
        %v1694 = vpack.c.b16 %v1254, %v1246
        %v1695 = vpack.c.b16 %v1255, %v1247
        %v1696 = vpack.c.b16 %v1264, %v1256
        %v1697 = vpack.c.b16 %v1265, %v1257
        %v1698 = vpack.c.b16 %v1266, %v1258
        %v1699 = vpack.c.b16 %v1267, %v1259
        %v1700 = vpack.c.b16 %v1268, %v1260
        %v1701 = vpack.c.b16 %v1269, %v1261
        %v1702 = vpack.c.b16 %v1270, %v1262
        %v1703 = vpack.c.b16 %v1271, %v1263
        %v1704 = vpack.c.b16 %v1280, %v1272
        %v1705 = vpack.c.b16 %v1281, %v1273
        %v1706 = vpack.c.b16 %v1282, %v1274
        %v1707 = vpack.c.b16 %v1283, %v1275
        %v1708 = vpack.c.b16 %v1284, %v1276
        %v1709 = vpack.c.b16 %v1285, %v1277
        %v1710 = vpack.c.b16 %v1286, %v1278
        %v1711 = vpack.c.b16 %v1287, %v1279
        %v1712 = vpack.c.b16 %v1296, %v1288
        %v1713 = vpack.c.b16 %v1297, %v1289
        %v1714 = vpack.c.b16 %v1298, %v1290
        %v1715 = vpack.c.b16 %v1299, %v1291
        %v1716 = vpack.c.b16 %v1300, %v1292
        %v1717 = vpack.c.b16 %v1301, %v1293
        %v1718 = vpack.c.b16 %v1302, %v1294
        %v1719 = vpack.c.b16 %v1303, %v1295
        %v1720 = vpack.c.b16 %v1312, %v1304
        %v1721 = vpack.c.b16 %v1313, %v1305
        %v1722 = vpack.c.b16 %v1314, %v1306
        %v1723 = vpack.c.b16 %v1315, %v1307
        %v1724 = vpack.c.b16 %v1316, %v1308
        %v1725 = vpack.c.b16 %v1317, %v1309
        %v1726 = vpack.c.b16 %v1318, %v1310
        %v1727 = vpack.c.b16 %v1319, %v1311
        %v1728 = vpack.c.b16 %v1328, %v1320
        %v1729 = vpack.c.b16 %v1329, %v1321
        %v1730 = vpack.c.b16 %v1330, %v1322
        %v1731 = vpack.c.b16 %v1331, %v1323
        %v1732 = vpack.c.b16 %v1332, %v1324
        %v1733 = vpack.c.b16 %v1333, %v1325
        %v1734 = vpack.c.b16 %v1334, %v1326
        %v1735 = vpack.c.b16 %v1335, %v1327
        %v1736 = vpack.c.b16 %v1344, %v1336
        %v1737 = vpack.c.b16 %v1345, %v1337
        %v1738 = vpack.c.b16 %v1346, %v1338
        %v1739 = vpack.c.b16 %v1347, %v1339
        %v1740 = vpack.c.b16 %v1348, %v1340
        %v1741 = vpack.c.b16 %v1349, %v1341
        %v1742 = vpack.c.b16 %v1350, %v1342
        %v1743 = vpack.c.b16 %v1351, %v1343
        %v1744 = vpack.c.b16 %v1360, %v1352
        %v1745 = vpack.c.b16 %v1361, %v1353
        %v1746 = vpack.c.b16 %v1362, %v1354
        %v1747 = vpack.c.b16 %v1363, %v1355
        %v1748 = vpack.c.b16 %v1364, %v1356
        %v1749 = vpack.c.b16 %v1365, %v1357
        %v1750 = vpack.c.b16 %v1366, %v1358
        %v1751 = vpack.c.b16 %v1367, %v1359
        %v1752 = vpack.c.b16 %v1376, %v1368
        %v1753 = vpack.c.b16 %v1377, %v1369
        %v1754 = vpack.c.b16 %v1378, %v1370
        %v1755 = vpack.c.b16 %v1379, %v1371
        %v1756 = vpack.c.b16 %v1380, %v1372
        %v1757 = vpack.c.b16 %v1381, %v1373
        %v1758 = vpack.c.b16 %v1382, %v1374
        %v1759 = vpack.c.b16 %v1383, %v1375
        %v1760 = vpack.c.b16 %v1392, %v1384
        %v1761 = vpack.c.b16 %v1393, %v1385
        %v1762 = vpack.c.b16 %v1394, %v1386
        %v1763 = vpack.c.b16 %v1395, %v1387
        %v1764 = vpack.c.b16 %v1396, %v1388
        %v1765 = vpack.c.b16 %v1397, %v1389
        %v1766 = vpack.c.b16 %v1398, %v1390
        %v1767 = vpack.c.b16 %v1399, %v1391
        %v1768 = vpack.c.b16 %v1408, %v1400
        %v1769 = vpack.c.b16 %v1409, %v1401
        %v1770 = vpack.c.b16 %v1410, %v1402
        %v1771 = vpack.c.b16 %v1411, %v1403
        %v1772 = vpack.c.b16 %v1412, %v1404
        %v1773 = vpack.c.b16 %v1413, %v1405
        %v1774 = vpack.c.b16 %v1414, %v1406
        %v1775 = vpack.c.b16 %v1415, %v1407
        %v1776 = vpack.c.b16 %v1424, %v1416
        %v1777 = vpack.c.b16 %v1425, %v1417
        %v1778 = vpack.c.b16 %v1426, %v1418
        %v1779 = vpack.c.b16 %v1427, %v1419
        %v1780 = vpack.c.b16 %v1428, %v1420
        %v1781 = vpack.c.b16 %v1429, %v1421
        %v1782 = vpack.c.b16 %v1430, %v1422
        %v1783 = vpack.c.b16 %v1431, %v1423
        %v1784 = vpack.c.b16 %v1440, %v1432
        %v1785 = vpack.c.b16 %v1441, %v1433
        %v1786 = vpack.c.b16 %v1442, %v1434
        %v1787 = vpack.c.b16 %v1443, %v1435
        %v1788 = vpack.c.b16 %v1444, %v1436
        %v1789 = vpack.c.b16 %v1445, %v1437
        %v1790 = vpack.c.b16 %v1446, %v1438
        %v1791 = vpack.c.b16 %v1447, %v1439
        %v1792 = vpack.c.b16 %v1456, %v1448
        %v1793 = vpack.c.b16 %v1457, %v1449
        %v1794 = vpack.c.b16 %v1458, %v1450
        %v1795 = vpack.c.b16 %v1459, %v1451
        %v1796 = vpack.c.b16 %v1460, %v1452
        %v1797 = vpack.c.b16 %v1461, %v1453
        %v1798 = vpack.c.b16 %v1462, %v1454
        %v1799 = vpack.c.b16 %v1463, %v1455
        %v1800 = vpack.c.b16 %v1472, %v1464
        %v1801 = vpack.c.b16 %v1473, %v1465
        %v1802 = vpack.c.b16 %v1474, %v1466
        %v1803 = vpack.c.b16 %v1475, %v1467
        %v1804 = vpack.c.b16 %v1476, %v1468
        %v1805 = vpack.c.b16 %v1477, %v1469
        %v1806 = vpack.c.b16 %v1478, %v1470
        %v1807 = vpack.c.b16 %v1479, %v1471
        %v1808 = vpack.c.b16 %v1488, %v1480
        %v1809 = vpack.c.b16 %v1489, %v1481
        %v1810 = vpack.c.b16 %v1490, %v1482
        %v1811 = vpack.c.b16 %v1491, %v1483
        %v1812 = vpack.c.b16 %v1492, %v1484
        %v1813 = vpack.c.b16 %v1493, %v1485
        %v1814 = vpack.c.b16 %v1494, %v1486
        %v1815 = vpack.c.b16 %v1495, %v1487
        %v1816 = vpack.c.b16 %v1504, %v1496
        %v1817 = vpack.c.b16 %v1505, %v1497
        %v1818 = vpack.c.b16 %v1506, %v1498
        %v1819 = vpack.c.b16 %v1507, %v1499
        %v1820 = vpack.c.b16 %v1508, %v1500
        %v1821 = vpack.c.b16 %v1509, %v1501
        %v1822 = vpack.c.b16 %v1510, %v1502
        %v1823 = vpack.c.b16 %v1511, %v1503
        %v1824 = vpack.c.b16 %v1520, %v1512
        %v1825 = vpack.c.b16 %v1521, %v1513
        %v1826 = vpack.c.b16 %v1522, %v1514
        %v1827 = vpack.c.b16 %v1523, %v1515
        %v1828 = vpack.c.b16 %v1524, %v1516
        %v1829 = vpack.c.b16 %v1525, %v1517
        %v1830 = vpack.c.b16 %v1526, %v1518
        %v1831 = vpack.c.b16 %v1527, %v1519
        %v1832 = vpack.c.b16 %v1536, %v1528
        %v1833 = vpack.c.b16 %v1537, %v1529
        %v1834 = vpack.c.b16 %v1538, %v1530
        %v1835 = vpack.c.b16 %v1539, %v1531
        %v1836 = vpack.c.b16 %v1540, %v1532
        %v1837 = vpack.c.b16 %v1541, %v1533
        %v1838 = vpack.c.b16 %v1542, %v1534
        %v1839 = vpack.c.b16 %v1543, %v1535
        %v1840 = vpack.c.b16 %v1552, %v1544
        %v1841 = vpack.c.b16 %v1553, %v1545
        %v1842 = vpack.c.b16 %v1554, %v1546
        %v1843 = vpack.c.b16 %v1555, %v1547
        %v1844 = vpack.c.b16 %v1556, %v1548
        %v1845 = vpack.c.b16 %v1557, %v1549
        %v1846 = vpack.c.b16 %v1558, %v1550
        %v1847 = vpack.c.b16 %v1559, %v1551
        %v1848 = vpack.c.b16 %v1568, %v1560
        %v1849 = vpack.c.b16 %v1569, %v1561
        %v1850 = vpack.c.b16 %v1570, %v1562
        %v1851 = vpack.c.b16 %v1571, %v1563
        %v1852 = vpack.c.b16 %v1572, %v1564
        %v1853 = vpack.c.b16 %v1573, %v1565
        %v1854 = vpack.c.b16 %v1574, %v1566
        %v1855 = vpack.c.b16 %v1575, %v1567
        %v1856 = vpack.c.b16 %v1584, %v1576
        %v1857 = vpack.c.b16 %v1585, %v1577
        %v1858 = vpack.c.b16 %v1586, %v1578
        %v1859 = vpack.c.b16 %v1587, %v1579
        %v1860 = vpack.c.b16 %v1588, %v1580
        %v1861 = vpack.c.b16 %v1589, %v1581
        %v1862 = vpack.c.b16 %v1590, %v1582
        %v1863 = vpack.c.b16 %v1591, %v1583
        %v1864 = vpack.c.b16 %v1600, %v1592
        %v1865 = vpack.c.b16 %v1601, %v1593
        %v1866 = vpack.c.b16 %v1602, %v1594
        %v1867 = vpack.c.b16 %v1603, %v1595
        %v1868 = vpack.c.b16 %v1604, %v1596
        %v1869 = vpack.c.b16 %v1605, %v1597
        %v1870 = vpack.c.b16 %v1606, %v1598
        %v1871 = vpack.c.b16 %v1607, %v1599
        %v1872 = vpack.c.b16 %v1616, %v1608
        %v1873 = vpack.c.b16 %v1617, %v1609
        %v1874 = vpack.c.b16 %v1618, %v1610
        %v1875 = vpack.c.b16 %v1619, %v1611
        %v1876 = vpack.c.b16 %v1620, %v1612
        %v1877 = vpack.c.b16 %v1621, %v1613
        %v1878 = vpack.c.b16 %v1622, %v1614
        %v1879 = vpack.c.b16 %v1623, %v1615
        %v2264 = vunpack.c.l.b16 %v408
        %v2265 = vunpack.c.l.b16 %v409
        %v2266 = vunpack.c.l.b16 %v410
        %v2267 = vunpack.c.l.b16 %v411
        %v2268 = vunpack.c.l.b16 %v412
        %v2269 = vunpack.c.l.b16 %v413
        %v2270 = vunpack.c.l.b16 %v414
        %v2271 = vunpack.c.l.b16 %v415
        %v2272 = vunpack.c.l.b16 %v416
        %v2273 = vunpack.c.l.b16 %v417
        %v2274 = vunpack.c.l.b16 %v418
        %v2275 = vunpack.c.l.b16 %v419
        %v2276 = vunpack.c.l.b16 %v420
        %v2277 = vunpack.c.l.b16 %v421
        %v2278 = vunpack.c.l.b16 %v422
        %v2279 = vunpack.c.l.b16 %v423
        %v2280 = vunpack.c.l.b16 %v424
        %v2281 = vunpack.c.l.b16 %v425
        %v2282 = vunpack.c.l.b16 %v426
        %v2283 = vunpack.c.l.b16 %v427
        %v2284 = vunpack.c.l.b16 %v428
        %v2285 = vunpack.c.l.b16 %v429
        %v2286 = vunpack.c.l.b16 %v430
        %v2287 = vunpack.c.l.b16 %v431
        %v2288 = vunpack.c.l.b16 %v432
        %v2289 = vunpack.c.l.b16 %v433
        %v2290 = vunpack.c.l.b16 %v434
        %v2291 = vunpack.c.l.b16 %v435
        %v2292 = vunpack.c.l.b16 %v436
        %v2293 = vunpack.c.l.b16 %v437
        %v2294 = vunpack.c.l.b16 %v438
        %v2295 = vunpack.c.l.b16 %v439
        %v2296 = vunpack.c.l.b16 %v440
        %v2297 = vunpack.c.l.b16 %v441
        %v2298 = vunpack.c.l.b16 %v442
        %v2299 = vunpack.c.l.b16 %v443
        %v2300 = vunpack.c.l.b16 %v444
        %v2301 = vunpack.c.l.b16 %v445
        %v2302 = vunpack.c.l.b16 %v446
        %v2303 = vunpack.c.l.b16 %v447
        %v2304 = vunpack.c.l.b16 %v448
        %v2305 = vunpack.c.l.b16 %v449
        %v2306 = vunpack.c.l.b16 %v450
        %v2307 = vunpack.c.l.b16 %v451
        %v2308 = vunpack.c.l.b16 %v452
        %v2309 = vunpack.c.l.b16 %v453
        %v2310 = vunpack.c.l.b16 %v454
        %v2311 = vunpack.c.l.b16 %v455
        %v2312 = vunpack.c.l.b16 %v456
        %v2313 = vunpack.c.l.b16 %v457
        %v2314 = vunpack.c.l.b16 %v458
        %v2315 = vunpack.c.l.b16 %v459
        %v2316 = vunpack.c.l.b16 %v460
        %v2317 = vunpack.c.l.b16 %v461
        %v2318 = vunpack.c.l.b16 %v462
        %v2319 = vunpack.c.l.b16 %v463
        %v2320 = vunpack.c.l.b16 %v464
        %v2321 = vunpack.c.l.b16 %v465
        %v2322 = vunpack.c.l.b16 %v466
        %v2323 = vunpack.c.l.b16 %v467
        %v2324 = vunpack.c.l.b16 %v468
        %v2325 = vunpack.c.l.b16 %v469
        %v2326 = vunpack.c.l.b16 %v470
        %v2327 = vunpack.c.l.b16 %v471
        %v2328 = vunpack.c.l.b16 %v472
        %v2329 = vunpack.c.l.b16 %v473
        %v2330 = vunpack.c.l.b16 %v474
        %v2331 = vunpack.c.l.b16 %v475
        %v2332 = vunpack.c.l.b16 %v476
        %v2333 = vunpack.c.l.b16 %v477
        %v2334 = vunpack.c.l.b16 %v478
        %v2335 = vunpack.c.l.b16 %v479
        %v2336 = vunpack.c.l.b16 %v480
        %v2337 = vunpack.c.l.b16 %v481
        %v2338 = vunpack.c.l.b16 %v482
        %v2339 = vunpack.c.l.b16 %v483
        %v2340 = vunpack.c.l.b16 %v484
        %v2341 = vunpack.c.l.b16 %v485
        %v2342 = vunpack.c.l.b16 %v486
        %v2343 = vunpack.c.l.b16 %v487
        %v2344 = vunpack.c.l.b16 %v488
        %v2345 = vunpack.c.l.b16 %v489
        %v2346 = vunpack.c.l.b16 %v490
        %v2347 = vunpack.c.l.b16 %v491
        %v2348 = vunpack.c.l.b16 %v492
        %v2349 = vunpack.c.l.b16 %v493
        %v2350 = vunpack.c.l.b16 %v494
        %v2351 = vunpack.c.l.b16 %v495
        %v2352 = vunpack.c.l.b16 %v496
        %v2353 = vunpack.c.l.b16 %v497
        %v2354 = vunpack.c.l.b16 %v498
        %v2355 = vunpack.c.l.b16 %v499
        %v2356 = vunpack.c.l.b16 %v500
        %v2357 = vunpack.c.l.b16 %v501
        %v2358 = vunpack.c.l.b16 %v502
        %v2359 = vunpack.c.l.b16 %v503
        %v2360 = vunpack.c.l.b16 %v504
        %v2361 = vunpack.c.l.b16 %v505
        %v2362 = vunpack.c.l.b16 %v506
        %v2363 = vunpack.c.l.b16 %v507
        %v2364 = vunpack.c.l.b16 %v508
        %v2365 = vunpack.c.l.b16 %v509
        %v2366 = vunpack.c.l.b16 %v510
        %v2367 = vunpack.c.l.b16 %v511
        %v2368 = vunpack.c.l.b16 %v512
        %v2369 = vunpack.c.l.b16 %v513
        %v2370 = vunpack.c.l.b16 %v514
        %v2371 = vunpack.c.l.b16 %v515
        %v2372 = vunpack.c.l.b16 %v516
        %v2373 = vunpack.c.l.b16 %v517
        %v2374 = vunpack.c.l.b16 %v518
        %v2375 = vunpack.c.l.b16 %v519
        %v2376 = vunpack.c.l.b16 %v520
        %v2377 = vunpack.c.l.b16 %v521
        %v2378 = vunpack.c.l.b16 %v522
        %v2379 = vunpack.c.l.b16 %v523
        %v2380 = vunpack.c.l.b16 %v524
        %v2381 = vunpack.c.l.b16 %v525
        %v2382 = vunpack.c.l.b16 %v526
        %v2383 = vunpack.c.l.b16 %v527
        %v2384 = vunpack.c.l.b16 %v528
        %v2385 = vunpack.c.l.b16 %v529
        %v2386 = vunpack.c.l.b16 %v530
        %v2387 = vunpack.c.l.b16 %v531
        %v2388 = vunpack.c.l.b16 %v532
        %v2389 = vunpack.c.l.b16 %v533
        %v2390 = vunpack.c.l.b16 %v534
        %v2391 = vunpack.c.l.b16 %v535
        %v2392 = vpack.c.b16 %v2265, %v2264
        %v2393 = vpack.c.b16 %v2267, %v2266
        %v2394 = vpack.c.b16 %v2269, %v2268
        %v2395 = vpack.c.b16 %v2271, %v2270
        %v2396 = vpack.c.b16 %v2273, %v2272
        %v2397 = vpack.c.b16 %v2275, %v2274
        %v2398 = vpack.c.b16 %v2277, %v2276
        %v2399 = vpack.c.b16 %v2279, %v2278
        %v2400 = vpack.c.b16 %v2281, %v2280
        %v2401 = vpack.c.b16 %v2283, %v2282
        %v2402 = vpack.c.b16 %v2285, %v2284
        %v2403 = vpack.c.b16 %v2287, %v2286
        %v2404 = vpack.c.b16 %v2289, %v2288
        %v2405 = vpack.c.b16 %v2291, %v2290
        %v2406 = vpack.c.b16 %v2293, %v2292
        %v2407 = vpack.c.b16 %v2295, %v2294
        %v2408 = vpack.c.b16 %v2297, %v2296
        %v2409 = vpack.c.b16 %v2299, %v2298
        %v2410 = vpack.c.b16 %v2301, %v2300
        %v2411 = vpack.c.b16 %v2303, %v2302
        %v2412 = vpack.c.b16 %v2305, %v2304
        %v2413 = vpack.c.b16 %v2307, %v2306
        %v2414 = vpack.c.b16 %v2309, %v2308
        %v2415 = vpack.c.b16 %v2311, %v2310
        %v2416 = vpack.c.b16 %v2313, %v2312
        %v2417 = vpack.c.b16 %v2315, %v2314
        %v2418 = vpack.c.b16 %v2317, %v2316
        %v2419 = vpack.c.b16 %v2319, %v2318
        %v2420 = vpack.c.b16 %v2321, %v2320
        %v2421 = vpack.c.b16 %v2323, %v2322
        %v2422 = vpack.c.b16 %v2325, %v2324
        %v2423 = vpack.c.b16 %v2327, %v2326
        %v2424 = vpack.c.b16 %v2329, %v2328
        %v2425 = vpack.c.b16 %v2331, %v2330
        %v2426 = vpack.c.b16 %v2333, %v2332
        %v2427 = vpack.c.b16 %v2335, %v2334
        %v2428 = vpack.c.b16 %v2337, %v2336
        %v2429 = vpack.c.b16 %v2339, %v2338
        %v2430 = vpack.c.b16 %v2341, %v2340
        %v2431 = vpack.c.b16 %v2343, %v2342
        %v2432 = vpack.c.b16 %v2345, %v2344
        %v2433 = vpack.c.b16 %v2347, %v2346
        %v2434 = vpack.c.b16 %v2349, %v2348
        %v2435 = vpack.c.b16 %v2351, %v2350
        %v2436 = vpack.c.b16 %v2353, %v2352
        %v2437 = vpack.c.b16 %v2355, %v2354
        %v2438 = vpack.c.b16 %v2357, %v2356
        %v2439 = vpack.c.b16 %v2359, %v2358
        %v2440 = vpack.c.b16 %v2361, %v2360
        %v2441 = vpack.c.b16 %v2363, %v2362
        %v2442 = vpack.c.b16 %v2365, %v2364
        %v2443 = vpack.c.b16 %v2367, %v2366
        %v2444 = vpack.c.b16 %v2369, %v2368
        %v2445 = vpack.c.b16 %v2371, %v2370
        %v2446 = vpack.c.b16 %v2373, %v2372
        %v2447 = vpack.c.b16 %v2375, %v2374
        %v2448 = vpack.c.b16 %v2377, %v2376
        %v2449 = vpack.c.b16 %v2379, %v2378
        %v2450 = vpack.c.b16 %v2381, %v2380
        %v2451 = vpack.c.b16 %v2383, %v2382
        %v2452 = vpack.c.b16 %v2385, %v2384
        %v2453 = vpack.c.b16 %v2387, %v2386
        %v2454 = vpack.c.b16 %v2389, %v2388
        %v2455 = vpack.c.b16 %v2391, %v2390
        %2520 = vmatpush.bf16.msra.mxu0 %v2399
        %2521 = vmatpush.bf16.msra.mxu0 %v2398
        %2522 = vmatpush.bf16.msra.mxu0 %v2397
        %2523 = vmatpush.bf16.msra.mxu0 %v2396
        %2524 = vmatpush.bf16.msra.mxu0 %v2395
        %2525 = vmatpush.bf16.msra.mxu0 %v2394
        %2526 = vmatpush.bf16.msra.mxu0 %v2393
        %2527 = vmatpush.bf16.msra.mxu0 %v2392
        %2528 = vmatmul.bf16.gmra.mxu0 %v1624
        %v2529 = vpop.f32.mrf.mxu0
        %v2530 = vadd.f32 0.0, %v2529
        %v2531 = vpop.f32.mrf.mxu0
        %v2532 = vadd.f32 0.0, %v2531
        %2533 = vmatmul.bf16.gmra.mxu0 %v1632
        %v2534 = vpop.f32.mrf.mxu0
        %v2535 = vadd.f32 0.0, %v2534
        %v2536 = vpop.f32.mrf.mxu0
        %v2537 = vadd.f32 0.0, %v2536
        %2538 = vmatmul.bf16.gmra.mxu0 %v1640
        %v2539 = vpop.f32.mrf.mxu0
        %v2540 = vadd.f32 0.0, %v2539
        %v2541 = vpop.f32.mrf.mxu0
        %v2542 = vadd.f32 0.0, %v2541
        %2543 = vmatmul.bf16.gmra.mxu0 %v1648
        %v2544 = vpop.f32.mrf.mxu0
        %v2545 = vadd.f32 0.0, %v2544
        %v2546 = vpop.f32.mrf.mxu0
        %v2547 = vadd.f32 0.0, %v2546
        %2548 = vmatmul.bf16.gmra.mxu0 %v1656
        %v2549 = vpop.f32.mrf.mxu0
        %v2550 = vadd.f32 0.0, %v2549
        %v2551 = vpop.f32.mrf.mxu0
        %v2552 = vadd.f32 0.0, %v2551
        %2553 = vmatmul.bf16.gmra.mxu0 %v1664
        %v2554 = vpop.f32.mrf.mxu0
        %v2555 = vadd.f32 0.0, %v2554
        %v2556 = vpop.f32.mrf.mxu0
        %v2557 = vadd.f32 0.0, %v2556
        %2558 = vmatmul.bf16.gmra.mxu0 %v1672
        %v2559 = vpop.f32.mrf.mxu0
        %v2560 = vadd.f32 0.0, %v2559
        %v2561 = vpop.f32.mrf.mxu0
        %v2562 = vadd.f32 0.0, %v2561
        %2563 = vmatmul.bf16.gmra.mxu0 %v1680
        %v2564 = vpop.f32.mrf.mxu0
        %v2565 = vadd.f32 0.0, %v2564
        %v2566 = vpop.f32.mrf.mxu0
        %v2567 = vadd.f32 0.0, %v2566
        %2568 = vmatmul.bf16.gmra.mxu0 %v1688
        %v2569 = vpop.f32.mrf.mxu0
        %v2570 = vadd.f32 0.0, %v2569
        %v2571 = vpop.f32.mrf.mxu0
        %v2572 = vadd.f32 0.0, %v2571
        %2573 = vmatmul.bf16.gmra.mxu0 %v1696
        %v2574 = vpop.f32.mrf.mxu0
        %v2575 = vadd.f32 0.0, %v2574
        %v2576 = vpop.f32.mrf.mxu0
        %v2577 = vadd.f32 0.0, %v2576
        %2578 = vmatmul.bf16.gmra.mxu0 %v1704
        %v2579 = vpop.f32.mrf.mxu0
        %v2580 = vadd.f32 0.0, %v2579
        %v2581 = vpop.f32.mrf.mxu0
        %v2582 = vadd.f32 0.0, %v2581
        %2583 = vmatmul.bf16.gmra.mxu0 %v1712
        %v2584 = vpop.f32.mrf.mxu0
        %v2585 = vadd.f32 0.0, %v2584
        %v2586 = vpop.f32.mrf.mxu0
        %v2587 = vadd.f32 0.0, %v2586
        %2588 = vmatmul.bf16.gmra.mxu0 %v1720
        %v2589 = vpop.f32.mrf.mxu0
        %v2590 = vadd.f32 0.0, %v2589
        %v2591 = vpop.f32.mrf.mxu0
        %v2592 = vadd.f32 0.0, %v2591
        %2593 = vmatmul.bf16.gmra.mxu0 %v1728
        %v2594 = vpop.f32.mrf.mxu0
        %v2595 = vadd.f32 0.0, %v2594
        %v2596 = vpop.f32.mrf.mxu0
        %v2597 = vadd.f32 0.0, %v2596
        %2598 = vmatmul.bf16.gmra.mxu0 %v1736
        %v2599 = vpop.f32.mrf.mxu0
        %v2600 = vadd.f32 0.0, %v2599
        %v2601 = vpop.f32.mrf.mxu0
        %v2602 = vadd.f32 0.0, %v2601
        %2603 = vmatmul.bf16.gmra.mxu0 %v1744
        %v2604 = vpop.f32.mrf.mxu0
        %v2605 = vadd.f32 0.0, %v2604
        %v2606 = vpop.f32.mrf.mxu0
        %v2607 = vadd.f32 0.0, %v2606
        %2608 = vmatmul.bf16.gmra.mxu0 %v1752
        %v2609 = vpop.f32.mrf.mxu0
        %v2610 = vadd.f32 0.0, %v2609
        %v2611 = vpop.f32.mrf.mxu0
        %v2612 = vadd.f32 0.0, %v2611
        %2613 = vmatmul.bf16.gmra.mxu0 %v1760
        %v2614 = vpop.f32.mrf.mxu0
        %v2615 = vadd.f32 0.0, %v2614
        %v2616 = vpop.f32.mrf.mxu0
        %v2617 = vadd.f32 0.0, %v2616
        %2618 = vmatmul.bf16.gmra.mxu0 %v1768
        %v2619 = vpop.f32.mrf.mxu0
        %v2620 = vadd.f32 0.0, %v2619
        %v2621 = vpop.f32.mrf.mxu0
        %v2622 = vadd.f32 0.0, %v2621
        %2623 = vmatmul.bf16.gmra.mxu0 %v1776
        %v2624 = vpop.f32.mrf.mxu0
        %v2625 = vadd.f32 0.0, %v2624
        %v2626 = vpop.f32.mrf.mxu0
        %v2627 = vadd.f32 0.0, %v2626
        %2628 = vmatmul.bf16.gmra.mxu0 %v1784
        %v2629 = vpop.f32.mrf.mxu0
        %v2630 = vadd.f32 0.0, %v2629
        %v2631 = vpop.f32.mrf.mxu0
        %v2632 = vadd.f32 0.0, %v2631
        %2633 = vmatmul.bf16.gmra.mxu0 %v1792
        %v2634 = vpop.f32.mrf.mxu0
        %v2635 = vadd.f32 0.0, %v2634
        %v2636 = vpop.f32.mrf.mxu0
        %v2637 = vadd.f32 0.0, %v2636
        %2638 = vmatmul.bf16.gmra.mxu0 %v1800
        %v2639 = vpop.f32.mrf.mxu0
        %v2640 = vadd.f32 0.0, %v2639
        %v2641 = vpop.f32.mrf.mxu0
        %v2642 = vadd.f32 0.0, %v2641
        %2643 = vmatmul.bf16.gmra.mxu0 %v1808
        %v2644 = vpop.f32.mrf.mxu0
        %v2645 = vadd.f32 0.0, %v2644
        %v2646 = vpop.f32.mrf.mxu0
        %v2647 = vadd.f32 0.0, %v2646
        %2648 = vmatmul.bf16.gmra.mxu0 %v1816
        %v2649 = vpop.f32.mrf.mxu0
        %v2650 = vadd.f32 0.0, %v2649
        %v2651 = vpop.f32.mrf.mxu0
        %v2652 = vadd.f32 0.0, %v2651
        %2653 = vmatmul.bf16.gmra.mxu0 %v1824
        %v2654 = vpop.f32.mrf.mxu0
        %v2655 = vadd.f32 0.0, %v2654
        %v2656 = vpop.f32.mrf.mxu0
        %v2657 = vadd.f32 0.0, %v2656
        %2658 = vmatmul.bf16.gmra.mxu0 %v1832
        %v2659 = vpop.f32.mrf.mxu0
        %v2660 = vadd.f32 0.0, %v2659
        %v2661 = vpop.f32.mrf.mxu0
        %v2662 = vadd.f32 0.0, %v2661
        %2663 = vmatmul.bf16.gmra.mxu0 %v1840
        %v2664 = vpop.f32.mrf.mxu0
        %v2665 = vadd.f32 0.0, %v2664
        %v2666 = vpop.f32.mrf.mxu0
        %v2667 = vadd.f32 0.0, %v2666
        %2668 = vmatmul.bf16.gmra.mxu0 %v1848
        %v2669 = vpop.f32.mrf.mxu0
        %v2670 = vadd.f32 0.0, %v2669
        %v2671 = vpop.f32.mrf.mxu0
        %v2672 = vadd.f32 0.0, %v2671
        %2673 = vmatmul.bf16.gmra.mxu0 %v1856
        %v2674 = vpop.f32.mrf.mxu0
        %v2675 = vadd.f32 0.0, %v2674
        %v2676 = vpop.f32.mrf.mxu0
        %v2677 = vadd.f32 0.0, %v2676
        %2678 = vmatmul.bf16.gmra.mxu0 %v1864
        %v2679 = vpop.f32.mrf.mxu0
        %v2680 = vadd.f32 0.0, %v2679
        %v2681 = vpop.f32.mrf.mxu0
        %v2682 = vadd.f32 0.0, %v2681
        %2683 = vmatmul.bf16.gmra.mxu0 %v1872
        %v2684 = vpop.f32.mrf.mxu0
        %v2685 = vadd.f32 0.0, %v2684
        %v2686 = vpop.f32.mrf.mxu0
        %v2687 = vadd.f32 0.0, %v2686
        %2688 = vdwg.mxu0
        %2689 = vmatpush.bf16.msra.mxu0 %v2407
        %2690 = vmatpush.bf16.msra.mxu0 %v2406
        %2691 = vmatpush.bf16.msra.mxu0 %v2405
        %2692 = vmatpush.bf16.msra.mxu0 %v2404
        %2693 = vmatpush.bf16.msra.mxu0 %v2403
        %2694 = vmatpush.bf16.msra.mxu0 %v2402
        %2695 = vmatpush.bf16.msra.mxu0 %v2401
        %2696 = vmatpush.bf16.msra.mxu0 %v2400
        %2697 = vmatmul.bf16.gmra.mxu0 %v1625
        %v2698 = vpop.f32.mrf.mxu0
        %v2699 = vadd.f32 %v2530, %v2698
        %v2700 = vpop.f32.mrf.mxu0
        %v2701 = vadd.f32 %v2532, %v2700
        %2702 = vmatmul.bf16.gmra.mxu0 %v1633
        %v2703 = vpop.f32.mrf.mxu0
        %v2704 = vadd.f32 %v2535, %v2703
        %v2705 = vpop.f32.mrf.mxu0
        %v2706 = vadd.f32 %v2537, %v2705
        %2707 = vmatmul.bf16.gmra.mxu0 %v1641
        %v2708 = vpop.f32.mrf.mxu0
        %v2709 = vadd.f32 %v2540, %v2708
        %v2710 = vpop.f32.mrf.mxu0
        %v2711 = vadd.f32 %v2542, %v2710
        %2712 = vmatmul.bf16.gmra.mxu0 %v1649
        %v2713 = vpop.f32.mrf.mxu0
        %v2714 = vadd.f32 %v2545, %v2713
        %v2715 = vpop.f32.mrf.mxu0
        %v2716 = vadd.f32 %v2547, %v2715
        %2717 = vmatmul.bf16.gmra.mxu0 %v1657
        %v2718 = vpop.f32.mrf.mxu0
        %v2719 = vadd.f32 %v2550, %v2718
        %v2720 = vpop.f32.mrf.mxu0
        %v2721 = vadd.f32 %v2552, %v2720
        %2722 = vmatmul.bf16.gmra.mxu0 %v1665
        %v2723 = vpop.f32.mrf.mxu0
        %v2724 = vadd.f32 %v2555, %v2723
        %v2725 = vpop.f32.mrf.mxu0
        %v2726 = vadd.f32 %v2557, %v2725
        %2727 = vmatmul.bf16.gmra.mxu0 %v1673
        %v2728 = vpop.f32.mrf.mxu0
        %v2729 = vadd.f32 %v2560, %v2728
        %v2730 = vpop.f32.mrf.mxu0
        %v2731 = vadd.f32 %v2562, %v2730
        %2732 = vmatmul.bf16.gmra.mxu0 %v1681
        %v2733 = vpop.f32.mrf.mxu0
        %v2734 = vadd.f32 %v2565, %v2733
        %v2735 = vpop.f32.mrf.mxu0
        %v2736 = vadd.f32 %v2567, %v2735
        %2737 = vmatmul.bf16.gmra.mxu0 %v1689
        %v2738 = vpop.f32.mrf.mxu0
        %v2739 = vadd.f32 %v2570, %v2738
        %v2740 = vpop.f32.mrf.mxu0
        %v2741 = vadd.f32 %v2572, %v2740
        %2742 = vmatmul.bf16.gmra.mxu0 %v1697
        %v2743 = vpop.f32.mrf.mxu0
        %v2744 = vadd.f32 %v2575, %v2743
        %v2745 = vpop.f32.mrf.mxu0
        %v2746 = vadd.f32 %v2577, %v2745
        %2747 = vmatmul.bf16.gmra.mxu0 %v1705
        %v2748 = vpop.f32.mrf.mxu0
        %v2749 = vadd.f32 %v2580, %v2748
        %v2750 = vpop.f32.mrf.mxu0
        %v2751 = vadd.f32 %v2582, %v2750
        %2752 = vmatmul.bf16.gmra.mxu0 %v1713
        %v2753 = vpop.f32.mrf.mxu0
        %v2754 = vadd.f32 %v2585, %v2753
        %v2755 = vpop.f32.mrf.mxu0
        %v2756 = vadd.f32 %v2587, %v2755
        %2757 = vmatmul.bf16.gmra.mxu0 %v1721
        %v2758 = vpop.f32.mrf.mxu0
        %v2759 = vadd.f32 %v2590, %v2758
        %v2760 = vpop.f32.mrf.mxu0
        %v2761 = vadd.f32 %v2592, %v2760
        %2762 = vmatmul.bf16.gmra.mxu0 %v1729
        %v2763 = vpop.f32.mrf.mxu0
        %v2764 = vadd.f32 %v2595, %v2763
        %v2765 = vpop.f32.mrf.mxu0
        %v2766 = vadd.f32 %v2597, %v2765
        %2767 = vmatmul.bf16.gmra.mxu0 %v1737
        %v2768 = vpop.f32.mrf.mxu0
        %v2769 = vadd.f32 %v2600, %v2768
        %v2770 = vpop.f32.mrf.mxu0
        %v2771 = vadd.f32 %v2602, %v2770
        %2772 = vmatmul.bf16.gmra.mxu0 %v1745
        %v2773 = vpop.f32.mrf.mxu0
        %v2774 = vadd.f32 %v2605, %v2773
        %v2775 = vpop.f32.mrf.mxu0
        %v2776 = vadd.f32 %v2607, %v2775
        %2777 = vmatmul.bf16.gmra.mxu0 %v1753
        %v2778 = vpop.f32.mrf.mxu0
        %v2779 = vadd.f32 %v2610, %v2778
        %v2780 = vpop.f32.mrf.mxu0
        %v2781 = vadd.f32 %v2612, %v2780
        %2782 = vmatmul.bf16.gmra.mxu0 %v1761
        %v2783 = vpop.f32.mrf.mxu0
        %v2784 = vadd.f32 %v2615, %v2783
        %v2785 = vpop.f32.mrf.mxu0
        %v2786 = vadd.f32 %v2617, %v2785
        %2787 = vmatmul.bf16.gmra.mxu0 %v1769
        %v2788 = vpop.f32.mrf.mxu0
        %v2789 = vadd.f32 %v2620, %v2788
        %v2790 = vpop.f32.mrf.mxu0
        %v2791 = vadd.f32 %v2622, %v2790
        %2792 = vmatmul.bf16.gmra.mxu0 %v1777
        %v2793 = vpop.f32.mrf.mxu0
        %v2794 = vadd.f32 %v2625, %v2793
        %v2795 = vpop.f32.mrf.mxu0
        %v2796 = vadd.f32 %v2627, %v2795
        %2797 = vmatmul.bf16.gmra.mxu0 %v1785
        %v2798 = vpop.f32.mrf.mxu0
        %v2799 = vadd.f32 %v2630, %v2798
        %v2800 = vpop.f32.mrf.mxu0
        %v2801 = vadd.f32 %v2632, %v2800
        %2802 = vmatmul.bf16.gmra.mxu0 %v1793
        %v2803 = vpop.f32.mrf.mxu0
        %v2804 = vadd.f32 %v2635, %v2803
        %v2805 = vpop.f32.mrf.mxu0
        %v2806 = vadd.f32 %v2637, %v2805
        %2807 = vmatmul.bf16.gmra.mxu0 %v1801
        %v2808 = vpop.f32.mrf.mxu0
        %v2809 = vadd.f32 %v2640, %v2808
        %v2810 = vpop.f32.mrf.mxu0
        %v2811 = vadd.f32 %v2642, %v2810
        %2812 = vmatmul.bf16.gmra.mxu0 %v1809
        %v2813 = vpop.f32.mrf.mxu0
        %v2814 = vadd.f32 %v2645, %v2813
        %v2815 = vpop.f32.mrf.mxu0
        %v2816 = vadd.f32 %v2647, %v2815
        %2817 = vmatmul.bf16.gmra.mxu0 %v1817
        %v2818 = vpop.f32.mrf.mxu0
        %v2819 = vadd.f32 %v2650, %v2818
        %v2820 = vpop.f32.mrf.mxu0
        %v2821 = vadd.f32 %v2652, %v2820
        %2822 = vmatmul.bf16.gmra.mxu0 %v1825
        %v2823 = vpop.f32.mrf.mxu0
        %v2824 = vadd.f32 %v2655, %v2823
        %v2825 = vpop.f32.mrf.mxu0
        %v2826 = vadd.f32 %v2657, %v2825
        %2827 = vmatmul.bf16.gmra.mxu0 %v1833
        %v2828 = vpop.f32.mrf.mxu0
        %v2829 = vadd.f32 %v2660, %v2828
        %v2830 = vpop.f32.mrf.mxu0
        %v2831 = vadd.f32 %v2662, %v2830
        %2832 = vmatmul.bf16.gmra.mxu0 %v1841
        %v2833 = vpop.f32.mrf.mxu0
        %v2834 = vadd.f32 %v2665, %v2833
        %v2835 = vpop.f32.mrf.mxu0
        %v2836 = vadd.f32 %v2667, %v2835
        %2837 = vmatmul.bf16.gmra.mxu0 %v1849
        %v2838 = vpop.f32.mrf.mxu0
        %v2839 = vadd.f32 %v2670, %v2838
        %v2840 = vpop.f32.mrf.mxu0
        %v2841 = vadd.f32 %v2672, %v2840
        %2842 = vmatmul.bf16.gmra.mxu0 %v1857
        %v2843 = vpop.f32.mrf.mxu0
        %v2844 = vadd.f32 %v2675, %v2843
        %v2845 = vpop.f32.mrf.mxu0
        %v2846 = vadd.f32 %v2677, %v2845
        %2847 = vmatmul.bf16.gmra.mxu0 %v1865
        %v2848 = vpop.f32.mrf.mxu0
        %v2849 = vadd.f32 %v2680, %v2848
        %v2850 = vpop.f32.mrf.mxu0
        %v2851 = vadd.f32 %v2682, %v2850
        %2852 = vmatmul.bf16.gmra.mxu0 %v1873
        %v2853 = vpop.f32.mrf.mxu0
        %v2854 = vadd.f32 %v2685, %v2853
        %v2855 = vpop.f32.mrf.mxu0
        %v2856 = vadd.f32 %v2687, %v2855
        %2857 = vdwg.mxu0
        %2858 = vmatpush.bf16.msra.mxu0 %v2415
        %2859 = vmatpush.bf16.msra.mxu0 %v2414
        %2860 = vmatpush.bf16.msra.mxu0 %v2413
        %2861 = vmatpush.bf16.msra.mxu0 %v2412
        %2862 = vmatpush.bf16.msra.mxu0 %v2411
        %2863 = vmatpush.bf16.msra.mxu0 %v2410
        %2864 = vmatpush.bf16.msra.mxu0 %v2409
        %2865 = vmatpush.bf16.msra.mxu0 %v2408
        %2866 = vmatmul.bf16.gmra.mxu0 %v1626
        %v2867 = vpop.f32.mrf.mxu0
        %v2868 = vadd.f32 %v2699, %v2867
        %v2869 = vpop.f32.mrf.mxu0
        %v2870 = vadd.f32 %v2701, %v2869
        %2871 = vmatmul.bf16.gmra.mxu0 %v1634
        %v2872 = vpop.f32.mrf.mxu0
        %v2873 = vadd.f32 %v2704, %v2872
        %v2874 = vpop.f32.mrf.mxu0
        %v2875 = vadd.f32 %v2706, %v2874
        %2876 = vmatmul.bf16.gmra.mxu0 %v1642
        %v2877 = vpop.f32.mrf.mxu0
        %v2878 = vadd.f32 %v2709, %v2877
        %v2879 = vpop.f32.mrf.mxu0
        %v2880 = vadd.f32 %v2711, %v2879
        %2881 = vmatmul.bf16.gmra.mxu0 %v1650
        %v2882 = vpop.f32.mrf.mxu0
        %v2883 = vadd.f32 %v2714, %v2882
        %v2884 = vpop.f32.mrf.mxu0
        %v2885 = vadd.f32 %v2716, %v2884
        %2886 = vmatmul.bf16.gmra.mxu0 %v1658
        %v2887 = vpop.f32.mrf.mxu0
        %v2888 = vadd.f32 %v2719, %v2887
        %v2889 = vpop.f32.mrf.mxu0
        %v2890 = vadd.f32 %v2721, %v2889
        %2891 = vmatmul.bf16.gmra.mxu0 %v1666
        %v2892 = vpop.f32.mrf.mxu0
        %v2893 = vadd.f32 %v2724, %v2892
        %v2894 = vpop.f32.mrf.mxu0
        %v2895 = vadd.f32 %v2726, %v2894
        %2896 = vmatmul.bf16.gmra.mxu0 %v1674
        %v2897 = vpop.f32.mrf.mxu0
        %v2898 = vadd.f32 %v2729, %v2897
        %v2899 = vpop.f32.mrf.mxu0
        %v2900 = vadd.f32 %v2731, %v2899
        %2901 = vmatmul.bf16.gmra.mxu0 %v1682
        %v2902 = vpop.f32.mrf.mxu0
        %v2903 = vadd.f32 %v2734, %v2902
        %v2904 = vpop.f32.mrf.mxu0
        %v2905 = vadd.f32 %v2736, %v2904
        %2906 = vmatmul.bf16.gmra.mxu0 %v1690
        %v2907 = vpop.f32.mrf.mxu0
        %v2908 = vadd.f32 %v2739, %v2907
        %v2909 = vpop.f32.mrf.mxu0
        %v2910 = vadd.f32 %v2741, %v2909
        %2911 = vmatmul.bf16.gmra.mxu0 %v1698
        %v2912 = vpop.f32.mrf.mxu0
        %v2913 = vadd.f32 %v2744, %v2912
        %v2914 = vpop.f32.mrf.mxu0
        %v2915 = vadd.f32 %v2746, %v2914
        %2916 = vmatmul.bf16.gmra.mxu0 %v1706
        %v2917 = vpop.f32.mrf.mxu0
        %v2918 = vadd.f32 %v2749, %v2917
        %v2919 = vpop.f32.mrf.mxu0
        %v2920 = vadd.f32 %v2751, %v2919
        %2921 = vmatmul.bf16.gmra.mxu0 %v1714
        %v2922 = vpop.f32.mrf.mxu0
        %v2923 = vadd.f32 %v2754, %v2922
        %v2924 = vpop.f32.mrf.mxu0
        %v2925 = vadd.f32 %v2756, %v2924
        %2926 = vmatmul.bf16.gmra.mxu0 %v1722
        %v2927 = vpop.f32.mrf.mxu0
        %v2928 = vadd.f32 %v2759, %v2927
        %v2929 = vpop.f32.mrf.mxu0
        %v2930 = vadd.f32 %v2761, %v2929
        %2931 = vmatmul.bf16.gmra.mxu0 %v1730
        %v2932 = vpop.f32.mrf.mxu0
        %v2933 = vadd.f32 %v2764, %v2932
        %v2934 = vpop.f32.mrf.mxu0
        %v2935 = vadd.f32 %v2766, %v2934
        %2936 = vmatmul.bf16.gmra.mxu0 %v1738
        %v2937 = vpop.f32.mrf.mxu0
        %v2938 = vadd.f32 %v2769, %v2937
        %v2939 = vpop.f32.mrf.mxu0
        %v2940 = vadd.f32 %v2771, %v2939
        %2941 = vmatmul.bf16.gmra.mxu0 %v1746
        %v2942 = vpop.f32.mrf.mxu0
        %v2943 = vadd.f32 %v2774, %v2942
        %v2944 = vpop.f32.mrf.mxu0
        %v2945 = vadd.f32 %v2776, %v2944
        %2946 = vmatmul.bf16.gmra.mxu0 %v1754
        %v2947 = vpop.f32.mrf.mxu0
        %v2948 = vadd.f32 %v2779, %v2947
        %v2949 = vpop.f32.mrf.mxu0
        %v2950 = vadd.f32 %v2781, %v2949
        %2951 = vmatmul.bf16.gmra.mxu0 %v1762
        %v2952 = vpop.f32.mrf.mxu0
        %v2953 = vadd.f32 %v2784, %v2952
        %v2954 = vpop.f32.mrf.mxu0
        %v2955 = vadd.f32 %v2786, %v2954
        %2956 = vmatmul.bf16.gmra.mxu0 %v1770
        %v2957 = vpop.f32.mrf.mxu0
        %v2958 = vadd.f32 %v2789, %v2957
        %v2959 = vpop.f32.mrf.mxu0
        %v2960 = vadd.f32 %v2791, %v2959
        %2961 = vmatmul.bf16.gmra.mxu0 %v1778
        %v2962 = vpop.f32.mrf.mxu0
        %v2963 = vadd.f32 %v2794, %v2962
        %v2964 = vpop.f32.mrf.mxu0
        %v2965 = vadd.f32 %v2796, %v2964
        %2966 = vmatmul.bf16.gmra.mxu0 %v1786
        %v2967 = vpop.f32.mrf.mxu0
        %v2968 = vadd.f32 %v2799, %v2967
        %v2969 = vpop.f32.mrf.mxu0
        %v2970 = vadd.f32 %v2801, %v2969
        %2971 = vmatmul.bf16.gmra.mxu0 %v1794
        %v2972 = vpop.f32.mrf.mxu0
        %v2973 = vadd.f32 %v2804, %v2972
        %v2974 = vpop.f32.mrf.mxu0
        %v2975 = vadd.f32 %v2806, %v2974
        %2976 = vmatmul.bf16.gmra.mxu0 %v1802
        %v2977 = vpop.f32.mrf.mxu0
        %v2978 = vadd.f32 %v2809, %v2977
        %v2979 = vpop.f32.mrf.mxu0
        %v2980 = vadd.f32 %v2811, %v2979
        %2981 = vmatmul.bf16.gmra.mxu0 %v1810
        %v2982 = vpop.f32.mrf.mxu0
        %v2983 = vadd.f32 %v2814, %v2982
        %v2984 = vpop.f32.mrf.mxu0
        %v2985 = vadd.f32 %v2816, %v2984
        %2986 = vmatmul.bf16.gmra.mxu0 %v1818
        %v2987 = vpop.f32.mrf.mxu0
        %v2988 = vadd.f32 %v2819, %v2987
        %v2989 = vpop.f32.mrf.mxu0
        %v2990 = vadd.f32 %v2821, %v2989
        %2991 = vmatmul.bf16.gmra.mxu0 %v1826
        %v2992 = vpop.f32.mrf.mxu0
        %v2993 = vadd.f32 %v2824, %v2992
        %v2994 = vpop.f32.mrf.mxu0
        %v2995 = vadd.f32 %v2826, %v2994
        %2996 = vmatmul.bf16.gmra.mxu0 %v1834
        %v2997 = vpop.f32.mrf.mxu0
        %v2998 = vadd.f32 %v2829, %v2997
        %v2999 = vpop.f32.mrf.mxu0
        %v3000 = vadd.f32 %v2831, %v2999
        %3001 = vmatmul.bf16.gmra.mxu0 %v1842
        %v3002 = vpop.f32.mrf.mxu0
        %v3003 = vadd.f32 %v2834, %v3002
        %v3004 = vpop.f32.mrf.mxu0
        %v3005 = vadd.f32 %v2836, %v3004
        %3006 = vmatmul.bf16.gmra.mxu0 %v1850
        %v3007 = vpop.f32.mrf.mxu0
        %v3008 = vadd.f32 %v2839, %v3007
        %v3009 = vpop.f32.mrf.mxu0
        %v3010 = vadd.f32 %v2841, %v3009
        %3011 = vmatmul.bf16.gmra.mxu0 %v1858
        %v3012 = vpop.f32.mrf.mxu0
        %v3013 = vadd.f32 %v2844, %v3012
        %v3014 = vpop.f32.mrf.mxu0
        %v3015 = vadd.f32 %v2846, %v3014
        %3016 = vmatmul.bf16.gmra.mxu0 %v1866
        %v3017 = vpop.f32.mrf.mxu0
        %v3018 = vadd.f32 %v2849, %v3017
        %v3019 = vpop.f32.mrf.mxu0
        %v3020 = vadd.f32 %v2851, %v3019
        %3021 = vmatmul.bf16.gmra.mxu0 %v1874
        %v3022 = vpop.f32.mrf.mxu0
        %v3023 = vadd.f32 %v2854, %v3022
        %v3024 = vpop.f32.mrf.mxu0
        %v3025 = vadd.f32 %v2856, %v3024
        %3026 = vdwg.mxu0
        %3027 = vmatpush.bf16.msra.mxu0 %v2423
        %3028 = vmatpush.bf16.msra.mxu0 %v2422
        %3029 = vmatpush.bf16.msra.mxu0 %v2421
        %3030 = vmatpush.bf16.msra.mxu0 %v2420
        %3031 = vmatpush.bf16.msra.mxu0 %v2419
        %3032 = vmatpush.bf16.msra.mxu0 %v2418
        %3033 = vmatpush.bf16.msra.mxu0 %v2417
        %3034 = vmatpush.bf16.msra.mxu0 %v2416
        %3035 = vmatmul.bf16.gmra.mxu0 %v1627
        %v3036 = vpop.f32.mrf.mxu0
        %v3037 = vadd.f32 %v2868, %v3036
        %v3038 = vpop.f32.mrf.mxu0
        %v3039 = vadd.f32 %v2870, %v3038
        %3040 = vmatmul.bf16.gmra.mxu0 %v1635
        %v3041 = vpop.f32.mrf.mxu0
        %v3042 = vadd.f32 %v2873, %v3041
        %v3043 = vpop.f32.mrf.mxu0
        %v3044 = vadd.f32 %v2875, %v3043
        %3045 = vmatmul.bf16.gmra.mxu0 %v1643
        %v3046 = vpop.f32.mrf.mxu0
        %v3047 = vadd.f32 %v2878, %v3046
        %v3048 = vpop.f32.mrf.mxu0
        %v3049 = vadd.f32 %v2880, %v3048
        %3050 = vmatmul.bf16.gmra.mxu0 %v1651
        %v3051 = vpop.f32.mrf.mxu0
        %v3052 = vadd.f32 %v2883, %v3051
        %v3053 = vpop.f32.mrf.mxu0
        %v3054 = vadd.f32 %v2885, %v3053
        %3055 = vmatmul.bf16.gmra.mxu0 %v1659
        %v3056 = vpop.f32.mrf.mxu0
        %v3057 = vadd.f32 %v2888, %v3056
        %v3058 = vpop.f32.mrf.mxu0
        %v3059 = vadd.f32 %v2890, %v3058
        %3060 = vmatmul.bf16.gmra.mxu0 %v1667
        %v3061 = vpop.f32.mrf.mxu0
        %v3062 = vadd.f32 %v2893, %v3061
        %v3063 = vpop.f32.mrf.mxu0
        %v3064 = vadd.f32 %v2895, %v3063
        %3065 = vmatmul.bf16.gmra.mxu0 %v1675
        %v3066 = vpop.f32.mrf.mxu0
        %v3067 = vadd.f32 %v2898, %v3066
        %v3068 = vpop.f32.mrf.mxu0
        %v3069 = vadd.f32 %v2900, %v3068
        %3070 = vmatmul.bf16.gmra.mxu0 %v1683
        %v3071 = vpop.f32.mrf.mxu0
        %v3072 = vadd.f32 %v2903, %v3071
        %v3073 = vpop.f32.mrf.mxu0
        %v3074 = vadd.f32 %v2905, %v3073
        %3075 = vmatmul.bf16.gmra.mxu0 %v1691
        %v3076 = vpop.f32.mrf.mxu0
        %v3077 = vadd.f32 %v2908, %v3076
        %v3078 = vpop.f32.mrf.mxu0
        %v3079 = vadd.f32 %v2910, %v3078
        %3080 = vmatmul.bf16.gmra.mxu0 %v1699
        %v3081 = vpop.f32.mrf.mxu0
        %v3082 = vadd.f32 %v2913, %v3081
        %v3083 = vpop.f32.mrf.mxu0
        %v3084 = vadd.f32 %v2915, %v3083
        %3085 = vmatmul.bf16.gmra.mxu0 %v1707
        %v3086 = vpop.f32.mrf.mxu0
        %v3087 = vadd.f32 %v2918, %v3086
        %v3088 = vpop.f32.mrf.mxu0
        %v3089 = vadd.f32 %v2920, %v3088
        %3090 = vmatmul.bf16.gmra.mxu0 %v1715
        %v3091 = vpop.f32.mrf.mxu0
        %v3092 = vadd.f32 %v2923, %v3091
        %v3093 = vpop.f32.mrf.mxu0
        %v3094 = vadd.f32 %v2925, %v3093
        %3095 = vmatmul.bf16.gmra.mxu0 %v1723
        %v3096 = vpop.f32.mrf.mxu0
        %v3097 = vadd.f32 %v2928, %v3096
        %v3098 = vpop.f32.mrf.mxu0
        %v3099 = vadd.f32 %v2930, %v3098
        %3100 = vmatmul.bf16.gmra.mxu0 %v1731
        %v3101 = vpop.f32.mrf.mxu0
        %v3102 = vadd.f32 %v2933, %v3101
        %v3103 = vpop.f32.mrf.mxu0
        %v3104 = vadd.f32 %v2935, %v3103
        %3105 = vmatmul.bf16.gmra.mxu0 %v1739
        %v3106 = vpop.f32.mrf.mxu0
        %v3107 = vadd.f32 %v2938, %v3106
        %v3108 = vpop.f32.mrf.mxu0
        %v3109 = vadd.f32 %v2940, %v3108
        %3110 = vmatmul.bf16.gmra.mxu0 %v1747
        %v3111 = vpop.f32.mrf.mxu0
        %v3112 = vadd.f32 %v2943, %v3111
        %v3113 = vpop.f32.mrf.mxu0
        %v3114 = vadd.f32 %v2945, %v3113
        %3115 = vmatmul.bf16.gmra.mxu0 %v1755
        %v3116 = vpop.f32.mrf.mxu0
        %v3117 = vadd.f32 %v2948, %v3116
        %v3118 = vpop.f32.mrf.mxu0
        %v3119 = vadd.f32 %v2950, %v3118
        %3120 = vmatmul.bf16.gmra.mxu0 %v1763
        %v3121 = vpop.f32.mrf.mxu0
        %v3122 = vadd.f32 %v2953, %v3121
        %v3123 = vpop.f32.mrf.mxu0
        %v3124 = vadd.f32 %v2955, %v3123
        %3125 = vmatmul.bf16.gmra.mxu0 %v1771
        %v3126 = vpop.f32.mrf.mxu0
        %v3127 = vadd.f32 %v2958, %v3126
        %v3128 = vpop.f32.mrf.mxu0
        %v3129 = vadd.f32 %v2960, %v3128
        %3130 = vmatmul.bf16.gmra.mxu0 %v1779
        %v3131 = vpop.f32.mrf.mxu0
        %v3132 = vadd.f32 %v2963, %v3131
        %v3133 = vpop.f32.mrf.mxu0
        %v3134 = vadd.f32 %v2965, %v3133
        %3135 = vmatmul.bf16.gmra.mxu0 %v1787
        %v3136 = vpop.f32.mrf.mxu0
        %v3137 = vadd.f32 %v2968, %v3136
        %v3138 = vpop.f32.mrf.mxu0
        %v3139 = vadd.f32 %v2970, %v3138
        %3140 = vmatmul.bf16.gmra.mxu0 %v1795
        %v3141 = vpop.f32.mrf.mxu0
        %v3142 = vadd.f32 %v2973, %v3141
        %v3143 = vpop.f32.mrf.mxu0
        %v3144 = vadd.f32 %v2975, %v3143
        %3145 = vmatmul.bf16.gmra.mxu0 %v1803
        %v3146 = vpop.f32.mrf.mxu0
        %v3147 = vadd.f32 %v2978, %v3146
        %v3148 = vpop.f32.mrf.mxu0
        %v3149 = vadd.f32 %v2980, %v3148
        %3150 = vmatmul.bf16.gmra.mxu0 %v1811
        %v3151 = vpop.f32.mrf.mxu0
        %v3152 = vadd.f32 %v2983, %v3151
        %v3153 = vpop.f32.mrf.mxu0
        %v3154 = vadd.f32 %v2985, %v3153
        %3155 = vmatmul.bf16.gmra.mxu0 %v1819
        %v3156 = vpop.f32.mrf.mxu0
        %v3157 = vadd.f32 %v2988, %v3156
        %v3158 = vpop.f32.mrf.mxu0
        %v3159 = vadd.f32 %v2990, %v3158
        %3160 = vmatmul.bf16.gmra.mxu0 %v1827
        %v3161 = vpop.f32.mrf.mxu0
        %v3162 = vadd.f32 %v2993, %v3161
        %v3163 = vpop.f32.mrf.mxu0
        %v3164 = vadd.f32 %v2995, %v3163
        %3165 = vmatmul.bf16.gmra.mxu0 %v1835
        %v3166 = vpop.f32.mrf.mxu0
        %v3167 = vadd.f32 %v2998, %v3166
        %v3168 = vpop.f32.mrf.mxu0
        %v3169 = vadd.f32 %v3000, %v3168
        %3170 = vmatmul.bf16.gmra.mxu0 %v1843
        %v3171 = vpop.f32.mrf.mxu0
        %v3172 = vadd.f32 %v3003, %v3171
        %v3173 = vpop.f32.mrf.mxu0
        %v3174 = vadd.f32 %v3005, %v3173
        %3175 = vmatmul.bf16.gmra.mxu0 %v1851
        %v3176 = vpop.f32.mrf.mxu0
        %v3177 = vadd.f32 %v3008, %v3176
        %v3178 = vpop.f32.mrf.mxu0
        %v3179 = vadd.f32 %v3010, %v3178
        %3180 = vmatmul.bf16.gmra.mxu0 %v1859
        %v3181 = vpop.f32.mrf.mxu0
        %v3182 = vadd.f32 %v3013, %v3181
        %v3183 = vpop.f32.mrf.mxu0
        %v3184 = vadd.f32 %v3015, %v3183
        %3185 = vmatmul.bf16.gmra.mxu0 %v1867
        %v3186 = vpop.f32.mrf.mxu0
        %v3187 = vadd.f32 %v3018, %v3186
        %v3188 = vpop.f32.mrf.mxu0
        %v3189 = vadd.f32 %v3020, %v3188
        %3190 = vmatmul.bf16.gmra.mxu0 %v1875
        %v3191 = vpop.f32.mrf.mxu0
        %v3192 = vadd.f32 %v3023, %v3191
        %v3193 = vpop.f32.mrf.mxu0
        %v3194 = vadd.f32 %v3025, %v3193
        %3195 = vdwg.mxu0
        %3196 = vmatpush.bf16.msra.mxu0 %v2431
        %3197 = vmatpush.bf16.msra.mxu0 %v2430
        %3198 = vmatpush.bf16.msra.mxu0 %v2429
        %3199 = vmatpush.bf16.msra.mxu0 %v2428
        %3200 = vmatpush.bf16.msra.mxu0 %v2427
        %3201 = vmatpush.bf16.msra.mxu0 %v2426
        %3202 = vmatpush.bf16.msra.mxu0 %v2425
        %3203 = vmatpush.bf16.msra.mxu0 %v2424
        %3204 = vmatmul.bf16.gmra.mxu0 %v1628
        %v3205 = vpop.f32.mrf.mxu0
        %v3206 = vadd.f32 %v3037, %v3205
        %v3207 = vpop.f32.mrf.mxu0
        %v3208 = vadd.f32 %v3039, %v3207
        %3209 = vmatmul.bf16.gmra.mxu0 %v1636
        %v3210 = vpop.f32.mrf.mxu0
        %v3211 = vadd.f32 %v3042, %v3210
        %v3212 = vpop.f32.mrf.mxu0
        %v3213 = vadd.f32 %v3044, %v3212
        %3214 = vmatmul.bf16.gmra.mxu0 %v1644
        %v3215 = vpop.f32.mrf.mxu0
        %v3216 = vadd.f32 %v3047, %v3215
        %v3217 = vpop.f32.mrf.mxu0
        %v3218 = vadd.f32 %v3049, %v3217
        %3219 = vmatmul.bf16.gmra.mxu0 %v1652
        %v3220 = vpop.f32.mrf.mxu0
        %v3221 = vadd.f32 %v3052, %v3220
        %v3222 = vpop.f32.mrf.mxu0
        %v3223 = vadd.f32 %v3054, %v3222
        %3224 = vmatmul.bf16.gmra.mxu0 %v1660
        %v3225 = vpop.f32.mrf.mxu0
        %v3226 = vadd.f32 %v3057, %v3225
        %v3227 = vpop.f32.mrf.mxu0
        %v3228 = vadd.f32 %v3059, %v3227
        %3229 = vmatmul.bf16.gmra.mxu0 %v1668
        %v3230 = vpop.f32.mrf.mxu0
        %v3231 = vadd.f32 %v3062, %v3230
        %v3232 = vpop.f32.mrf.mxu0
        %v3233 = vadd.f32 %v3064, %v3232
        %3234 = vmatmul.bf16.gmra.mxu0 %v1676
        %v3235 = vpop.f32.mrf.mxu0
        %v3236 = vadd.f32 %v3067, %v3235
        %v3237 = vpop.f32.mrf.mxu0
        %v3238 = vadd.f32 %v3069, %v3237
        %3239 = vmatmul.bf16.gmra.mxu0 %v1684
        %v3240 = vpop.f32.mrf.mxu0
        %v3241 = vadd.f32 %v3072, %v3240
        %v3242 = vpop.f32.mrf.mxu0
        %v3243 = vadd.f32 %v3074, %v3242
        %3244 = vmatmul.bf16.gmra.mxu0 %v1692
        %v3245 = vpop.f32.mrf.mxu0
        %v3246 = vadd.f32 %v3077, %v3245
        %v3247 = vpop.f32.mrf.mxu0
        %v3248 = vadd.f32 %v3079, %v3247
        %3249 = vmatmul.bf16.gmra.mxu0 %v1700
        %v3250 = vpop.f32.mrf.mxu0
        %v3251 = vadd.f32 %v3082, %v3250
        %v3252 = vpop.f32.mrf.mxu0
        %v3253 = vadd.f32 %v3084, %v3252
        %3254 = vmatmul.bf16.gmra.mxu0 %v1708
        %v3255 = vpop.f32.mrf.mxu0
        %v3256 = vadd.f32 %v3087, %v3255
        %v3257 = vpop.f32.mrf.mxu0
        %v3258 = vadd.f32 %v3089, %v3257
        %3259 = vmatmul.bf16.gmra.mxu0 %v1716
        %v3260 = vpop.f32.mrf.mxu0
        %v3261 = vadd.f32 %v3092, %v3260
        %v3262 = vpop.f32.mrf.mxu0
        %v3263 = vadd.f32 %v3094, %v3262
        %3264 = vmatmul.bf16.gmra.mxu0 %v1724
        %v3265 = vpop.f32.mrf.mxu0
        %v3266 = vadd.f32 %v3097, %v3265
        %v3267 = vpop.f32.mrf.mxu0
        %v3268 = vadd.f32 %v3099, %v3267
        %3269 = vmatmul.bf16.gmra.mxu0 %v1732
        %v3270 = vpop.f32.mrf.mxu0
        %v3271 = vadd.f32 %v3102, %v3270
        %v3272 = vpop.f32.mrf.mxu0
        %v3273 = vadd.f32 %v3104, %v3272
        %3274 = vmatmul.bf16.gmra.mxu0 %v1740
        %v3275 = vpop.f32.mrf.mxu0
        %v3276 = vadd.f32 %v3107, %v3275
        %v3277 = vpop.f32.mrf.mxu0
        %v3278 = vadd.f32 %v3109, %v3277
        %3279 = vmatmul.bf16.gmra.mxu0 %v1748
        %v3280 = vpop.f32.mrf.mxu0
        %v3281 = vadd.f32 %v3112, %v3280
        %v3282 = vpop.f32.mrf.mxu0
        %v3283 = vadd.f32 %v3114, %v3282
        %3284 = vmatmul.bf16.gmra.mxu0 %v1756
        %v3285 = vpop.f32.mrf.mxu0
        %v3286 = vadd.f32 %v3117, %v3285
        %v3287 = vpop.f32.mrf.mxu0
        %v3288 = vadd.f32 %v3119, %v3287
        %3289 = vmatmul.bf16.gmra.mxu0 %v1764
        %v3290 = vpop.f32.mrf.mxu0
        %v3291 = vadd.f32 %v3122, %v3290
        %v3292 = vpop.f32.mrf.mxu0
        %v3293 = vadd.f32 %v3124, %v3292
        %3294 = vmatmul.bf16.gmra.mxu0 %v1772
        %v3295 = vpop.f32.mrf.mxu0
        %v3296 = vadd.f32 %v3127, %v3295
        %v3297 = vpop.f32.mrf.mxu0
        %v3298 = vadd.f32 %v3129, %v3297
        %3299 = vmatmul.bf16.gmra.mxu0 %v1780
        %v3300 = vpop.f32.mrf.mxu0
        %v3301 = vadd.f32 %v3132, %v3300
        %v3302 = vpop.f32.mrf.mxu0
        %v3303 = vadd.f32 %v3134, %v3302
        %3304 = vmatmul.bf16.gmra.mxu0 %v1788
        %v3305 = vpop.f32.mrf.mxu0
        %v3306 = vadd.f32 %v3137, %v3305
        %v3307 = vpop.f32.mrf.mxu0
        %v3308 = vadd.f32 %v3139, %v3307
        %3309 = vmatmul.bf16.gmra.mxu0 %v1796
        %v3310 = vpop.f32.mrf.mxu0
        %v3311 = vadd.f32 %v3142, %v3310
        %v3312 = vpop.f32.mrf.mxu0
        %v3313 = vadd.f32 %v3144, %v3312
        %3314 = vmatmul.bf16.gmra.mxu0 %v1804
        %v3315 = vpop.f32.mrf.mxu0
        %v3316 = vadd.f32 %v3147, %v3315
        %v3317 = vpop.f32.mrf.mxu0
        %v3318 = vadd.f32 %v3149, %v3317
        %3319 = vmatmul.bf16.gmra.mxu0 %v1812
        %v3320 = vpop.f32.mrf.mxu0
        %v3321 = vadd.f32 %v3152, %v3320
        %v3322 = vpop.f32.mrf.mxu0
        %v3323 = vadd.f32 %v3154, %v3322
        %3324 = vmatmul.bf16.gmra.mxu0 %v1820
        %v3325 = vpop.f32.mrf.mxu0
        %v3326 = vadd.f32 %v3157, %v3325
        %v3327 = vpop.f32.mrf.mxu0
        %v3328 = vadd.f32 %v3159, %v3327
        %3329 = vmatmul.bf16.gmra.mxu0 %v1828
        %v3330 = vpop.f32.mrf.mxu0
        %v3331 = vadd.f32 %v3162, %v3330
        %v3332 = vpop.f32.mrf.mxu0
        %v3333 = vadd.f32 %v3164, %v3332
        %3334 = vmatmul.bf16.gmra.mxu0 %v1836
        %v3335 = vpop.f32.mrf.mxu0
        %v3336 = vadd.f32 %v3167, %v3335
        %v3337 = vpop.f32.mrf.mxu0
        %v3338 = vadd.f32 %v3169, %v3337
        %3339 = vmatmul.bf16.gmra.mxu0 %v1844
        %v3340 = vpop.f32.mrf.mxu0
        %v3341 = vadd.f32 %v3172, %v3340
        %v3342 = vpop.f32.mrf.mxu0
        %v3343 = vadd.f32 %v3174, %v3342
        %3344 = vmatmul.bf16.gmra.mxu0 %v1852
        %v3345 = vpop.f32.mrf.mxu0
        %v3346 = vadd.f32 %v3177, %v3345
        %v3347 = vpop.f32.mrf.mxu0
        %v3348 = vadd.f32 %v3179, %v3347
        %3349 = vmatmul.bf16.gmra.mxu0 %v1860
        %v3350 = vpop.f32.mrf.mxu0
        %v3351 = vadd.f32 %v3182, %v3350
        %v3352 = vpop.f32.mrf.mxu0
        %v3353 = vadd.f32 %v3184, %v3352
        %3354 = vmatmul.bf16.gmra.mxu0 %v1868
        %v3355 = vpop.f32.mrf.mxu0
        %v3356 = vadd.f32 %v3187, %v3355
        %v3357 = vpop.f32.mrf.mxu0
        %v3358 = vadd.f32 %v3189, %v3357
        %3359 = vmatmul.bf16.gmra.mxu0 %v1876
        %v3360 = vpop.f32.mrf.mxu0
        %v3361 = vadd.f32 %v3192, %v3360
        %v3362 = vpop.f32.mrf.mxu0
        %v3363 = vadd.f32 %v3194, %v3362
        %3364 = vdwg.mxu0
        %3365 = vmatpush.bf16.msra.mxu0 %v2439
        %3366 = vmatpush.bf16.msra.mxu0 %v2438
        %3367 = vmatpush.bf16.msra.mxu0 %v2437
        %3368 = vmatpush.bf16.msra.mxu0 %v2436
        %3369 = vmatpush.bf16.msra.mxu0 %v2435
        %3370 = vmatpush.bf16.msra.mxu0 %v2434
        %3371 = vmatpush.bf16.msra.mxu0 %v2433
        %3372 = vmatpush.bf16.msra.mxu0 %v2432
        %3373 = vmatmul.bf16.gmra.mxu0 %v1629
        %v3374 = vpop.f32.mrf.mxu0
        %v3375 = vadd.f32 %v3206, %v3374
        %v3376 = vpop.f32.mrf.mxu0
        %v3377 = vadd.f32 %v3208, %v3376
        %3378 = vmatmul.bf16.gmra.mxu0 %v1637
        %v3379 = vpop.f32.mrf.mxu0
        %v3380 = vadd.f32 %v3211, %v3379
        %v3381 = vpop.f32.mrf.mxu0
        %v3382 = vadd.f32 %v3213, %v3381
        %3383 = vmatmul.bf16.gmra.mxu0 %v1645
        %v3384 = vpop.f32.mrf.mxu0
        %v3385 = vadd.f32 %v3216, %v3384
        %v3386 = vpop.f32.mrf.mxu0
        %v3387 = vadd.f32 %v3218, %v3386
        %3388 = vmatmul.bf16.gmra.mxu0 %v1653
        %v3389 = vpop.f32.mrf.mxu0
        %v3390 = vadd.f32 %v3221, %v3389
        %v3391 = vpop.f32.mrf.mxu0
        %v3392 = vadd.f32 %v3223, %v3391
        %3393 = vmatmul.bf16.gmra.mxu0 %v1661
        %v3394 = vpop.f32.mrf.mxu0
        %v3395 = vadd.f32 %v3226, %v3394
        %v3396 = vpop.f32.mrf.mxu0
        %v3397 = vadd.f32 %v3228, %v3396
        %3398 = vmatmul.bf16.gmra.mxu0 %v1669
        %v3399 = vpop.f32.mrf.mxu0
        %v3400 = vadd.f32 %v3231, %v3399
        %v3401 = vpop.f32.mrf.mxu0
        %v3402 = vadd.f32 %v3233, %v3401
        %3403 = vmatmul.bf16.gmra.mxu0 %v1677
        %v3404 = vpop.f32.mrf.mxu0
        %v3405 = vadd.f32 %v3236, %v3404
        %v3406 = vpop.f32.mrf.mxu0
        %v3407 = vadd.f32 %v3238, %v3406
        %3408 = vmatmul.bf16.gmra.mxu0 %v1685
        %v3409 = vpop.f32.mrf.mxu0
        %v3410 = vadd.f32 %v3241, %v3409
        %v3411 = vpop.f32.mrf.mxu0
        %v3412 = vadd.f32 %v3243, %v3411
        %3413 = vmatmul.bf16.gmra.mxu0 %v1693
        %v3414 = vpop.f32.mrf.mxu0
        %v3415 = vadd.f32 %v3246, %v3414
        %v3416 = vpop.f32.mrf.mxu0
        %v3417 = vadd.f32 %v3248, %v3416
        %3418 = vmatmul.bf16.gmra.mxu0 %v1701
        %v3419 = vpop.f32.mrf.mxu0
        %v3420 = vadd.f32 %v3251, %v3419
        %v3421 = vpop.f32.mrf.mxu0
        %v3422 = vadd.f32 %v3253, %v3421
        %3423 = vmatmul.bf16.gmra.mxu0 %v1709
        %v3424 = vpop.f32.mrf.mxu0
        %v3425 = vadd.f32 %v3256, %v3424
        %v3426 = vpop.f32.mrf.mxu0
        %v3427 = vadd.f32 %v3258, %v3426
        %3428 = vmatmul.bf16.gmra.mxu0 %v1717
        %v3429 = vpop.f32.mrf.mxu0
        %v3430 = vadd.f32 %v3261, %v3429
        %v3431 = vpop.f32.mrf.mxu0
        %v3432 = vadd.f32 %v3263, %v3431
        %3433 = vmatmul.bf16.gmra.mxu0 %v1725
        %v3434 = vpop.f32.mrf.mxu0
        %v3435 = vadd.f32 %v3266, %v3434
        %v3436 = vpop.f32.mrf.mxu0
        %v3437 = vadd.f32 %v3268, %v3436
        %3438 = vmatmul.bf16.gmra.mxu0 %v1733
        %v3439 = vpop.f32.mrf.mxu0
        %v3440 = vadd.f32 %v3271, %v3439
        %v3441 = vpop.f32.mrf.mxu0
        %v3442 = vadd.f32 %v3273, %v3441
        %3443 = vmatmul.bf16.gmra.mxu0 %v1741
        %v3444 = vpop.f32.mrf.mxu0
        %v3445 = vadd.f32 %v3276, %v3444
        %v3446 = vpop.f32.mrf.mxu0
        %v3447 = vadd.f32 %v3278, %v3446
        %3448 = vmatmul.bf16.gmra.mxu0 %v1749
        %v3449 = vpop.f32.mrf.mxu0
        %v3450 = vadd.f32 %v3281, %v3449
        %v3451 = vpop.f32.mrf.mxu0
        %v3452 = vadd.f32 %v3283, %v3451
        %3453 = vmatmul.bf16.gmra.mxu0 %v1757
        %v3454 = vpop.f32.mrf.mxu0
        %v3455 = vadd.f32 %v3286, %v3454
        %v3456 = vpop.f32.mrf.mxu0
        %v3457 = vadd.f32 %v3288, %v3456
        %3458 = vmatmul.bf16.gmra.mxu0 %v1765
        %v3459 = vpop.f32.mrf.mxu0
        %v3460 = vadd.f32 %v3291, %v3459
        %v3461 = vpop.f32.mrf.mxu0
        %v3462 = vadd.f32 %v3293, %v3461
        %3463 = vmatmul.bf16.gmra.mxu0 %v1773
        %v3464 = vpop.f32.mrf.mxu0
        %v3465 = vadd.f32 %v3296, %v3464
        %v3466 = vpop.f32.mrf.mxu0
        %v3467 = vadd.f32 %v3298, %v3466
        %3468 = vmatmul.bf16.gmra.mxu0 %v1781
        %v3469 = vpop.f32.mrf.mxu0
        %v3470 = vadd.f32 %v3301, %v3469
        %v3471 = vpop.f32.mrf.mxu0
        %v3472 = vadd.f32 %v3303, %v3471
        %3473 = vmatmul.bf16.gmra.mxu0 %v1789
        %v3474 = vpop.f32.mrf.mxu0
        %v3475 = vadd.f32 %v3306, %v3474
        %v3476 = vpop.f32.mrf.mxu0
        %v3477 = vadd.f32 %v3308, %v3476
        %3478 = vmatmul.bf16.gmra.mxu0 %v1797
        %v3479 = vpop.f32.mrf.mxu0
        %v3480 = vadd.f32 %v3311, %v3479
        %v3481 = vpop.f32.mrf.mxu0
        %v3482 = vadd.f32 %v3313, %v3481
        %3483 = vmatmul.bf16.gmra.mxu0 %v1805
        %v3484 = vpop.f32.mrf.mxu0
        %v3485 = vadd.f32 %v3316, %v3484
        %v3486 = vpop.f32.mrf.mxu0
        %v3487 = vadd.f32 %v3318, %v3486
        %3488 = vmatmul.bf16.gmra.mxu0 %v1813
        %v3489 = vpop.f32.mrf.mxu0
        %v3490 = vadd.f32 %v3321, %v3489
        %v3491 = vpop.f32.mrf.mxu0
        %v3492 = vadd.f32 %v3323, %v3491
        %3493 = vmatmul.bf16.gmra.mxu0 %v1821
        %v3494 = vpop.f32.mrf.mxu0
        %v3495 = vadd.f32 %v3326, %v3494
        %v3496 = vpop.f32.mrf.mxu0
        %v3497 = vadd.f32 %v3328, %v3496
        %3498 = vmatmul.bf16.gmra.mxu0 %v1829
        %v3499 = vpop.f32.mrf.mxu0
        %v3500 = vadd.f32 %v3331, %v3499
        %v3501 = vpop.f32.mrf.mxu0
        %v3502 = vadd.f32 %v3333, %v3501
        %3503 = vmatmul.bf16.gmra.mxu0 %v1837
        %v3504 = vpop.f32.mrf.mxu0
        %v3505 = vadd.f32 %v3336, %v3504
        %v3506 = vpop.f32.mrf.mxu0
        %v3507 = vadd.f32 %v3338, %v3506
        %3508 = vmatmul.bf16.gmra.mxu0 %v1845
        %v3509 = vpop.f32.mrf.mxu0
        %v3510 = vadd.f32 %v3341, %v3509
        %v3511 = vpop.f32.mrf.mxu0
        %v3512 = vadd.f32 %v3343, %v3511
        %3513 = vmatmul.bf16.gmra.mxu0 %v1853
        %v3514 = vpop.f32.mrf.mxu0
        %v3515 = vadd.f32 %v3346, %v3514
        %v3516 = vpop.f32.mrf.mxu0
        %v3517 = vadd.f32 %v3348, %v3516
        %3518 = vmatmul.bf16.gmra.mxu0 %v1861
        %v3519 = vpop.f32.mrf.mxu0
        %v3520 = vadd.f32 %v3351, %v3519
        %v3521 = vpop.f32.mrf.mxu0
        %v3522 = vadd.f32 %v3353, %v3521
        %3523 = vmatmul.bf16.gmra.mxu0 %v1869
        %v3524 = vpop.f32.mrf.mxu0
        %v3525 = vadd.f32 %v3356, %v3524
        %v3526 = vpop.f32.mrf.mxu0
        %v3527 = vadd.f32 %v3358, %v3526
        %3528 = vmatmul.bf16.gmra.mxu0 %v1877
        %v3529 = vpop.f32.mrf.mxu0
        %v3530 = vadd.f32 %v3361, %v3529
        %v3531 = vpop.f32.mrf.mxu0
        %v3532 = vadd.f32 %v3363, %v3531
        %3533 = vdwg.mxu0
        %3534 = vmatpush.bf16.msra.mxu0 %v2447
        %3535 = vmatpush.bf16.msra.mxu0 %v2446
        %3536 = vmatpush.bf16.msra.mxu0 %v2445
        %3537 = vmatpush.bf16.msra.mxu0 %v2444
        %3538 = vmatpush.bf16.msra.mxu0 %v2443
        %3539 = vmatpush.bf16.msra.mxu0 %v2442
        %3540 = vmatpush.bf16.msra.mxu0 %v2441
        %3541 = vmatpush.bf16.msra.mxu0 %v2440
        %3542 = vmatmul.bf16.gmra.mxu0 %v1630
        %v3543 = vpop.f32.mrf.mxu0
        %v3544 = vadd.f32 %v3375, %v3543
        %v3545 = vpop.f32.mrf.mxu0
        %v3546 = vadd.f32 %v3377, %v3545
        %3547 = vmatmul.bf16.gmra.mxu0 %v1638
        %v3548 = vpop.f32.mrf.mxu0
        %v3549 = vadd.f32 %v3380, %v3548
        %v3550 = vpop.f32.mrf.mxu0
        %v3551 = vadd.f32 %v3382, %v3550
        %3552 = vmatmul.bf16.gmra.mxu0 %v1646
        %v3553 = vpop.f32.mrf.mxu0
        %v3554 = vadd.f32 %v3385, %v3553
        %v3555 = vpop.f32.mrf.mxu0
        %v3556 = vadd.f32 %v3387, %v3555
        %3557 = vmatmul.bf16.gmra.mxu0 %v1654
        %v3558 = vpop.f32.mrf.mxu0
        %v3559 = vadd.f32 %v3390, %v3558
        %v3560 = vpop.f32.mrf.mxu0
        %v3561 = vadd.f32 %v3392, %v3560
        %3562 = vmatmul.bf16.gmra.mxu0 %v1662
        %v3563 = vpop.f32.mrf.mxu0
        %v3564 = vadd.f32 %v3395, %v3563
        %v3565 = vpop.f32.mrf.mxu0
        %v3566 = vadd.f32 %v3397, %v3565
        %3567 = vmatmul.bf16.gmra.mxu0 %v1670
        %v3568 = vpop.f32.mrf.mxu0
        %v3569 = vadd.f32 %v3400, %v3568
        %v3570 = vpop.f32.mrf.mxu0
        %v3571 = vadd.f32 %v3402, %v3570
        %3572 = vmatmul.bf16.gmra.mxu0 %v1678
        %v3573 = vpop.f32.mrf.mxu0
        %v3574 = vadd.f32 %v3405, %v3573
        %v3575 = vpop.f32.mrf.mxu0
        %v3576 = vadd.f32 %v3407, %v3575
        %3577 = vmatmul.bf16.gmra.mxu0 %v1686
        %v3578 = vpop.f32.mrf.mxu0
        %v3579 = vadd.f32 %v3410, %v3578
        %v3580 = vpop.f32.mrf.mxu0
        %v3581 = vadd.f32 %v3412, %v3580
        %3582 = vmatmul.bf16.gmra.mxu0 %v1694
        %v3583 = vpop.f32.mrf.mxu0
        %v3584 = vadd.f32 %v3415, %v3583
        %v3585 = vpop.f32.mrf.mxu0
        %v3586 = vadd.f32 %v3417, %v3585
        %3587 = vmatmul.bf16.gmra.mxu0 %v1702
        %v3588 = vpop.f32.mrf.mxu0
        %v3589 = vadd.f32 %v3420, %v3588
        %v3590 = vpop.f32.mrf.mxu0
        %v3591 = vadd.f32 %v3422, %v3590
        %3592 = vmatmul.bf16.gmra.mxu0 %v1710
        %v3593 = vpop.f32.mrf.mxu0
        %v3594 = vadd.f32 %v3425, %v3593
        %v3595 = vpop.f32.mrf.mxu0
        %v3596 = vadd.f32 %v3427, %v3595
        %3597 = vmatmul.bf16.gmra.mxu0 %v1718
        %v3598 = vpop.f32.mrf.mxu0
        %v3599 = vadd.f32 %v3430, %v3598
        %v3600 = vpop.f32.mrf.mxu0
        %v3601 = vadd.f32 %v3432, %v3600
        %3602 = vmatmul.bf16.gmra.mxu0 %v1726
        %v3603 = vpop.f32.mrf.mxu0
        %v3604 = vadd.f32 %v3435, %v3603
        %v3605 = vpop.f32.mrf.mxu0
        %v3606 = vadd.f32 %v3437, %v3605
        %3607 = vmatmul.bf16.gmra.mxu0 %v1734
        %v3608 = vpop.f32.mrf.mxu0
        %v3609 = vadd.f32 %v3440, %v3608
        %v3610 = vpop.f32.mrf.mxu0
        %v3611 = vadd.f32 %v3442, %v3610
        %3612 = vmatmul.bf16.gmra.mxu0 %v1742
        %v3613 = vpop.f32.mrf.mxu0
        %v3614 = vadd.f32 %v3445, %v3613
        %v3615 = vpop.f32.mrf.mxu0
        %v3616 = vadd.f32 %v3447, %v3615
        %3617 = vmatmul.bf16.gmra.mxu0 %v1750
        %v3618 = vpop.f32.mrf.mxu0
        %v3619 = vadd.f32 %v3450, %v3618
        %v3620 = vpop.f32.mrf.mxu0
        %v3621 = vadd.f32 %v3452, %v3620
        %3622 = vmatmul.bf16.gmra.mxu0 %v1758
        %v3623 = vpop.f32.mrf.mxu0
        %v3624 = vadd.f32 %v3455, %v3623
        %v3625 = vpop.f32.mrf.mxu0
        %v3626 = vadd.f32 %v3457, %v3625
        %3627 = vmatmul.bf16.gmra.mxu0 %v1766
        %v3628 = vpop.f32.mrf.mxu0
        %v3629 = vadd.f32 %v3460, %v3628
        %v3630 = vpop.f32.mrf.mxu0
        %v3631 = vadd.f32 %v3462, %v3630
        %3632 = vmatmul.bf16.gmra.mxu0 %v1774
        %v3633 = vpop.f32.mrf.mxu0
        %v3634 = vadd.f32 %v3465, %v3633
        %v3635 = vpop.f32.mrf.mxu0
        %v3636 = vadd.f32 %v3467, %v3635
        %3637 = vmatmul.bf16.gmra.mxu0 %v1782
        %v3638 = vpop.f32.mrf.mxu0
        %v3639 = vadd.f32 %v3470, %v3638
        %v3640 = vpop.f32.mrf.mxu0
        %v3641 = vadd.f32 %v3472, %v3640
        %3642 = vmatmul.bf16.gmra.mxu0 %v1790
        %v3643 = vpop.f32.mrf.mxu0
        %v3644 = vadd.f32 %v3475, %v3643
        %v3645 = vpop.f32.mrf.mxu0
        %v3646 = vadd.f32 %v3477, %v3645
        %3647 = vmatmul.bf16.gmra.mxu0 %v1798
        %v3648 = vpop.f32.mrf.mxu0
        %v3649 = vadd.f32 %v3480, %v3648
        %v3650 = vpop.f32.mrf.mxu0
        %v3651 = vadd.f32 %v3482, %v3650
        %3652 = vmatmul.bf16.gmra.mxu0 %v1806
        %v3653 = vpop.f32.mrf.mxu0
        %v3654 = vadd.f32 %v3485, %v3653
        %v3655 = vpop.f32.mrf.mxu0
        %v3656 = vadd.f32 %v3487, %v3655
        %3657 = vmatmul.bf16.gmra.mxu0 %v1814
        %v3658 = vpop.f32.mrf.mxu0
        %v3659 = vadd.f32 %v3490, %v3658
        %v3660 = vpop.f32.mrf.mxu0
        %v3661 = vadd.f32 %v3492, %v3660
        %3662 = vmatmul.bf16.gmra.mxu0 %v1822
        %v3663 = vpop.f32.mrf.mxu0
        %v3664 = vadd.f32 %v3495, %v3663
        %v3665 = vpop.f32.mrf.mxu0
        %v3666 = vadd.f32 %v3497, %v3665
        %3667 = vmatmul.bf16.gmra.mxu0 %v1830
        %v3668 = vpop.f32.mrf.mxu0
        %v3669 = vadd.f32 %v3500, %v3668
        %v3670 = vpop.f32.mrf.mxu0
        %v3671 = vadd.f32 %v3502, %v3670
        %3672 = vmatmul.bf16.gmra.mxu0 %v1838
        %v3673 = vpop.f32.mrf.mxu0
        %v3674 = vadd.f32 %v3505, %v3673
        %v3675 = vpop.f32.mrf.mxu0
        %v3676 = vadd.f32 %v3507, %v3675
        %3677 = vmatmul.bf16.gmra.mxu0 %v1846
        %v3678 = vpop.f32.mrf.mxu0
        %v3679 = vadd.f32 %v3510, %v3678
        %v3680 = vpop.f32.mrf.mxu0
        %v3681 = vadd.f32 %v3512, %v3680
        %3682 = vmatmul.bf16.gmra.mxu0 %v1854
        %v3683 = vpop.f32.mrf.mxu0
        %v3684 = vadd.f32 %v3515, %v3683
        %v3685 = vpop.f32.mrf.mxu0
        %v3686 = vadd.f32 %v3517, %v3685
        %3687 = vmatmul.bf16.gmra.mxu0 %v1862
        %v3688 = vpop.f32.mrf.mxu0
        %v3689 = vadd.f32 %v3520, %v3688
        %v3690 = vpop.f32.mrf.mxu0
        %v3691 = vadd.f32 %v3522, %v3690
        %3692 = vmatmul.bf16.gmra.mxu0 %v1870
        %v3693 = vpop.f32.mrf.mxu0
        %v3694 = vadd.f32 %v3525, %v3693
        %v3695 = vpop.f32.mrf.mxu0
        %v3696 = vadd.f32 %v3527, %v3695
        %3697 = vmatmul.bf16.gmra.mxu0 %v1878
        %v3698 = vpop.f32.mrf.mxu0
        %v3699 = vadd.f32 %v3530, %v3698
        %v3700 = vpop.f32.mrf.mxu0
        %v3701 = vadd.f32 %v3532, %v3700
        %3702 = vdwg.mxu0
        %3703 = vmatpush.bf16.msra.mxu0 %v2455
        %3704 = vmatpush.bf16.msra.mxu0 %v2454
        %3705 = vmatpush.bf16.msra.mxu0 %v2453
        %3706 = vmatpush.bf16.msra.mxu0 %v2452
        %3707 = vmatpush.bf16.msra.mxu0 %v2451
        %3708 = vmatpush.bf16.msra.mxu0 %v2450
        %3709 = vmatpush.bf16.msra.mxu0 %v2449
        %3710 = vmatpush.bf16.msra.mxu0 %v2448
        %3711 = vmatmul.bf16.gmra.mxu0 %v1631
        %v3712 = vpop.f32.mrf.mxu0
        %v3713 = vadd.f32 %v3544, %v3712
        %v3714 = vpop.f32.mrf.mxu0
        %v3715 = vadd.f32 %v3546, %v3714
        %3716 = vmatmul.bf16.gmra.mxu0 %v1639
        %v3717 = vpop.f32.mrf.mxu0
        %v3718 = vadd.f32 %v3549, %v3717
        %v3719 = vpop.f32.mrf.mxu0
        %v3720 = vadd.f32 %v3551, %v3719
        %3721 = vmatmul.bf16.gmra.mxu0 %v1647
        %v3722 = vpop.f32.mrf.mxu0
        %v3723 = vadd.f32 %v3554, %v3722
        %v3724 = vpop.f32.mrf.mxu0
        %v3725 = vadd.f32 %v3556, %v3724
        %3726 = vmatmul.bf16.gmra.mxu0 %v1655
        %v3727 = vpop.f32.mrf.mxu0
        %v3728 = vadd.f32 %v3559, %v3727
        %v3729 = vpop.f32.mrf.mxu0
        %v3730 = vadd.f32 %v3561, %v3729
        %3731 = vmatmul.bf16.gmra.mxu0 %v1663
        %v3732 = vpop.f32.mrf.mxu0
        %v3733 = vadd.f32 %v3564, %v3732
        %v3734 = vpop.f32.mrf.mxu0
        %v3735 = vadd.f32 %v3566, %v3734
        %3736 = vmatmul.bf16.gmra.mxu0 %v1671
        %v3737 = vpop.f32.mrf.mxu0
        %v3738 = vadd.f32 %v3569, %v3737
        %v3739 = vpop.f32.mrf.mxu0
        %v3740 = vadd.f32 %v3571, %v3739
        %3741 = vmatmul.bf16.gmra.mxu0 %v1679
        %v3742 = vpop.f32.mrf.mxu0
        %v3743 = vadd.f32 %v3574, %v3742
        %v3744 = vpop.f32.mrf.mxu0
        %v3745 = vadd.f32 %v3576, %v3744
        %3746 = vmatmul.bf16.gmra.mxu0 %v1687
        %v3747 = vpop.f32.mrf.mxu0
        %v3748 = vadd.f32 %v3579, %v3747
        %v3749 = vpop.f32.mrf.mxu0
        %v3750 = vadd.f32 %v3581, %v3749
        %3751 = vmatmul.bf16.gmra.mxu0 %v1695
        %v3752 = vpop.f32.mrf.mxu0
        %v3753 = vadd.f32 %v3584, %v3752
        %v3754 = vpop.f32.mrf.mxu0
        %v3755 = vadd.f32 %v3586, %v3754
        %3756 = vmatmul.bf16.gmra.mxu0 %v1703
        %v3757 = vpop.f32.mrf.mxu0
        %v3758 = vadd.f32 %v3589, %v3757
        %v3759 = vpop.f32.mrf.mxu0
        %v3760 = vadd.f32 %v3591, %v3759
        %3761 = vmatmul.bf16.gmra.mxu0 %v1711
        %v3762 = vpop.f32.mrf.mxu0
        %v3763 = vadd.f32 %v3594, %v3762
        %v3764 = vpop.f32.mrf.mxu0
        %v3765 = vadd.f32 %v3596, %v3764
        %3766 = vmatmul.bf16.gmra.mxu0 %v1719
        %v3767 = vpop.f32.mrf.mxu0
        %v3768 = vadd.f32 %v3599, %v3767
        %v3769 = vpop.f32.mrf.mxu0
        %v3770 = vadd.f32 %v3601, %v3769
        %3771 = vmatmul.bf16.gmra.mxu0 %v1727
        %v3772 = vpop.f32.mrf.mxu0
        %v3773 = vadd.f32 %v3604, %v3772
        %v3774 = vpop.f32.mrf.mxu0
        %v3775 = vadd.f32 %v3606, %v3774
        %3776 = vmatmul.bf16.gmra.mxu0 %v1735
        %v3777 = vpop.f32.mrf.mxu0
        %v3778 = vadd.f32 %v3609, %v3777
        %v3779 = vpop.f32.mrf.mxu0
        %v3780 = vadd.f32 %v3611, %v3779
        %3781 = vmatmul.bf16.gmra.mxu0 %v1743
        %v3782 = vpop.f32.mrf.mxu0
        %v3783 = vadd.f32 %v3614, %v3782
        %v3784 = vpop.f32.mrf.mxu0
        %v3785 = vadd.f32 %v3616, %v3784
        %3786 = vmatmul.bf16.gmra.mxu0 %v1751
        %v3787 = vpop.f32.mrf.mxu0
        %v3788 = vadd.f32 %v3619, %v3787
        %v3789 = vpop.f32.mrf.mxu0
        %v3790 = vadd.f32 %v3621, %v3789
        %3791 = vmatmul.bf16.gmra.mxu0 %v1759
        %v3792 = vpop.f32.mrf.mxu0
        %v3793 = vadd.f32 %v3624, %v3792
        %v3794 = vpop.f32.mrf.mxu0
        %v3795 = vadd.f32 %v3626, %v3794
        %3796 = vmatmul.bf16.gmra.mxu0 %v1767
        %v3797 = vpop.f32.mrf.mxu0
        %v3798 = vadd.f32 %v3629, %v3797
        %v3799 = vpop.f32.mrf.mxu0
        %v3800 = vadd.f32 %v3631, %v3799
        %3801 = vmatmul.bf16.gmra.mxu0 %v1775
        %v3802 = vpop.f32.mrf.mxu0
        %v3803 = vadd.f32 %v3634, %v3802
        %v3804 = vpop.f32.mrf.mxu0
        %v3805 = vadd.f32 %v3636, %v3804
        %3806 = vmatmul.bf16.gmra.mxu0 %v1783
        %v3807 = vpop.f32.mrf.mxu0
        %v3808 = vadd.f32 %v3639, %v3807
        %v3809 = vpop.f32.mrf.mxu0
        %v3810 = vadd.f32 %v3641, %v3809
        %3811 = vmatmul.bf16.gmra.mxu0 %v1791
        %v3812 = vpop.f32.mrf.mxu0
        %v3813 = vadd.f32 %v3644, %v3812
        %v3814 = vpop.f32.mrf.mxu0
        %v3815 = vadd.f32 %v3646, %v3814
        %3816 = vmatmul.bf16.gmra.mxu0 %v1799
        %v3817 = vpop.f32.mrf.mxu0
        %v3818 = vadd.f32 %v3649, %v3817
        %v3819 = vpop.f32.mrf.mxu0
        %v3820 = vadd.f32 %v3651, %v3819
        %3821 = vmatmul.bf16.gmra.mxu0 %v1807
        %v3822 = vpop.f32.mrf.mxu0
        %v3823 = vadd.f32 %v3654, %v3822
        %v3824 = vpop.f32.mrf.mxu0
        %v3825 = vadd.f32 %v3656, %v3824
        %3826 = vmatmul.bf16.gmra.mxu0 %v1815
        %v3827 = vpop.f32.mrf.mxu0
        %v3828 = vadd.f32 %v3659, %v3827
        %v3829 = vpop.f32.mrf.mxu0
        %v3830 = vadd.f32 %v3661, %v3829
        %3831 = vmatmul.bf16.gmra.mxu0 %v1823
        %v3832 = vpop.f32.mrf.mxu0
        %v3833 = vadd.f32 %v3664, %v3832
        %v3834 = vpop.f32.mrf.mxu0
        %v3835 = vadd.f32 %v3666, %v3834
        %3836 = vmatmul.bf16.gmra.mxu0 %v1831
        %v3837 = vpop.f32.mrf.mxu0
        %v3838 = vadd.f32 %v3669, %v3837
        %v3839 = vpop.f32.mrf.mxu0
        %v3840 = vadd.f32 %v3671, %v3839
        %3841 = vmatmul.bf16.gmra.mxu0 %v1839
        %v3842 = vpop.f32.mrf.mxu0
        %v3843 = vadd.f32 %v3674, %v3842
        %v3844 = vpop.f32.mrf.mxu0
        %v3845 = vadd.f32 %v3676, %v3844
        %3846 = vmatmul.bf16.gmra.mxu0 %v1847
        %v3847 = vpop.f32.mrf.mxu0
        %v3848 = vadd.f32 %v3679, %v3847
        %v3849 = vpop.f32.mrf.mxu0
        %v3850 = vadd.f32 %v3681, %v3849
        %3851 = vmatmul.bf16.gmra.mxu0 %v1855
        %v3852 = vpop.f32.mrf.mxu0
        %v3853 = vadd.f32 %v3684, %v3852
        %v3854 = vpop.f32.mrf.mxu0
        %v3855 = vadd.f32 %v3686, %v3854
        %3856 = vmatmul.bf16.gmra.mxu0 %v1863
        %v3857 = vpop.f32.mrf.mxu0
        %v3858 = vadd.f32 %v3689, %v3857
        %v3859 = vpop.f32.mrf.mxu0
        %v3860 = vadd.f32 %v3691, %v3859
        %3861 = vmatmul.bf16.gmra.mxu0 %v1871
        %v3862 = vpop.f32.mrf.mxu0
        %v3863 = vadd.f32 %v3694, %v3862
        %v3864 = vpop.f32.mrf.mxu0
        %v3865 = vadd.f32 %v3696, %v3864
        %3866 = vmatmul.bf16.gmra.mxu0 %v1879
        %v3867 = vpop.f32.mrf.mxu0
        %v3868 = vadd.f32 %v3699, %v3867
        %v3869 = vpop.f32.mrf.mxu0
        %v3870 = vadd.f32 %v3701, %v3869
        %3871 = vdwg.mxu0
        %v3872 = vadd.f32 %v536, %v3713
        %v3873 = vadd.f32 %v537, %v3715
        %v3874 = vadd.f32 %v538, %v3718
        %v3875 = vadd.f32 %v539, %v3720
        %v3876 = vadd.f32 %v540, %v3723
        %v3877 = vadd.f32 %v541, %v3725
        %v3878 = vadd.f32 %v542, %v3728
        %v3879 = vadd.f32 %v543, %v3730
        %v3880 = vadd.f32 %v544, %v3733
        %v3881 = vadd.f32 %v545, %v3735
        %v3882 = vadd.f32 %v546, %v3738
        %v3883 = vadd.f32 %v547, %v3740
        %v3884 = vadd.f32 %v548, %v3743
        %v3885 = vadd.f32 %v549, %v3745
        %v3886 = vadd.f32 %v550, %v3748
        %v3887 = vadd.f32 %v551, %v3750
        %v3888 = vadd.f32 %v552, %v3753
        %v3889 = vadd.f32 %v553, %v3755
        %v3890 = vadd.f32 %v554, %v3758
        %v3891 = vadd.f32 %v555, %v3760
        %v3892 = vadd.f32 %v556, %v3763
        %v3893 = vadd.f32 %v557, %v3765
        %v3894 = vadd.f32 %v558, %v3768
        %v3895 = vadd.f32 %v559, %v3770
        %v3896 = vadd.f32 %v560, %v3773
        %v3897 = vadd.f32 %v561, %v3775
        %v3898 = vadd.f32 %v562, %v3778
        %v3899 = vadd.f32 %v563, %v3780
        %v3900 = vadd.f32 %v564, %v3783
        %v3901 = vadd.f32 %v565, %v3785
        %v3902 = vadd.f32 %v566, %v3788
        %v3903 = vadd.f32 %v567, %v3790
        %v3904 = vadd.f32 %v568, %v3793
        %v3905 = vadd.f32 %v569, %v3795
        %v3906 = vadd.f32 %v570, %v3798
        %v3907 = vadd.f32 %v571, %v3800
        %v3908 = vadd.f32 %v572, %v3803
        %v3909 = vadd.f32 %v573, %v3805
        %v3910 = vadd.f32 %v574, %v3808
        %v3911 = vadd.f32 %v575, %v3810
        %v3912 = vadd.f32 %v576, %v3813
        %v3913 = vadd.f32 %v577, %v3815
        %v3914 = vadd.f32 %v578, %v3818
        %v3915 = vadd.f32 %v579, %v3820
        %v3916 = vadd.f32 %v580, %v3823
        %v3917 = vadd.f32 %v581, %v3825
        %v3918 = vadd.f32 %v582, %v3828
        %v3919 = vadd.f32 %v583, %v3830
        %v3920 = vadd.f32 %v584, %v3833
        %v3921 = vadd.f32 %v585, %v3835
        %v3922 = vadd.f32 %v586, %v3838
        %v3923 = vadd.f32 %v587, %v3840
        %v3924 = vadd.f32 %v588, %v3843
        %v3925 = vadd.f32 %v589, %v3845
        %v3926 = vadd.f32 %v590, %v3848
        %v3927 = vadd.f32 %v591, %v3850
        %v3928 = vadd.f32 %v592, %v3853
        %v3929 = vadd.f32 %v593, %v3855
        %v3930 = vadd.f32 %v594, %v3858
        %v3931 = vadd.f32 %v595, %v3860
        %v3932 = vadd.f32 %v596, %v3863
        %v3933 = vadd.f32 %v597, %v3865
        %v3934 = vadd.f32 %v598, %v3868
        %v3935 = vadd.f32 %v599, %v3870
        %3936 = vst [vmem:[#allocation2] sm:$0xff] %v3872
        %3937 = vst [vmem:[#allocation2 + $0x8] sm:$0xff] %v3873
        %3938 = vst [vmem:[#allocation2 + $0x10] sm:$0xff] %v3874
        %3939 = vst [vmem:[#allocation2 + $0x18] sm:$0xff] %v3875
        %3940 = vst [vmem:[#allocation2 + $0x20] sm:$0xff] %v3876
        %3941 = vst [vmem:[#allocation2 + $0x28] sm:$0xff] %v3877
        %3942 = vst [vmem:[#allocation2 + $0x30] sm:$0xff] %v3878
        %3943 = vst [vmem:[#allocation2 + $0x38] sm:$0xff] %v3879
        %3944 = vst [vmem:[#allocation2 + $0x40] sm:$0xff] %v3880
        %3945 = vst [vmem:[#allocation2 + $0x48] sm:$0xff] %v3881
        %3946 = vst [vmem:[#allocation2 + $0x50] sm:$0xff] %v3882
        %3947 = vst [vmem:[#allocation2 + $0x58] sm:$0xff] %v3883
        %3948 = vst [vmem:[#allocation2 + $0x60] sm:$0xff] %v3884
        %3949 = vst [vmem:[#allocation2 + $0x68] sm:$0xff] %v3885
        %3950 = vst [vmem:[#allocation2 + $0x70] sm:$0xff] %v3886
        %3951 = vst [vmem:[#allocation2 + $0x78] sm:$0xff] %v3887
        %3952 = vst [vmem:[#allocation2 + $0x80] sm:$0xff] %v3888
        %3953 = vst [vmem:[#allocation2 + $0x88] sm:$0xff] %v3889
        %3954 = vst [vmem:[#allocation2 + $0x90] sm:$0xff] %v3890
        %3955 = vst [vmem:[#allocation2 + $0x98] sm:$0xff] %v3891
        %3956 = vst [vmem:[#allocation2 + $0xa0] sm:$0xff] %v3892
        %3957 = vst [vmem:[#allocation2 + $0xa8] sm:$0xff] %v3893
        %3958 = vst [vmem:[#allocation2 + $0xb0] sm:$0xff] %v3894
        %3959 = vst [vmem:[#allocation2 + $0xb8] sm:$0xff] %v3895
        %3960 = vst [vmem:[#allocation2 + $0xc0] sm:$0xff] %v3896
        %3961 = vst [vmem:[#allocation2 + $0xc8] sm:$0xff] %v3897
        %3962 = vst [vmem:[#allocation2 + $0xd0] sm:$0xff] %v3898
        %3963 = vst [vmem:[#allocation2 + $0xd8] sm:$0xff] %v3899
        %3964 = vst [vmem:[#allocation2 + $0xe0] sm:$0xff] %v3900
        %3965 = vst [vmem:[#allocation2 + $0xe8] sm:$0xff] %v3901
        %3966 = vst [vmem:[#allocation2 + $0xf0] sm:$0xff] %v3902
        %3967 = vst [vmem:[#allocation2 + $0xf8] sm:$0xff] %v3903
        %3968 = vst [vmem:[#allocation2 + $0x100] sm:$0xff] %v3904
        %3969 = vst [vmem:[#allocation2 + $0x108] sm:$0xff] %v3905
        %3970 = vst [vmem:[#allocation2 + $0x110] sm:$0xff] %v3906
        %3971 = vst [vmem:[#allocation2 + $0x118] sm:$0xff] %v3907
        %3972 = vst [vmem:[#allocation2 + $0x120] sm:$0xff] %v3908
        %3973 = vst [vmem:[#allocation2 + $0x128] sm:$0xff] %v3909
        %3974 = vst [vmem:[#allocation2 + $0x130] sm:$0xff] %v3910
        %3975 = vst [vmem:[#allocation2 + $0x138] sm:$0xff] %v3911
        %3976 = vst [vmem:[#allocation2 + $0x140] sm:$0xff] %v3912
        %3977 = vst [vmem:[#allocation2 + $0x148] sm:$0xff] %v3913
        %3978 = vst [vmem:[#allocation2 + $0x150] sm:$0xff] %v3914
        %3979 = vst [vmem:[#allocation2 + $0x158] sm:$0xff] %v3915
        %3980 = vst [vmem:[#allocation2 + $0x160] sm:$0xff] %v3916
        %3981 = vst [vmem:[#allocation2 + $0x168] sm:$0xff] %v3917
        %3982 = vst [vmem:[#allocation2 + $0x170] sm:$0xff] %v3918
        %3983 = vst [vmem:[#allocation2 + $0x178] sm:$0xff] %v3919
        %3984 = vst [vmem:[#allocation2 + $0x180] sm:$0xff] %v3920
        %3985 = vst [vmem:[#allocation2 + $0x188] sm:$0xff] %v3921
        %3986 = vst [vmem:[#allocation2 + $0x190] sm:$0xff] %v3922
        %3987 = vst [vmem:[#allocation2 + $0x198] sm:$0xff] %v3923
        %3988 = vst [vmem:[#allocation2 + $0x1a0] sm:$0xff] %v3924
        %3989 = vst [vmem:[#allocation2 + $0x1a8] sm:$0xff] %v3925
        %3990 = vst [vmem:[#allocation2 + $0x1b0] sm:$0xff] %v3926
        %3991 = vst [vmem:[#allocation2 + $0x1b8] sm:$0xff] %v3927
        %3992 = vst [vmem:[#allocation2 + $0x1c0] sm:$0xff] %v3928
        %3993 = vst [vmem:[#allocation2 + $0x1c8] sm:$0xff] %v3929
        %3994 = vst [vmem:[#allocation2 + $0x1d0] sm:$0xff] %v3930
        %3995 = vst [vmem:[#allocation2 + $0x1d8] sm:$0xff] %v3931
        %3996 = vst [vmem:[#allocation2 + $0x1e0] sm:$0xff] %v3932
        %3997 = vst [vmem:[#allocation2 + $0x1e8] sm:$0xff] %v3933
        %3998 = vst [vmem:[#allocation2 + $0x1f0] sm:$0xff] %v3934
        %3999 = vst [vmem:[#allocation2 + $0x1f8] sm:$0xff] %v3935
        // Predicated region
        $region61: #{tpu_custom_call.1} parent=39 // pred_check
          %p4000 = pneg %p335
        $region62: #{tpu_custom_call.1} parent=39 // pred_check_branch
          %4002 = sbr.rel (%p4000) target = $region64
        $region63: #{tpu_custom_call.1} parent=39 // pred_region
          %v4003 = vld [vmem:[#allocation2] sm:$0xff]
          %v4004 = vld [vmem:[#allocation2 + $0x8] sm:$0xff]
          %v4005 = vld [vmem:[#allocation2 + $0x10] sm:$0xff]
          %v4006 = vld [vmem:[#allocation2 + $0x18] sm:$0xff]
          %v4007 = vld [vmem:[#allocation2 + $0x20] sm:$0xff]
          %v4008 = vld [vmem:[#allocation2 + $0x28] sm:$0xff]
          %v4009 = vld [vmem:[#allocation2 + $0x30] sm:$0xff]
          %v4010 = vld [vmem:[#allocation2 + $0x38] sm:$0xff]
          %v4011 = vld [vmem:[#allocation2 + $0x40] sm:$0xff]
          %v4012 = vld [vmem:[#allocation2 + $0x48] sm:$0xff]
          %v4013 = vld [vmem:[#allocation2 + $0x50] sm:$0xff]
          %v4014 = vld [vmem:[#allocation2 + $0x58] sm:$0xff]
          %v4015 = vld [vmem:[#allocation2 + $0x60] sm:$0xff]
          %v4016 = vld [vmem:[#allocation2 + $0x68] sm:$0xff]
          %v4017 = vld [vmem:[#allocation2 + $0x70] sm:$0xff]
          %v4018 = vld [vmem:[#allocation2 + $0x78] sm:$0xff]
          %v4019 = vld [vmem:[#allocation2 + $0x80] sm:$0xff]
          %v4020 = vld [vmem:[#allocation2 + $0x88] sm:$0xff]
          %v4021 = vld [vmem:[#allocation2 + $0x90] sm:$0xff]
          %v4022 = vld [vmem:[#allocation2 + $0x98] sm:$0xff]
          %v4023 = vld [vmem:[#allocation2 + $0xa0] sm:$0xff]
          %v4024 = vld [vmem:[#allocation2 + $0xa8] sm:$0xff]
          %v4025 = vld [vmem:[#allocation2 + $0xb0] sm:$0xff]
          %v4026 = vld [vmem:[#allocation2 + $0xb8] sm:$0xff]
          %v4027 = vld [vmem:[#allocation2 + $0xc0] sm:$0xff]
          %v4028 = vld [vmem:[#allocation2 + $0xc8] sm:$0xff]
          %v4029 = vld [vmem:[#allocation2 + $0xd0] sm:$0xff]
          %v4030 = vld [vmem:[#allocation2 + $0xd8] sm:$0xff]
          %v4031 = vld [vmem:[#allocation2 + $0xe0] sm:$0xff]
          %v4032 = vld [vmem:[#allocation2 + $0xe8] sm:$0xff]
          %v4033 = vld [vmem:[#allocation2 + $0xf0] sm:$0xff]
          %v4034 = vld [vmem:[#allocation2 + $0xf8] sm:$0xff]
          %v4035 = vld [vmem:[#allocation2 + $0x100] sm:$0xff]
          %v4036 = vld [vmem:[#allocation2 + $0x108] sm:$0xff]
          %v4037 = vld [vmem:[#allocation2 + $0x110] sm:$0xff]
          %v4038 = vld [vmem:[#allocation2 + $0x118] sm:$0xff]
          %v4039 = vld [vmem:[#allocation2 + $0x120] sm:$0xff]
          %v4040 = vld [vmem:[#allocation2 + $0x128] sm:$0xff]
          %v4041 = vld [vmem:[#allocation2 + $0x130] sm:$0xff]
          %v4042 = vld [vmem:[#allocation2 + $0x138] sm:$0xff]
          %v4043 = vld [vmem:[#allocation2 + $0x140] sm:$0xff]
          %v4044 = vld [vmem:[#allocation2 + $0x148] sm:$0xff]
          %v4045 = vld [vmem:[#allocation2 + $0x150] sm:$0xff]
          %v4046 = vld [vmem:[#allocation2 + $0x158] sm:$0xff]
          %v4047 = vld [vmem:[#allocation2 + $0x160] sm:$0xff]
          %v4048 = vld [vmem:[#allocation2 + $0x168] sm:$0xff]
          %v4049 = vld [vmem:[#allocation2 + $0x170] sm:$0xff]
          %v4050 = vld [vmem:[#allocation2 + $0x178] sm:$0xff]
          %v4051 = vld [vmem:[#allocation2 + $0x180] sm:$0xff]
          %v4052 = vld [vmem:[#allocation2 + $0x188] sm:$0xff]
          %v4053 = vld [vmem:[#allocation2 + $0x190] sm:$0xff]
          %v4054 = vld [vmem:[#allocation2 + $0x198] sm:$0xff]
          %v4055 = vld [vmem:[#allocation2 + $0x1a0] sm:$0xff]
          %v4056 = vld [vmem:[#allocation2 + $0x1a8] sm:$0xff]
          %v4057 = vld [vmem:[#allocation2 + $0x1b0] sm:$0xff]
          %v4058 = vld [vmem:[#allocation2 + $0x1b8] sm:$0xff]
          %v4059 = vld [vmem:[#allocation2 + $0x1c0] sm:$0xff]
          %v4060 = vld [vmem:[#allocation2 + $0x1c8] sm:$0xff]
          %v4061 = vld [vmem:[#allocation2 + $0x1d0] sm:$0xff]
          %v4062 = vld [vmem:[#allocation2 + $0x1d8] sm:$0xff]
          %v4063 = vld [vmem:[#allocation2 + $0x1e0] sm:$0xff]
          %v4064 = vld [vmem:[#allocation2 + $0x1e8] sm:$0xff]
          %v4065 = vld [vmem:[#allocation2 + $0x1f0] sm:$0xff]
          %v4066 = vld [vmem:[#allocation2 + $0x1f8] sm:$0xff]
          %v4067 = vld [vmem:[%s332] sm:$0xff]
          %v4068 = vld [vmem:[%s332 + $0x8] sm:$0xff]
          %v4069 = vld [vmem:[%s332 + $0x10] sm:$0xff]
          %v4070 = vld [vmem:[%s332 + $0x18] sm:$0xff]
          %v4071 = vld [vmem:[%s332 + $0x20] sm:$0xff]
          %v4072 = vld [vmem:[%s332 + $0x28] sm:$0xff]
          %v4073 = vld [vmem:[%s332 + $0x30] sm:$0xff]
          %v4074 = vld [vmem:[%s332 + $0x38] sm:$0xff]
          %v4075 = vld [vmem:[%s332 + $0x40] sm:$0xff]
          %v4076 = vld [vmem:[%s332 + $0x48] sm:$0xff]
          %v4077 = vld [vmem:[%s332 + $0x50] sm:$0xff]
          %v4078 = vld [vmem:[%s332 + $0x58] sm:$0xff]
          %v4079 = vld [vmem:[%s332 + $0x60] sm:$0xff]
          %v4080 = vld [vmem:[%s332 + $0x68] sm:$0xff]
          %v4081 = vld [vmem:[%s332 + $0x70] sm:$0xff]
          %v4082 = vld [vmem:[%s332 + $0x78] sm:$0xff]
          %v4083 = vld [vmem:[%s332 + $0x80] sm:$0xff]
          %v4084 = vld [vmem:[%s332 + $0x88] sm:$0xff]
          %v4085 = vld [vmem:[%s332 + $0x90] sm:$0xff]
          %v4086 = vld [vmem:[%s332 + $0x98] sm:$0xff]
          %v4087 = vld [vmem:[%s332 + $0xa0] sm:$0xff]
          %v4088 = vld [vmem:[%s332 + $0xa8] sm:$0xff]
          %v4089 = vld [vmem:[%s332 + $0xb0] sm:$0xff]
          %v4090 = vld [vmem:[%s332 + $0xb8] sm:$0xff]
          %v4091 = vld [vmem:[%s332 + $0xc0] sm:$0xff]
          %v4092 = vld [vmem:[%s332 + $0xc8] sm:$0xff]
          %v4093 = vld [vmem:[%s332 + $0xd0] sm:$0xff]
          %v4094 = vld [vmem:[%s332 + $0xd8] sm:$0xff]
          %v4095 = vld [vmem:[%s332 + $0xe0] sm:$0xff]
          %v4096 = vld [vmem:[%s332 + $0xe8] sm:$0xff]
          %v4097 = vld [vmem:[%s332 + $0xf0] sm:$0xff]
          %v4098 = vld [vmem:[%s332 + $0xf8] sm:$0xff]
          %v4099 = vld [vmem:[%s332 + $0x100] sm:$0xff]
          %v4100 = vld [vmem:[%s332 + $0x108] sm:$0xff]
          %v4101 = vld [vmem:[%s332 + $0x110] sm:$0xff]
          %v4102 = vld [vmem:[%s332 + $0x118] sm:$0xff]
          %v4103 = vld [vmem:[%s332 + $0x120] sm:$0xff]
          %v4104 = vld [vmem:[%s332 + $0x128] sm:$0xff]
          %v4105 = vld [vmem:[%s332 + $0x130] sm:$0xff]
          %v4106 = vld [vmem:[%s332 + $0x138] sm:$0xff]
          %v4107 = vld [vmem:[%s332 + $0x140] sm:$0xff]
          %v4108 = vld [vmem:[%s332 + $0x148] sm:$0xff]
          %v4109 = vld [vmem:[%s332 + $0x150] sm:$0xff]
          %v4110 = vld [vmem:[%s332 + $0x158] sm:$0xff]
          %v4111 = vld [vmem:[%s332 + $0x160] sm:$0xff]
          %v4112 = vld [vmem:[%s332 + $0x168] sm:$0xff]
          %v4113 = vld [vmem:[%s332 + $0x170] sm:$0xff]
          %v4114 = vld [vmem:[%s332 + $0x178] sm:$0xff]
          %v4115 = vld [vmem:[%s332 + $0x180] sm:$0xff]
          %v4116 = vld [vmem:[%s332 + $0x188] sm:$0xff]
          %v4117 = vld [vmem:[%s332 + $0x190] sm:$0xff]
          %v4118 = vld [vmem:[%s332 + $0x198] sm:$0xff]
          %v4119 = vld [vmem:[%s332 + $0x1a0] sm:$0xff]
          %v4120 = vld [vmem:[%s332 + $0x1a8] sm:$0xff]
          %v4121 = vld [vmem:[%s332 + $0x1b0] sm:$0xff]
          %v4122 = vld [vmem:[%s332 + $0x1b8] sm:$0xff]
          %v4123 = vld [vmem:[%s332 + $0x1c0] sm:$0xff]
          %v4124 = vld [vmem:[%s332 + $0x1c8] sm:$0xff]
          %v4125 = vld [vmem:[%s332 + $0x1d0] sm:$0xff]
          %v4126 = vld [vmem:[%s332 + $0x1d8] sm:$0xff]
          %v4127 = vld [vmem:[%s332 + $0x1e0] sm:$0xff]
          %v4128 = vld [vmem:[%s332 + $0x1e8] sm:$0xff]
          %v4129 = vld [vmem:[%s332 + $0x1f0] sm:$0xff]
          %v4130 = vld [vmem:[%s332 + $0x1f8] sm:$0xff]
          %4132 = vset.pattern.permute.xlu0 0
          %4133 = vperm.xlu0 %4132, %v4067
          %v4134 = vpop.permute.xlu0 %4133
          %4137 = vset.pattern.permute.xlu0 0
          %4138 = vperm.xlu0 %4137, %v4068
          %v4139 = vpop.permute.xlu0 %4138
          %4142 = vset.pattern.permute.xlu0 0
          %4143 = vperm.xlu0 %4142, %v4069
          %v4144 = vpop.permute.xlu0 %4143
          %4147 = vset.pattern.permute.xlu0 0
          %4148 = vperm.xlu0 %4147, %v4070
          %v4149 = vpop.permute.xlu0 %4148
          %4152 = vset.pattern.permute.xlu0 0
          %4153 = vperm.xlu0 %4152, %v4071
          %v4154 = vpop.permute.xlu0 %4153
          %4157 = vset.pattern.permute.xlu0 0
          %4158 = vperm.xlu0 %4157, %v4072
          %v4159 = vpop.permute.xlu0 %4158
          %4162 = vset.pattern.permute.xlu0 0
          %4163 = vperm.xlu0 %4162, %v4073
          %v4164 = vpop.permute.xlu0 %4163
          %4167 = vset.pattern.permute.xlu0 0
          %4168 = vperm.xlu0 %4167, %v4074
          %v4169 = vpop.permute.xlu0 %4168
          %4172 = vset.pattern.permute.xlu0 0
          %4173 = vperm.xlu0 %4172, %v4075
          %v4174 = vpop.permute.xlu0 %4173
          %4177 = vset.pattern.permute.xlu0 0
          %4178 = vperm.xlu0 %4177, %v4076
          %v4179 = vpop.permute.xlu0 %4178
          %4182 = vset.pattern.permute.xlu0 0
          %4183 = vperm.xlu0 %4182, %v4077
          %v4184 = vpop.permute.xlu0 %4183
          %4187 = vset.pattern.permute.xlu0 0
          %4188 = vperm.xlu0 %4187, %v4078
          %v4189 = vpop.permute.xlu0 %4188
          %4192 = vset.pattern.permute.xlu0 0
          %4193 = vperm.xlu0 %4192, %v4079
          %v4194 = vpop.permute.xlu0 %4193
          %4197 = vset.pattern.permute.xlu0 0
          %4198 = vperm.xlu0 %4197, %v4080
          %v4199 = vpop.permute.xlu0 %4198
          %4202 = vset.pattern.permute.xlu0 0
          %4203 = vperm.xlu0 %4202, %v4081
          %v4204 = vpop.permute.xlu0 %4203
          %4207 = vset.pattern.permute.xlu0 0
          %4208 = vperm.xlu0 %4207, %v4082
          %v4209 = vpop.permute.xlu0 %4208
          %4212 = vset.pattern.permute.xlu0 0
          %4213 = vperm.xlu0 %4212, %v4083
          %v4214 = vpop.permute.xlu0 %4213
          %4217 = vset.pattern.permute.xlu0 0
          %4218 = vperm.xlu0 %4217, %v4084
          %v4219 = vpop.permute.xlu0 %4218
          %4222 = vset.pattern.permute.xlu0 0
          %4223 = vperm.xlu0 %4222, %v4085
          %v4224 = vpop.permute.xlu0 %4223
          %4227 = vset.pattern.permute.xlu0 0
          %4228 = vperm.xlu0 %4227, %v4086
          %v4229 = vpop.permute.xlu0 %4228
          %4232 = vset.pattern.permute.xlu0 0
          %4233 = vperm.xlu0 %4232, %v4087
          %v4234 = vpop.permute.xlu0 %4233
          %4237 = vset.pattern.permute.xlu0 0
          %4238 = vperm.xlu0 %4237, %v4088
          %v4239 = vpop.permute.xlu0 %4238
          %4242 = vset.pattern.permute.xlu0 0
          %4243 = vperm.xlu0 %4242, %v4089
          %v4244 = vpop.permute.xlu0 %4243
          %4247 = vset.pattern.permute.xlu0 0
          %4248 = vperm.xlu0 %4247, %v4090
          %v4249 = vpop.permute.xlu0 %4248
          %4252 = vset.pattern.permute.xlu0 0
          %4253 = vperm.xlu0 %4252, %v4091
          %v4254 = vpop.permute.xlu0 %4253
          %4257 = vset.pattern.permute.xlu0 0
          %4258 = vperm.xlu0 %4257, %v4092
          %v4259 = vpop.permute.xlu0 %4258
          %4262 = vset.pattern.permute.xlu0 0
          %4263 = vperm.xlu0 %4262, %v4093
          %v4264 = vpop.permute.xlu0 %4263
          %4267 = vset.pattern.permute.xlu0 0
          %4268 = vperm.xlu0 %4267, %v4094
          %v4269 = vpop.permute.xlu0 %4268
          %4272 = vset.pattern.permute.xlu0 0
          %4273 = vperm.xlu0 %4272, %v4095
          %v4274 = vpop.permute.xlu0 %4273
          %4277 = vset.pattern.permute.xlu0 0
          %4278 = vperm.xlu0 %4277, %v4096
          %v4279 = vpop.permute.xlu0 %4278
          %4282 = vset.pattern.permute.xlu0 0
          %4283 = vperm.xlu0 %4282, %v4097
          %v4284 = vpop.permute.xlu0 %4283
          %4287 = vset.pattern.permute.xlu0 0
          %4288 = vperm.xlu0 %4287, %v4098
          %v4289 = vpop.permute.xlu0 %4288
          %4292 = vset.pattern.permute.xlu0 0
          %4293 = vperm.xlu0 %4292, %v4099
          %v4294 = vpop.permute.xlu0 %4293
          %4297 = vset.pattern.permute.xlu0 0
          %4298 = vperm.xlu0 %4297, %v4100
          %v4299 = vpop.permute.xlu0 %4298
          %4302 = vset.pattern.permute.xlu0 0
          %4303 = vperm.xlu0 %4302, %v4101
          %v4304 = vpop.permute.xlu0 %4303
          %4307 = vset.pattern.permute.xlu0 0
          %4308 = vperm.xlu0 %4307, %v4102
          %v4309 = vpop.permute.xlu0 %4308
          %4312 = vset.pattern.permute.xlu0 0
          %4313 = vperm.xlu0 %4312, %v4103
          %v4314 = vpop.permute.xlu0 %4313
          %4317 = vset.pattern.permute.xlu0 0
          %4318 = vperm.xlu0 %4317, %v4104
          %v4319 = vpop.permute.xlu0 %4318
          %4322 = vset.pattern.permute.xlu0 0
          %4323 = vperm.xlu0 %4322, %v4105
          %v4324 = vpop.permute.xlu0 %4323
          %4327 = vset.pattern.permute.xlu0 0
          %4328 = vperm.xlu0 %4327, %v4106
          %v4329 = vpop.permute.xlu0 %4328
          %4332 = vset.pattern.permute.xlu0 0
          %4333 = vperm.xlu0 %4332, %v4107
          %v4334 = vpop.permute.xlu0 %4333
          %4337 = vset.pattern.permute.xlu0 0
          %4338 = vperm.xlu0 %4337, %v4108
          %v4339 = vpop.permute.xlu0 %4338
          %4342 = vset.pattern.permute.xlu0 0
          %4343 = vperm.xlu0 %4342, %v4109
          %v4344 = vpop.permute.xlu0 %4343
          %4347 = vset.pattern.permute.xlu0 0
          %4348 = vperm.xlu0 %4347, %v4110
          %v4349 = vpop.permute.xlu0 %4348
          %4352 = vset.pattern.permute.xlu0 0
          %4353 = vperm.xlu0 %4352, %v4111
          %v4354 = vpop.permute.xlu0 %4353
          %4357 = vset.pattern.permute.xlu0 0
          %4358 = vperm.xlu0 %4357, %v4112
          %v4359 = vpop.permute.xlu0 %4358
          %4362 = vset.pattern.permute.xlu0 0
          %4363 = vperm.xlu0 %4362, %v4113
          %v4364 = vpop.permute.xlu0 %4363
          %4367 = vset.pattern.permute.xlu0 0
          %4368 = vperm.xlu0 %4367, %v4114
          %v4369 = vpop.permute.xlu0 %4368
          %4372 = vset.pattern.permute.xlu0 0
          %4373 = vperm.xlu0 %4372, %v4115
          %v4374 = vpop.permute.xlu0 %4373
          %4377 = vset.pattern.permute.xlu0 0
          %4378 = vperm.xlu0 %4377, %v4116
          %v4379 = vpop.permute.xlu0 %4378
          %4382 = vset.pattern.permute.xlu0 0
          %4383 = vperm.xlu0 %4382, %v4117
          %v4384 = vpop.permute.xlu0 %4383
          %4387 = vset.pattern.permute.xlu0 0
          %4388 = vperm.xlu0 %4387, %v4118
          %v4389 = vpop.permute.xlu0 %4388
          %4392 = vset.pattern.permute.xlu0 0
          %4393 = vperm.xlu0 %4392, %v4119
          %v4394 = vpop.permute.xlu0 %4393
          %4397 = vset.pattern.permute.xlu0 0
          %4398 = vperm.xlu0 %4397, %v4120
          %v4399 = vpop.permute.xlu0 %4398
          %4402 = vset.pattern.permute.xlu0 0
          %4403 = vperm.xlu0 %4402, %v4121
          %v4404 = vpop.permute.xlu0 %4403
          %4407 = vset.pattern.permute.xlu0 0
          %4408 = vperm.xlu0 %4407, %v4122
          %v4409 = vpop.permute.xlu0 %4408
          %4412 = vset.pattern.permute.xlu0 0
          %4413 = vperm.xlu0 %4412, %v4123
          %v4414 = vpop.permute.xlu0 %4413
          %4417 = vset.pattern.permute.xlu0 0
          %4418 = vperm.xlu0 %4417, %v4124
          %v4419 = vpop.permute.xlu0 %4418
          %4422 = vset.pattern.permute.xlu0 0
          %4423 = vperm.xlu0 %4422, %v4125
          %v4424 = vpop.permute.xlu0 %4423
          %4427 = vset.pattern.permute.xlu0 0
          %4428 = vperm.xlu0 %4427, %v4126
          %v4429 = vpop.permute.xlu0 %4428
          %4432 = vset.pattern.permute.xlu0 0
          %4433 = vperm.xlu0 %4432, %v4127
          %v4434 = vpop.permute.xlu0 %4433
          %4437 = vset.pattern.permute.xlu0 0
          %4438 = vperm.xlu0 %4437, %v4128
          %v4439 = vpop.permute.xlu0 %4438
          %4442 = vset.pattern.permute.xlu0 0
          %4443 = vperm.xlu0 %4442, %v4129
          %v4444 = vpop.permute.xlu0 %4443
          %4447 = vset.pattern.permute.xlu0 0
          %4448 = vperm.xlu0 %4447, %v4130
          %v4449 = vpop.permute.xlu0 %4448
          %v4451 = vmul.f32 %v4003, %v4134
          %v4452 = vmul.f32 %v4004, %v4139
          %v4453 = vmul.f32 %v4005, %v4144
          %v4454 = vmul.f32 %v4006, %v4149
          %v4455 = vmul.f32 %v4007, %v4154
          %v4456 = vmul.f32 %v4008, %v4159
          %v4457 = vmul.f32 %v4009, %v4164
          %v4458 = vmul.f32 %v4010, %v4169
          %v4459 = vmul.f32 %v4011, %v4174
          %v4460 = vmul.f32 %v4012, %v4179
          %v4461 = vmul.f32 %v4013, %v4184
          %v4462 = vmul.f32 %v4014, %v4189
          %v4463 = vmul.f32 %v4015, %v4194
          %v4464 = vmul.f32 %v4016, %v4199
          %v4465 = vmul.f32 %v4017, %v4204
          %v4466 = vmul.f32 %v4018, %v4209
          %v4467 = vmul.f32 %v4019, %v4214
          %v4468 = vmul.f32 %v4020, %v4219
          %v4469 = vmul.f32 %v4021, %v4224
          %v4470 = vmul.f32 %v4022, %v4229
          %v4471 = vmul.f32 %v4023, %v4234
          %v4472 = vmul.f32 %v4024, %v4239
          %v4473 = vmul.f32 %v4025, %v4244
          %v4474 = vmul.f32 %v4026, %v4249
          %v4475 = vmul.f32 %v4027, %v4254
          %v4476 = vmul.f32 %v4028, %v4259
          %v4477 = vmul.f32 %v4029, %v4264
          %v4478 = vmul.f32 %v4030, %v4269
          %v4479 = vmul.f32 %v4031, %v4274
          %v4480 = vmul.f32 %v4032, %v4279
          %v4481 = vmul.f32 %v4033, %v4284
          %v4482 = vmul.f32 %v4034, %v4289
          %v4483 = vmul.f32 %v4035, %v4294
          %v4484 = vmul.f32 %v4036, %v4299
          %v4485 = vmul.f32 %v4037, %v4304
          %v4486 = vmul.f32 %v4038, %v4309
          %v4487 = vmul.f32 %v4039, %v4314
          %v4488 = vmul.f32 %v4040, %v4319
          %v4489 = vmul.f32 %v4041, %v4324
          %v4490 = vmul.f32 %v4042, %v4329
          %v4491 = vmul.f32 %v4043, %v4334
          %v4492 = vmul.f32 %v4044, %v4339
          %v4493 = vmul.f32 %v4045, %v4344
          %v4494 = vmul.f32 %v4046, %v4349
          %v4495 = vmul.f32 %v4047, %v4354
          %v4496 = vmul.f32 %v4048, %v4359
          %v4497 = vmul.f32 %v4049, %v4364
          %v4498 = vmul.f32 %v4050, %v4369
          %v4499 = vmul.f32 %v4051, %v4374
          %v4500 = vmul.f32 %v4052, %v4379
          %v4501 = vmul.f32 %v4053, %v4384
          %v4502 = vmul.f32 %v4054, %v4389
          %v4503 = vmul.f32 %v4055, %v4394
          %v4504 = vmul.f32 %v4056, %v4399
          %v4505 = vmul.f32 %v4057, %v4404
          %v4506 = vmul.f32 %v4058, %v4409
          %v4507 = vmul.f32 %v4059, %v4414
          %v4508 = vmul.f32 %v4060, %v4419
          %v4509 = vmul.f32 %v4061, %v4424
          %v4510 = vmul.f32 %v4062, %v4429
          %v4511 = vmul.f32 %v4063, %v4434
          %v4512 = vmul.f32 %v4064, %v4439
          %v4513 = vmul.f32 %v4065, %v4444
          %v4514 = vmul.f32 %v4066, %v4449
          %v4515 = vpack.c.bf16 %v4452, %v4451
          %v4516 = vpack.c.bf16 %v4454, %v4453
          %v4517 = vpack.c.bf16 %v4456, %v4455
          %v4518 = vpack.c.bf16 %v4458, %v4457
          %v4519 = vpack.c.bf16 %v4460, %v4459
          %v4520 = vpack.c.bf16 %v4462, %v4461
          %v4521 = vpack.c.bf16 %v4464, %v4463
          %v4522 = vpack.c.bf16 %v4466, %v4465
          %v4523 = vpack.c.bf16 %v4468, %v4467
          %v4524 = vpack.c.bf16 %v4470, %v4469
          %v4525 = vpack.c.bf16 %v4472, %v4471
          %v4526 = vpack.c.bf16 %v4474, %v4473
          %v4527 = vpack.c.bf16 %v4476, %v4475
          %v4528 = vpack.c.bf16 %v4478, %v4477
          %v4529 = vpack.c.bf16 %v4480, %v4479
          %v4530 = vpack.c.bf16 %v4482, %v4481
          %v4531 = vpack.c.bf16 %v4484, %v4483
          %v4532 = vpack.c.bf16 %v4486, %v4485
          %v4533 = vpack.c.bf16 %v4488, %v4487
          %v4534 = vpack.c.bf16 %v4490, %v4489
          %v4535 = vpack.c.bf16 %v4492, %v4491
          %v4536 = vpack.c.bf16 %v4494, %v4493
          %v4537 = vpack.c.bf16 %v4496, %v4495
          %v4538 = vpack.c.bf16 %v4498, %v4497
          %v4539 = vpack.c.bf16 %v4500, %v4499
          %v4540 = vpack.c.bf16 %v4502, %v4501
          %v4541 = vpack.c.bf16 %v4504, %v4503
          %v4542 = vpack.c.bf16 %v4506, %v4505
          %v4543 = vpack.c.bf16 %v4508, %v4507
          %v4544 = vpack.c.bf16 %v4510, %v4509
          %v4545 = vpack.c.bf16 %v4512, %v4511
          %v4546 = vpack.c.bf16 %v4514, %v4513
          %v4547 = vld [vmem:[#allocation8] sm:$0xf]
          %v4548 = vld [vmem:[#allocation8 + $0x4] sm:$0xf]
          %v4549 = vld [vmem:[#allocation8 + $0x8] sm:$0xf]
          %v4550 = vld [vmem:[#allocation8 + $0xc] sm:$0xf]
          %v4551 = vld [vmem:[#allocation8 + $0x10] sm:$0xf]
          %v4552 = vld [vmem:[#allocation8 + $0x14] sm:$0xf]
          %v4553 = vld [vmem:[#allocation8 + $0x18] sm:$0xf]
          %v4554 = vld [vmem:[#allocation8 + $0x1c] sm:$0xf]
          %v4555 = vld [vmem:[#allocation8 + $0x20] sm:$0xf]
          %v4556 = vld [vmem:[#allocation8 + $0x24] sm:$0xf]
          %v4557 = vld [vmem:[#allocation8 + $0x28] sm:$0xf]
          %v4558 = vld [vmem:[#allocation8 + $0x2c] sm:$0xf]
          %v4559 = vld [vmem:[#allocation8 + $0x30] sm:$0xf]
          %v4560 = vld [vmem:[#allocation8 + $0x34] sm:$0xf]
          %v4561 = vld [vmem:[#allocation8 + $0x38] sm:$0xf]
          %v4562 = vld [vmem:[#allocation8 + $0x3c] sm:$0xf]
          %v4563 = vld [vmem:[#allocation9] sm:$0x1]
          %v4565 = vperm.slane %v4563, 0
          %v4583 = vunpack.c.l.b16 %v4547
          %v4584 = vunpack.c.l.b16 %v4548
          %v4585 = vunpack.c.l.b16 %v4549
          %v4586 = vunpack.c.l.b16 %v4550
          %v4587 = vunpack.c.l.b16 %v4551
          %v4588 = vunpack.c.l.b16 %v4552
          %v4589 = vunpack.c.l.b16 %v4553
          %v4590 = vunpack.c.l.b16 %v4554
          %v4591 = vunpack.c.l.b16 %v4555
          %v4592 = vunpack.c.l.b16 %v4556
          %v4593 = vunpack.c.l.b16 %v4557
          %v4594 = vunpack.c.l.b16 %v4558
          %v4595 = vunpack.c.l.b16 %v4559
          %v4596 = vunpack.c.l.b16 %v4560
          %v4597 = vunpack.c.l.b16 %v4561
          %v4598 = vunpack.c.l.b16 %v4562
          %v4599 = vpack.c.b16 %v4584, %v4583
          %v4600 = vpack.c.b16 %v4586, %v4585
          %v4601 = vpack.c.b16 %v4588, %v4587
          %v4602 = vpack.c.b16 %v4590, %v4589
          %v4603 = vpack.c.b16 %v4592, %v4591
          %v4604 = vpack.c.b16 %v4594, %v4593
          %v4605 = vpack.c.b16 %v4596, %v4595
          %v4606 = vpack.c.b16 %v4598, %v4597
          %4615 = vmatpush.bf16.msra.mxu0 %v4606
          %4616 = vmatpush.bf16.msra.mxu0 %v4605
          %4617 = vmatpush.bf16.msra.mxu0 %v4604
          %4618 = vmatpush.bf16.msra.mxu0 %v4603
          %4619 = vmatpush.bf16.msra.mxu0 %v4602
          %4620 = vmatpush.bf16.msra.mxu0 %v4601
          %4621 = vmatpush.bf16.msra.mxu0 %v4600
          %4622 = vmatpush.bf16.msra.mxu0 %v4599
          %4623 = vmatmul.bf16.gmra.mxu0 %v4515
          %v4624 = vpop.f32.mrf.mxu0
          %v4625 = vadd.f32 %v4565, %v4624
          %v4626 = vpop.f32.mrf.mxu0
          %v4627 = vadd.f32 %v4565, %v4626
          %4628 = vmatmul.bf16.gmra.mxu0 %v4516
          %v4629 = vpop.f32.mrf.mxu0
          %v4630 = vadd.f32 %v4565, %v4629
          %v4631 = vpop.f32.mrf.mxu0
          %v4632 = vadd.f32 %v4565, %v4631
          %4633 = vmatmul.bf16.gmra.mxu0 %v4517
          %v4634 = vpop.f32.mrf.mxu0
          %v4635 = vadd.f32 %v4565, %v4634
          %v4636 = vpop.f32.mrf.mxu0
          %v4637 = vadd.f32 %v4565, %v4636
          %4638 = vmatmul.bf16.gmra.mxu0 %v4518
          %v4639 = vpop.f32.mrf.mxu0
          %v4640 = vadd.f32 %v4565, %v4639
          %v4641 = vpop.f32.mrf.mxu0
          %v4642 = vadd.f32 %v4565, %v4641
          %4643 = vmatmul.bf16.gmra.mxu0 %v4519
          %v4644 = vpop.f32.mrf.mxu0
          %v4645 = vadd.f32 %v4565, %v4644
          %v4646 = vpop.f32.mrf.mxu0
          %v4647 = vadd.f32 %v4565, %v4646
          %4648 = vmatmul.bf16.gmra.mxu0 %v4520
          %v4649 = vpop.f32.mrf.mxu0
          %v4650 = vadd.f32 %v4565, %v4649
          %v4651 = vpop.f32.mrf.mxu0
          %v4652 = vadd.f32 %v4565, %v4651
          %4653 = vmatmul.bf16.gmra.mxu0 %v4521
          %v4654 = vpop.f32.mrf.mxu0
          %v4655 = vadd.f32 %v4565, %v4654
          %v4656 = vpop.f32.mrf.mxu0
          %v4657 = vadd.f32 %v4565, %v4656
          %4658 = vmatmul.bf16.gmra.mxu0 %v4522
          %v4659 = vpop.f32.mrf.mxu0
          %v4660 = vadd.f32 %v4565, %v4659
          %v4661 = vpop.f32.mrf.mxu0
          %v4662 = vadd.f32 %v4565, %v4661
          %4663 = vmatmul.bf16.gmra.mxu0 %v4523
          %v4664 = vpop.f32.mrf.mxu0
          %v4665 = vadd.f32 %v4565, %v4664
          %v4666 = vpop.f32.mrf.mxu0
          %v4667 = vadd.f32 %v4565, %v4666
          %4668 = vmatmul.bf16.gmra.mxu0 %v4524
          %v4669 = vpop.f32.mrf.mxu0
          %v4670 = vadd.f32 %v4565, %v4669
          %v4671 = vpop.f32.mrf.mxu0
          %v4672 = vadd.f32 %v4565, %v4671
          %4673 = vmatmul.bf16.gmra.mxu0 %v4525
          %v4674 = vpop.f32.mrf.mxu0
          %v4675 = vadd.f32 %v4565, %v4674
          %v4676 = vpop.f32.mrf.mxu0
          %v4677 = vadd.f32 %v4565, %v4676
          %4678 = vmatmul.bf16.gmra.mxu0 %v4526
          %v4679 = vpop.f32.mrf.mxu0
          %v4680 = vadd.f32 %v4565, %v4679
          %v4681 = vpop.f32.mrf.mxu0
          %v4682 = vadd.f32 %v4565, %v4681
          %4683 = vmatmul.bf16.gmra.mxu0 %v4527
          %v4684 = vpop.f32.mrf.mxu0
          %v4685 = vadd.f32 %v4565, %v4684
          %v4686 = vpop.f32.mrf.mxu0
          %v4687 = vadd.f32 %v4565, %v4686
          %4688 = vmatmul.bf16.gmra.mxu0 %v4528
          %v4689 = vpop.f32.mrf.mxu0
          %v4690 = vadd.f32 %v4565, %v4689
          %v4691 = vpop.f32.mrf.mxu0
          %v4692 = vadd.f32 %v4565, %v4691
          %4693 = vmatmul.bf16.gmra.mxu0 %v4529
          %v4694 = vpop.f32.mrf.mxu0
          %v4695 = vadd.f32 %v4565, %v4694
          %v4696 = vpop.f32.mrf.mxu0
          %v4697 = vadd.f32 %v4565, %v4696
          %4698 = vmatmul.bf16.gmra.mxu0 %v4530
          %v4699 = vpop.f32.mrf.mxu0
          %v4700 = vadd.f32 %v4565, %v4699
          %v4701 = vpop.f32.mrf.mxu0
          %v4702 = vadd.f32 %v4565, %v4701
          %4703 = vmatmul.bf16.gmra.mxu0 %v4531
          %v4704 = vpop.f32.mrf.mxu0
          %v4705 = vadd.f32 %v4565, %v4704
          %v4706 = vpop.f32.mrf.mxu0
          %v4707 = vadd.f32 %v4565, %v4706
          %4708 = vmatmul.bf16.gmra.mxu0 %v4532
          %v4709 = vpop.f32.mrf.mxu0
          %v4710 = vadd.f32 %v4565, %v4709
          %v4711 = vpop.f32.mrf.mxu0
          %v4712 = vadd.f32 %v4565, %v4711
          %4713 = vmatmul.bf16.gmra.mxu0 %v4533
          %v4714 = vpop.f32.mrf.mxu0
          %v4715 = vadd.f32 %v4565, %v4714
          %v4716 = vpop.f32.mrf.mxu0
          %v4717 = vadd.f32 %v4565, %v4716
          %4718 = vmatmul.bf16.gmra.mxu0 %v4534
          %v4719 = vpop.f32.mrf.mxu0
          %v4720 = vadd.f32 %v4565, %v4719
          %v4721 = vpop.f32.mrf.mxu0
          %v4722 = vadd.f32 %v4565, %v4721
          %4723 = vmatmul.bf16.gmra.mxu0 %v4535
          %v4724 = vpop.f32.mrf.mxu0
          %v4725 = vadd.f32 %v4565, %v4724
          %v4726 = vpop.f32.mrf.mxu0
          %v4727 = vadd.f32 %v4565, %v4726
          %4728 = vmatmul.bf16.gmra.mxu0 %v4536
          %v4729 = vpop.f32.mrf.mxu0
          %v4730 = vadd.f32 %v4565, %v4729
          %v4731 = vpop.f32.mrf.mxu0
          %v4732 = vadd.f32 %v4565, %v4731
          %4733 = vmatmul.bf16.gmra.mxu0 %v4537
          %v4734 = vpop.f32.mrf.mxu0
          %v4735 = vadd.f32 %v4565, %v4734
          %v4736 = vpop.f32.mrf.mxu0
          %v4737 = vadd.f32 %v4565, %v4736
          %4738 = vmatmul.bf16.gmra.mxu0 %v4538
          %v4739 = vpop.f32.mrf.mxu0
          %v4740 = vadd.f32 %v4565, %v4739
          %v4741 = vpop.f32.mrf.mxu0
          %v4742 = vadd.f32 %v4565, %v4741
          %4743 = vmatmul.bf16.gmra.mxu0 %v4539
          %v4744 = vpop.f32.mrf.mxu0
          %v4745 = vadd.f32 %v4565, %v4744
          %v4746 = vpop.f32.mrf.mxu0
          %v4747 = vadd.f32 %v4565, %v4746
          %4748 = vmatmul.bf16.gmra.mxu0 %v4540
          %v4749 = vpop.f32.mrf.mxu0
          %v4750 = vadd.f32 %v4565, %v4749
          %v4751 = vpop.f32.mrf.mxu0
          %v4752 = vadd.f32 %v4565, %v4751
          %4753 = vmatmul.bf16.gmra.mxu0 %v4541
          %v4754 = vpop.f32.mrf.mxu0
          %v4755 = vadd.f32 %v4565, %v4754
          %v4756 = vpop.f32.mrf.mxu0
          %v4757 = vadd.f32 %v4565, %v4756
          %4758 = vmatmul.bf16.gmra.mxu0 %v4542
          %v4759 = vpop.f32.mrf.mxu0
          %v4760 = vadd.f32 %v4565, %v4759
          %v4761 = vpop.f32.mrf.mxu0
          %v4762 = vadd.f32 %v4565, %v4761
          %4763 = vmatmul.bf16.gmra.mxu0 %v4543
          %v4764 = vpop.f32.mrf.mxu0
          %v4765 = vadd.f32 %v4565, %v4764
          %v4766 = vpop.f32.mrf.mxu0
          %v4767 = vadd.f32 %v4565, %v4766
          %4768 = vmatmul.bf16.gmra.mxu0 %v4544
          %v4769 = vpop.f32.mrf.mxu0
          %v4770 = vadd.f32 %v4565, %v4769
          %v4771 = vpop.f32.mrf.mxu0
          %v4772 = vadd.f32 %v4565, %v4771
          %4773 = vmatmul.bf16.gmra.mxu0 %v4545
          %v4774 = vpop.f32.mrf.mxu0
          %v4775 = vadd.f32 %v4565, %v4774
          %v4776 = vpop.f32.mrf.mxu0
          %v4777 = vadd.f32 %v4565, %v4776
          %4778 = vmatmul.bf16.gmra.mxu0 %v4546
          %v4779 = vpop.f32.mrf.mxu0
          %v4780 = vadd.f32 %v4565, %v4779
          %v4781 = vpop.f32.mrf.mxu0
          %v4782 = vadd.f32 %v4565, %v4781
          %4783 = vdwg.mxu0
          %v4784 = vpack.c.bf16 %v4625, %v4625
          %v4785 = vpack.c.bf16 %v4627, %v4627
          %v4786 = vpack.c.bf16 %v4630, %v4630
          %v4787 = vpack.c.bf16 %v4632, %v4632
          %v4788 = vpack.c.bf16 %v4635, %v4635
          %v4789 = vpack.c.bf16 %v4637, %v4637
          %v4790 = vpack.c.bf16 %v4640, %v4640
          %v4791 = vpack.c.bf16 %v4642, %v4642
          %v4792 = vpack.c.bf16 %v4645, %v4645
          %v4793 = vpack.c.bf16 %v4647, %v4647
          %v4794 = vpack.c.bf16 %v4650, %v4650
          %v4795 = vpack.c.bf16 %v4652, %v4652
          %v4796 = vpack.c.bf16 %v4655, %v4655
          %v4797 = vpack.c.bf16 %v4657, %v4657
          %v4798 = vpack.c.bf16 %v4660, %v4660
          %v4799 = vpack.c.bf16 %v4662, %v4662
          %v4800 = vpack.c.bf16 %v4665, %v4665
          %v4801 = vpack.c.bf16 %v4667, %v4667
          %v4802 = vpack.c.bf16 %v4670, %v4670
          %v4803 = vpack.c.bf16 %v4672, %v4672
          %v4804 = vpack.c.bf16 %v4675, %v4675
          %v4805 = vpack.c.bf16 %v4677, %v4677
          %v4806 = vpack.c.bf16 %v4680, %v4680
          %v4807 = vpack.c.bf16 %v4682, %v4682
          %v4808 = vpack.c.bf16 %v4685, %v4685
          %v4809 = vpack.c.bf16 %v4687, %v4687
          %v4810 = vpack.c.bf16 %v4690, %v4690
          %v4811 = vpack.c.bf16 %v4692, %v4692
          %v4812 = vpack.c.bf16 %v4695, %v4695
          %v4813 = vpack.c.bf16 %v4697, %v4697
          %v4814 = vpack.c.bf16 %v4700, %v4700
          %v4815 = vpack.c.bf16 %v4702, %v4702
          %v4816 = vpack.c.bf16 %v4705, %v4705
          %v4817 = vpack.c.bf16 %v4707, %v4707
          %v4818 = vpack.c.bf16 %v4710, %v4710
          %v4819 = vpack.c.bf16 %v4712, %v4712
          %v4820 = vpack.c.bf16 %v4715, %v4715
          %v4821 = vpack.c.bf16 %v4717, %v4717
          %v4822 = vpack.c.bf16 %v4720, %v4720
          %v4823 = vpack.c.bf16 %v4722, %v4722
          %v4824 = vpack.c.bf16 %v4725, %v4725
          %v4825 = vpack.c.bf16 %v4727, %v4727
          %v4826 = vpack.c.bf16 %v4730, %v4730
          %v4827 = vpack.c.bf16 %v4732, %v4732
          %v4828 = vpack.c.bf16 %v4735, %v4735
          %v4829 = vpack.c.bf16 %v4737, %v4737
          %v4830 = vpack.c.bf16 %v4740, %v4740
          %v4831 = vpack.c.bf16 %v4742, %v4742
          %v4832 = vpack.c.bf16 %v4745, %v4745
          %v4833 = vpack.c.bf16 %v4747, %v4747
          %v4834 = vpack.c.bf16 %v4750, %v4750
          %v4835 = vpack.c.bf16 %v4752, %v4752
          %v4836 = vpack.c.bf16 %v4755, %v4755
          %v4837 = vpack.c.bf16 %v4757, %v4757
          %v4838 = vpack.c.bf16 %v4760, %v4760
          %v4839 = vpack.c.bf16 %v4762, %v4762
          %v4840 = vpack.c.bf16 %v4765, %v4765
          %v4841 = vpack.c.bf16 %v4767, %v4767
          %v4842 = vpack.c.bf16 %v4770, %v4770
          %v4843 = vpack.c.bf16 %v4772, %v4772
          %v4844 = vpack.c.bf16 %v4775, %v4775
          %v4845 = vpack.c.bf16 %v4777, %v4777
          %v4846 = vpack.c.bf16 %v4780, %v4780
          %v4847 = vpack.c.bf16 %v4782, %v4782
          %4848 = vst [vmem:[%s325] sm:$0xf] %v4784
          %4849 = vst [vmem:[%s325 + $0x4] sm:$0xf] %v4785
          %4850 = vst [vmem:[%s325 + $0x8] sm:$0xf] %v4786
          %4851 = vst [vmem:[%s325 + $0xc] sm:$0xf] %v4787
          %4852 = vst [vmem:[%s325 + $0x10] sm:$0xf] %v4788
          %4853 = vst [vmem:[%s325 + $0x14] sm:$0xf] %v4789
          %4854 = vst [vmem:[%s325 + $0x18] sm:$0xf] %v4790
          %4855 = vst [vmem:[%s325 + $0x1c] sm:$0xf] %v4791
          %4856 = vst [vmem:[%s325 + $0x20] sm:$0xf] %v4792
          %4857 = vst [vmem:[%s325 + $0x24] sm:$0xf] %v4793
          %4858 = vst [vmem:[%s325 + $0x28] sm:$0xf] %v4794
          %4859 = vst [vmem:[%s325 + $0x2c] sm:$0xf] %v4795
          %4860 = vst [vmem:[%s325 + $0x30] sm:$0xf] %v4796
          %4861 = vst [vmem:[%s325 + $0x34] sm:$0xf] %v4797
          %4862 = vst [vmem:[%s325 + $0x38] sm:$0xf] %v4798
          %4863 = vst [vmem:[%s325 + $0x3c] sm:$0xf] %v4799
          %4864 = vst [vmem:[%s325 + $0x40] sm:$0xf] %v4800
          %4865 = vst [vmem:[%s325 + $0x44] sm:$0xf] %v4801
          %4866 = vst [vmem:[%s325 + $0x48] sm:$0xf] %v4802
          %4867 = vst [vmem:[%s325 + $0x4c] sm:$0xf] %v4803
          %4868 = vst [vmem:[%s325 + $0x50] sm:$0xf] %v4804
          %4869 = vst [vmem:[%s325 + $0x54] sm:$0xf] %v4805
          %4870 = vst [vmem:[%s325 + $0x58] sm:$0xf] %v4806
          %4871 = vst [vmem:[%s325 + $0x5c] sm:$0xf] %v4807
          %4872 = vst [vmem:[%s325 + $0x60] sm:$0xf] %v4808
          %4873 = vst [vmem:[%s325 + $0x64] sm:$0xf] %v4809
          %4874 = vst [vmem:[%s325 + $0x68] sm:$0xf] %v4810
          %4875 = vst [vmem:[%s325 + $0x6c] sm:$0xf] %v4811
          %4876 = vst [vmem:[%s325 + $0x70] sm:$0xf] %v4812
          %4877 = vst [vmem:[%s325 + $0x74] sm:$0xf] %v4813
          %4878 = vst [vmem:[%s325 + $0x78] sm:$0xf] %v4814
          %4879 = vst [vmem:[%s325 + $0x7c] sm:$0xf] %v4815
          %4880 = vst [vmem:[%s325 + $0x80] sm:$0xf] %v4816
          %4881 = vst [vmem:[%s325 + $0x84] sm:$0xf] %v4817
          %4882 = vst [vmem:[%s325 + $0x88] sm:$0xf] %v4818
          %4883 = vst [vmem:[%s325 + $0x8c] sm:$0xf] %v4819
          %4884 = vst [vmem:[%s325 + $0x90] sm:$0xf] %v4820
          %4885 = vst [vmem:[%s325 + $0x94] sm:$0xf] %v4821
          %4886 = vst [vmem:[%s325 + $0x98] sm:$0xf] %v4822
          %4887 = vst [vmem:[%s325 + $0x9c] sm:$0xf] %v4823
          %4888 = vst [vmem:[%s325 + $0xa0] sm:$0xf] %v4824
          %4889 = vst [vmem:[%s325 + $0xa4] sm:$0xf] %v4825
          %4890 = vst [vmem:[%s325 + $0xa8] sm:$0xf] %v4826
          %4891 = vst [vmem:[%s325 + $0xac] sm:$0xf] %v4827
          %4892 = vst [vmem:[%s325 + $0xb0] sm:$0xf] %v4828
          %4893 = vst [vmem:[%s325 + $0xb4] sm:$0xf] %v4829
          %4894 = vst [vmem:[%s325 + $0xb8] sm:$0xf] %v4830
          %4895 = vst [vmem:[%s325 + $0xbc] sm:$0xf] %v4831
          %4896 = vst [vmem:[%s325 + $0xc0] sm:$0xf] %v4832
          %4897 = vst [vmem:[%s325 + $0xc4] sm:$0xf] %v4833
          %4898 = vst [vmem:[%s325 + $0xc8] sm:$0xf] %v4834
          %4899 = vst [vmem:[%s325 + $0xcc] sm:$0xf] %v4835
          %4900 = vst [vmem:[%s325 + $0xd0] sm:$0xf] %v4836
          %4901 = vst [vmem:[%s325 + $0xd4] sm:$0xf] %v4837
          %4902 = vst [vmem:[%s325 + $0xd8] sm:$0xf] %v4838
          %4903 = vst [vmem:[%s325 + $0xdc] sm:$0xf] %v4839
          %4904 = vst [vmem:[%s325 + $0xe0] sm:$0xf] %v4840
          %4905 = vst [vmem:[%s325 + $0xe4] sm:$0xf] %v4841
          %4906 = vst [vmem:[%s325 + $0xe8] sm:$0xf] %v4842
          %4907 = vst [vmem:[%s325 + $0xec] sm:$0xf] %v4843
          %4908 = vst [vmem:[%s325 + $0xf0] sm:$0xf] %v4844
          %4909 = vst [vmem:[%s325 + $0xf4] sm:$0xf] %v4845
          %4910 = vst [vmem:[%s325 + $0xf8] sm:$0xf] %v4846
          %4911 = vst [vmem:[%s325 + $0xfc] sm:$0xf] %v4847
        $region64: #{tpu_custom_call.1} parent=39 // pred_fallthru
          _
        %s4912 = sand.u32 %s161, 1
        %s4913 = scalar_lea.sflag [#allocation5], %s4912
        %s4914 = sand.u32 %s161, 1
        %s4915 = smul.addr %s4914, 256
        %s4916 = scalar_lea.vmem [#allocation11], %s4915
        // Predicated region
        $region65: #{tpu_custom_call.1} parent=39 // pred_check
          %p4917 = pneg %p171
        $region66: #{tpu_custom_call.1} parent=39 // pred_check_branch
          %4919 = sbr.rel (%p4917) target = $region68
        $region67: #{tpu_custom_call.1} parent=39 // pred_region
          %s4920 = smul.u32 64, %s28
          %4922 = vsyncadd %s4913, 0
          %s4923 = smul.addr %s4920, 4
          %s4924 = scalar_lea.hbm %s5, %s4923
          %s4925 = sshll.u32 %s4916, 4
          %s4926 = int_to_ptr.vmem [resolvable:$true] %s4925
          %s4927 = sshll.u32 %s4924, 4
          %s4928 = int_to_ptr.hbm [resolvable:$true] %s4927
          %4933 = dma.vmem_to_hbm [thread:$0]  %s4926, 4096, %s4928, %s4913, 64, 64, 4
        $region68: #{tpu_custom_call.1} parent=39 // pred_fallthru
          _
      $region40: #{tpu_custom_call.1} parent=5 // pred_fallthru
        _
      %p4934 = scmp.le.s32.totalorder 2, %s19
      // Predicated region
      $region69: #{tpu_custom_call.1} parent=5 // pred_check
        %p4935 = pneg %p4934
      $region70: #{tpu_custom_call.1} parent=5 // pred_check_branch
        %4937 = sbr.rel (%p4935) target = $region72
      $region71: #{tpu_custom_call.1} parent=5 // pred_region
        %s4938 = ssub.s32 %s19, 2
        // Predicated region
        $region73: #{tpu_custom_call.1} parent=71 // pred_check
          %p4939 = pneg %p177
        $region74: #{tpu_custom_call.1} parent=71 // pred_check_branch
          %4941 = sbr.rel (%p4939) target = $region76
        $region75: #{tpu_custom_call.1} parent=71 // pred_region
          %s4942 = sand.u32 %s162, 1
          %s4943 = scalar_lea.sflag [#allocation5], %s4942
          %s4944 = sand.u32 %s162, 1
          %s4945 = smul.addr %s4944, 256
          %s4946 = scalar_lea.vmem [#allocation11], %s4945
          %4948 = dma.done %s4943, 4096
        $region76: #{tpu_custom_call.1} parent=71 // pred_fallthru
          _
      $region72: #{tpu_custom_call.1} parent=5 // pred_fallthru
        _
    $region6: #{tpu_custom_call.1} parent=1 // loop_footer
      %s23 = sadd.s32 1, %s19
    $region7: #{tpu_custom_call.1} parent=1 // loop_footer_branch
      %18 = sbr.rel target = $region3
    $region8: #{tpu_custom_call.1} parent=1 // loop_exit
      _
    %4949 = vsyncpa [#allocation4], 1
    %s4950 = scalar_lea.sflag [#allocation4], 1
    %4951 = vsyncpa %s4950, 1
    %4952 = vsyncpa [#allocation7], 1
    %4953 = vsyncpa [#allocation10], 1
    %4954 = vsyncpa [#allocation5], 1
    %s4955 = scalar_lea.sflag [#allocation5], 1
    %4956 = vsyncpa %s4955, 1

</llo_original>
